<compile_context>
chip_gen: v7x
topology: tpu7x:2x2x1
jax: 0.10.0
libtpu: 0.0.40
codegen_flags: <defaults>
</compile_context>

<pallas_src>
import functools

import jax
import jax.numpy as jnp
from jax.experimental import pallas as pl
from jax.experimental.pallas import tpu as pltpu


# ---------------------------------------------------------------------------
# Tiling helper: largest divisor of `total` that is a multiple of 8 and small
# enough to give >= 2 programs on the parallel axis; falls back to the full dim.
# ---------------------------------------------------------------------------
def _pick_tile(total, target):
    cap = min(target, total // 2)
    for c in range(cap, 7, -1):
        if total % c == 0 and c % 8 == 0:
            return c
    return total


# ---------------------------------------------------------------------------
# kNN scores: ordering-only negative squared distance  2<xi,xj> - |xj|^2.
# (The row-constant -|xi|^2 term is dropped -- identical top_k result, and the
#  N x N transpose of the original formulation is eliminated.)
# ---------------------------------------------------------------------------
def _knn_score_kernel(xq_ref, xall_ref, sq_ref, o_ref):
    inner = jax.lax.dot_general(
        xq_ref[...], xall_ref[...], (((1,), (1,)), ((), ())),
        preferred_element_type=jnp.float32)                      # (TQ, N) f32
    o_ref[...] = 2.0 * inner - sq_ref[...]                       # broadcast (1, N)


def knn_indices(x, x_bf, k, *, tq_target=256):
    """x: (B, N, C) f32, x_bf: same in bf16 -> (B, N, k) int32 neighbor indices."""
    B, N, C = x.shape
    k = min(k, N)
    TQ = _pick_tile(N, tq_target)
    sq = jnp.sum(jnp.square(x), axis=-1)[:, None, :]             # (B, 1, N) f32

    scores = pl.pallas_call(
        _knn_score_kernel,
        out_shape=jax.ShapeDtypeStruct((B, N, N), jnp.float32),
        grid_spec=pltpu.PrefetchScalarGridSpec(
            num_scalar_prefetch=0,
            grid=(B, N // TQ),
            in_specs=[
                pl.BlockSpec((None, TQ, C), lambda b, i: (b, i, 0)),
                pl.BlockSpec((None, N, C), lambda b, i: (b, 0, 0)),
                pl.BlockSpec((None, 1, N), lambda b, i: (b, 0, 0)),
            ],
            out_specs=pl.BlockSpec((None, TQ, N), lambda b, i: (b, i, 0)),
        ),
        compiler_params=pltpu.CompilerParams(
            dimension_semantics=("parallel", "parallel")),
    )(x_bf, x_bf, sq)

    # TODO(synk): for large N, fuse a streaming per-row top-k into the score kernel
    # instead of materializing the (B, N, N) matrix; lax.top_k has no clean Pallas
    # TPU equivalent, so neighbor selection stays plain-JAX glue.
    return jax.lax.top_k(scores, k)[1]                           # (B, N, k), self incl.


def gather_neighbors(x_bf, idx):
    """x_bf: (B, N, C) bf16, idx: (B, N, k) -> (k, B*N, C) bf16 (k-major stream)."""
    B, N, C = x_bf.shape
    kk = idx.shape[-1]
    idx_km = jnp.transpose(idx, (2, 0, 1))                       # (k, B, N)
    # TODO(synk): arbitrary per-row gather has no clean in-kernel Pallas form
    # (scalar-prefetched idx + Element BlockSpec only covers rectangular blocks),
    # so the gather stays in XLA; it gathers bf16 rows of width Cin only (half the
    # original 2*Cin edge-tensor footprint, no center broadcast / concat).
    nbr = jax.vmap(lambda xb, ib: xb[ib], in_axes=(0, 1), out_axes=1)(x_bf, idx_km)
    return nbr.reshape(kk, B * N, C)                             # (k, B*N, C)


# ---------------------------------------------------------------------------
# Fused graph-conv kernel: hoisted center matmul + per-k neighbor matmul + ReLU
# [+ second MLP layer] + max/sum aggregation over k [+ residual] in ONE kernel.
# Grid = (row_tiles [parallel], k [arbitrary reduction]).
# ---------------------------------------------------------------------------
def _edgeconv_kernel(*refs, mlp_layer, aggregate, residual, project_residual):
    refs = list(refs)
    nbr_ref, x_ref, w1c_ref, w1n_ref, b1_ref = refs[:5]
    pos = 5
    if mlp_layer:
        w2_ref, b2_ref = refs[pos:pos + 2]
        pos += 2
    if project_residual:
        wr_ref = refs[pos]
        pos += 1
    o_ref, center_ref, acc_ref = refs[pos:pos + 3]

    kk = pl.program_id(1)
    x_f32 = x_ref[...]                                           # (TM, C) f32, resident
    x_bf = x_f32.astype(jnp.bfloat16)

    # Hoisted center term: x_i @ W1_top + b1, computed once per row tile.
    @pl.when(kk == 0)
    def _():
        center_ref[...] = (
            jnp.dot(x_bf, w1c_ref[...], preferred_element_type=jnp.float32)
            + b1_ref[...])

    # Per-neighbor term: (x_j - x_i) @ W1_bot   (streamed block is only (TM, C)).
    d = (nbr_ref[...].astype(jnp.float32) - x_f32).astype(jnp.bfloat16)
    h = jnp.dot(d, w1n_ref[...], preferred_element_type=jnp.float32) + center_ref[...]
    h = jnp.maximum(h, 0.0)
    if mlp_layer:
        h = (jnp.dot(h.astype(jnp.bfloat16), w2_ref[...],
                     preferred_element_type=jnp.float32) + b2_ref[...])
        h = jnp.maximum(h, 0.0)

    @pl.when(kk == 0)
    def _():
        acc_ref[...] = h

    @pl.when(kk > 0)
    def _():
        if aggregate == "max":
            acc_ref[...] = jnp.maximum(acc_ref[...], h)
        else:  # 'sum'
            acc_ref[...] = acc_ref[...] + h

    @pl.when(kk == pl.num_programs(1) - 1)
    def _():
        out = acc_ref[...]
        if residual:
            if project_residual:
                out = out + jnp.dot(x_bf, wr_ref[...],
                                    preferred_element_type=jnp.float32)
            else:
                out = out + x_f32
        o_ref[...] = out.astype(o_ref.dtype)


def graph_conv_layer(x, p, *, k, aggregate, mlp_layer, residual, tm_target=512):
    """x: (B, N, C) f32 -> (B, N, Cout) f32. One fused Pallas call after kNN."""
    B, N, C = x.shape
    Cout = p["w1n"].shape[1]

    x_bf = x.astype(jnp.bfloat16)
    idx = knn_indices(x, x_bf, k)                                # (B, N, k)
    nbr = gather_neighbors(x_bf, idx)                            # (k, B*N, C) bf16
    kk = idx.shape[-1]

    R = B * N
    TM = _pick_tile(R, tm_target)
    xr = x.reshape(R, C)

    project_residual = residual and (C != Cout)

    operands = [
        nbr, xr,
        p["w1c"].astype(jnp.bfloat16), p["w1n"].astype(jnp.bfloat16),
        p["b1"].reshape(1, Cout).astype(jnp.float32),
    ]
    in_specs = [
        pl.BlockSpec((None, TM, C), lambda i, j: (j, i, 0)),     # streamed nbr (k-major)
        pl.BlockSpec((TM, C), lambda i, j: (i, 0)),              # resident center rows
        pl.BlockSpec((C, Cout), lambda i, j: (0, 0)),
        pl.BlockSpec((C, Cout), lambda i, j: (0, 0)),
        pl.BlockSpec((1, Cout), lambda i, j: (0, 0)),
    ]
    if mlp_layer:
        operands += [p["w2"].astype(jnp.bfloat16),
                     p["b2"].reshape(1, Cout).astype(jnp.float32)]
        in_specs += [pl.BlockSpec((Cout, Cout), lambda i, j: (0, 0)),
                     pl.BlockSpec((1, Cout), lambda i, j: (0, 0))]
    if project_residual:
        operands += [p["wr"].astype(jnp.bfloat16)]
        in_specs += [pl.BlockSpec((C, Cout), lambda i, j: (0, 0))]

    out = pl.pallas_call(
        functools.partial(_edgeconv_kernel, mlp_layer=mlp_layer, aggregate=aggregate,
                          residual=residual, project_residual=project_residual),
        out_shape=jax.ShapeDtypeStruct((R, Cout), jnp.float32),
        grid_spec=pltpu.PrefetchScalarGridSpec(
            num_scalar_prefetch=0,
            grid=(R // TM, kk),
            in_specs=in_specs,
            out_specs=pl.BlockSpec((TM, Cout), lambda i, j: (i, 0)),
            scratch_shapes=[pltpu.VMEM((TM, Cout), jnp.float32),   # hoisted center term
                            pltpu.VMEM((TM, Cout), jnp.float32)],  # aggregation acc
        ),
        compiler_params=pltpu.CompilerParams(
            dimension_semantics=("parallel", "arbitrary")),
    )(*operands)
    return out.reshape(B, N, Cout)


# ---------------------------------------------------------------------------
# Full GCNFeatureExtractor forward.
#   feature: (B, N, C_in)  (the PyTorch forward permutes to channels-first for its
#   conv-based layers; here the layers are channels-last natively, so only one
#   transpose is done at the very end to match torch.cat(feature_lst, dim=1)).
# ---------------------------------------------------------------------------
def gcn_feature_extractor_forward(feature, params, *, k_edgeconv=20, k_idgcn=12):
    x = feature                                                  # (B, N, C_in)
    layers = params["layers"]

    # layer 0: EdgeConv(C_in -> emb, k=20, mlp_layer=True), max aggregation, no skip
    x = graph_conv_layer(x, layers[0], k=k_edgeconv, aggregate="max",
                         mlp_layer=True, residual=False)

    feats = []
    # layers 1 .. L-1: IDGCNLayer(..., residual=True); outputs are collected
    for lp in layers[1:]:
        x = graph_conv_layer(x, lp, k=k_idgcn, aggregate="max",
                             mlp_layer=False, residual=True)
        feats.append(x)

    out = jnp.concatenate(feats, axis=-1)                        # (B, N, C_cat)
    return jnp.transpose(out, (0, 2, 1))                         # (B, C_cat, N) == cat(dim=1)


# ---------------------------------------------------------------------------
# Deterministic parameter init. W1 of each layer is stored pre-split into its
# center part (w1c, applied to x_i) and neighbor part (w1n, applied to x_j - x_i).
# ---------------------------------------------------------------------------
def init_params(key, layer_num, in_dim, out_dim, emb_dim=128):
    def dense(k, cin, cout):
        kw, kb = jax.random.split(k)
        w = jax.random.normal(kw, (cin, cout), jnp.float32) * (2.0 / cin) ** 0.5
        b = jax.random.normal(kb, (cout,), jnp.float32) * 0.01
        return w, b

    keys = jax.random.split(key, layer_num)
    layers = []

    # layer 0: EdgeConv(in_dim -> emb_dim, mlp_layer=True)
    k0 = jax.random.split(keys[0], 3)
    w1c, b1 = dense(k0[0], in_dim, emb_dim)
    w1n, _ = dense(k0[1], in_dim, emb_dim)
    w2, b2 = dense(k0[2], emb_dim, emb_dim)
    layers.append(dict(w1c=w1c, w1n=w1n, b1=b1, w2=w2, b2=b2))

    # middle layers: IDGCN(emb -> emb), identity residual
    for l in range(1, layer_num - 1):
        kl = jax.random.split(keys[l], 2)
        w1c, b1 = dense(kl[0], emb_dim, emb_dim)
        w1n, _ = dense(kl[1], emb_dim, emb_dim)
        layers.append(dict(w1c=w1c, w1n=w1n, b1=b1))

    # last layer: IDGCN(emb -> out), 1x1-projection residual
    kl = jax.random.split(keys[layer_num - 1], 3)
    w1c, b1 = dense(kl[0], emb_dim, out_dim)
    w1n, _ = dense(kl[1], emb_dim, out_dim)
    wr, _ = dense(kl[2], emb_dim, out_dim)
    layers.append(dict(w1c=w1c, w1n=w1n, b1=b1, wr=wr))

    return {"layers": layers}


if __name__ == "__main__":
    key = jax.random.PRNGKey(0)
    k_in, k_par = jax.random.split(key)

    B, N = 2, 64                          # batch, number of points
    layer_num = 3
    in_dim, emb_dim, out_dim = 16, 64, 32

    feature = jax.random.normal(k_in, (B, N, in_dim), jnp.float32)
    params = init_params(k_par, layer_num, in_dim, out_dim, emb_dim)

    fwd = jax.jit(functools.partial(gcn_feature_extractor_forward,
                                    k_edgeconv=20, k_idgcn=12))
    out = jax.block_until_ready(fwd(feature, params))

    expect_c = (layer_num - 2) * emb_dim + out_dim
    assert out.shape == (B, expect_c, N), out.shape
    assert bool(jnp.isfinite(out).all())
    print("KERNEL_OK")
</pallas_src>

<mosaic_0001>
module attributes {stable_mosaic.version = 11 : i64} {
  func.func @_knn_score_kernel(%arg0: i32, %arg1: i32, %arg2: memref<1x32x16xbf16, #tpu.memory_space<vmem>>, %arg3: memref<1x64x16xbf16, #tpu.memory_space<vmem>>, %arg4: memref<1x1x64xf32, #tpu.memory_space<vmem>>, %arg5: memref<1x32x64xf32, #tpu.memory_space<vmem>>) attributes {dimension_semantics = [#tpu.dimension_semantics<parallel>, #tpu.dimension_semantics<parallel>], iteration_bounds = array<i64: 2, 2>, scalar_prefetch = 0 : i64, scratch_operands = 0 : i64, tpu.core_type = #tpu.core_type<tc>, window_params = [{transform_indices = @transform_0, window_bounds = array<i64: 1, 32, 16>}, {transform_indices = @transform_1, window_bounds = array<i64: 1, 64, 16>}, {transform_indices = @transform_2, window_bounds = array<i64: 1, 1, 64>}, {transform_indices = @transform_3, window_bounds = array<i64: 1, 32, 64>}]} {
    %c0 = arith.constant 0 : index
    %c0_0 = arith.constant 0 : index
    %c0_1 = arith.constant 0 : index
    %0 = vector.load %arg2[%c0, %c0_0, %c0_1] : memref<1x32x16xbf16, #tpu.memory_space<vmem>>, vector<1x32x16xbf16>
    %1 = vector.shape_cast %0 : vector<1x32x16xbf16> to vector<32x16xbf16>
    %c0_2 = arith.constant 0 : index
    %c0_3 = arith.constant 0 : index
    %c0_4 = arith.constant 0 : index
    %2 = vector.load %arg3[%c0_2, %c0_3, %c0_4] : memref<1x64x16xbf16, #tpu.memory_space<vmem>>, vector<1x64x16xbf16>
    %3 = vector.shape_cast %2 : vector<1x64x16xbf16> to vector<64x16xbf16>
    %cst = arith.constant dense<0.000000e+00> : vector<32x64xf32>
    %4 = tpu.matmul %1, %3, %cst {dimension_numbers = #tpu.dot_dimension_numbers<[1], [1], [0], [0], [0, 0, 1, 0], [], []>} : vector<32x16xbf16>, vector<64x16xbf16>, vector<32x64xf32> -> vector<32x64xf32>
    %cst_5 = arith.constant 2.000000e+00 : f32
    %5 = vector.broadcast %cst_5 : f32 to vector<32x64xf32>
    %6 = arith.mulf %5, %4 : vector<32x64xf32>
    %c0_6 = arith.constant 0 : index
    %c0_7 = arith.constant 0 : index
    %c0_8 = arith.constant 0 : index
    %7 = vector.load %arg4[%c0_6, %c0_7, %c0_8] : memref<1x1x64xf32, #tpu.memory_space<vmem>>, vector<1x1x64xf32>
    %8 = vector.shape_cast %7 : vector<1x1x64xf32> to vector<1x64xf32>
    %9 = vector.broadcast %8 : vector<1x64xf32> to vector<32x64xf32>
    %10 = arith.subf %6, %9 : vector<32x64xf32>
    %c0_9 = arith.constant 0 : index
    %c0_10 = arith.constant 0 : index
    %c0_11 = arith.constant 0 : index
    %11 = vector.load %arg5[%c0_9, %c0_10, %c0_11] : memref<1x32x64xf32, #tpu.memory_space<vmem>>, vector<1x32x64xf32>
    %12 = vector.shape_cast %11 : vector<1x32x64xf32> to vector<32x64xf32>
    %13 = vector.shape_cast %10 : vector<32x64xf32> to vector<1x32x64xf32>
    tpu.vector_store %arg5[%c0_9, %c0_10, %c0_11], %13 {strides = array<i32>} : memref<1x32x64xf32, #tpu.memory_space<vmem>>, vector<1x32x64xf32>,
    return
  }
  func.func @transform_0(%arg0: i32, %arg1: i32) -> (i32, i32, i32) {
    %c0_i32 = arith.constant 0 : i32
    %c0_i32_0 = arith.constant 0 : i32
    return %arg0, %arg1, %c0_i32 : i32, i32, i32
  }
  func.func @transform_1(%arg0: i32, %arg1: i32) -> (i32, i32, i32) {
    %c0_i32 = arith.constant 0 : i32
    %c0_i32_0 = arith.constant 0 : i32
    %c0_i32_1 = arith.constant 0 : i32
    return %arg0, %c0_i32, %c0_i32_0 : i32, i32, i32
  }
  func.func @transform_2(%arg0: i32, %arg1: i32) -> (i32, i32, i32) {
    %c0_i32 = arith.constant 0 : i32
    %c0_i32_0 = arith.constant 0 : i32
    %c0_i32_1 = arith.constant 0 : i32
    return %arg0, %c0_i32, %c0_i32_0 : i32, i32, i32
  }
  func.func @transform_3(%arg0: i32, %arg1: i32) -> (i32, i32, i32) {
    %c0_i32 = arith.constant 0 : i32
    %c0_i32_0 = arith.constant 0 : i32
    return %arg0, %arg1, %c0_i32 : i32, i32, i32
  }
}

module attributes {stable_mosaic.version = 11 : i64} {
  func.func @_edgeconv_kernel(%arg0: i32, %arg1: i32, %arg2: memref<1x64x16xbf16, #tpu.memory_space<vmem>>, %arg3: memref<64x16xf32, #tpu.memory_space<vmem>>, %arg4: memref<16x64xbf16, #tpu.memory_space<vmem>>, %arg5: memref<16x64xbf16, #tpu.memory_space<vmem>>, %arg6: memref<1x64xf32, #tpu.memory_space<vmem>>, %arg7: memref<64x64xbf16, #tpu.memory_space<vmem>>, %arg8: memref<1x64xf32, #tpu.memory_space<vmem>>, %arg9: memref<64x64xf32, #tpu.memory_space<vmem>>, %arg10: memref<64x64xf32, #tpu.memory_space<vmem>>, %arg11: memref<64x64xf32, #tpu.memory_space<vmem>>) attributes {dimension_semantics = [#tpu.dimension_semantics<parallel>, #tpu.dimension_semantics<arbitrary>], iteration_bounds = array<i64: 2, 20>, scalar_prefetch = 0 : i64, scratch_operands = 2 : i64, tpu.core_type = #tpu.core_type<tc>, window_params = [{transform_indices = @transform_0, window_bounds = array<i64: 1, 64, 16>}, {transform_indices = @transform_1, window_bounds = array<i64: 64, 16>}, {pipeline_mode = #tpu.pipeline_mode<synchronous>, transform_indices = @transform_2, window_bounds = array<i64: 16, 64>}, {pipeline_mode = #tpu.pipeline_mode<synchronous>, transform_indices = @transform_3, window_bounds = array<i64: 16, 64>}, {pipeline_mode = #tpu.pipeline_mode<synchronous>, transform_indices = @transform_4, window_bounds = array<i64: 1, 64>}, {pipeline_mode = #tpu.pipeline_mode<synchronous>, transform_indices = @transform_5, window_bounds = array<i64: 64, 64>}, {pipeline_mode = #tpu.pipeline_mode<synchronous>, transform_indices = @transform_6, window_bounds = array<i64: 1, 64>}, {transform_indices = @transform_7, window_bounds = array<i64: 64, 64>}]} {
    %c0 = arith.constant 0 : index
    %c0_0 = arith.constant 0 : index
    %0 = vector.load %arg3[%c0, %c0_0] : memref<64x16xf32, #tpu.memory_space<vmem>>, vector<64x16xf32>
    %1 = arith.truncf %0 : vector<64x16xf32> to vector<64x16xbf16>
    %c0_i32 = arith.constant 0 : i32
    %2 = arith.cmpi eq, %arg1, %c0_i32 : i32
    %3 = arith.extui %2 : i1 to i32
    %c0_i32_1 = arith.constant 0 : i32
    %4 = arith.cmpi ne, %3, %c0_i32_1 : i32
    scf.if %4 {
      %c0_21 = arith.constant 0 : index
      %c0_22 = arith.constant 0 : index
      %33 = vector.load %arg4[%c0_21, %c0_22] : memref<16x64xbf16, #tpu.memory_space<vmem>>, vector<16x64xbf16>
      %cst_23 = arith.constant dense<0.000000e+00> : vector<64x64xf32>
      %34 = tpu.matmul %1, %33, %cst_23 {dimension_numbers = #tpu.dot_dimension_numbers<[1], [0], [0], [1], [0, 0, 1, 1], [], []>} : vector<64x16xbf16>, vector<16x64xbf16>, vector<64x64xf32> -> vector<64x64xf32>
      %c0_24 = arith.constant 0 : index
      %c0_25 = arith.constant 0 : index
      %35 = vector.load %arg6[%c0_24, %c0_25] : memref<1x64xf32, #tpu.memory_space<vmem>>, vector<1x64xf32>
      %36 = vector.broadcast %35 : vector<1x64xf32> to vector<64x64xf32>
      %37 = arith.addf %34, %36 : vector<64x64xf32>
      %c0_26 = arith.constant 0 : index
      %c0_27 = arith.constant 0 : index
      %38 = vector.load %arg10[%c0_26, %c0_27] : memref<64x64xf32, #tpu.memory_space<vmem>>, vector<64x64xf32>
      tpu.vector_store %arg10[%c0_26, %c0_27], %37 {strides = array<i32>} : memref<64x64xf32, #tpu.memory_space<vmem>>, vector<64x64xf32>,
    } else {
    }
    %c0_2 = arith.constant 0 : index
    %c0_3 = arith.constant 0 : index
    %c0_4 = arith.constant 0 : index
    %5 = vector.load %arg2[%c0_2, %c0_3, %c0_4] : memref<1x64x16xbf16, #tpu.memory_space<vmem>>, vector<1x64x16xbf16>
    %6 = vector.shape_cast %5 : vector<1x64x16xbf16> to vector<64x16xbf16>
    %7 = arith.extf %6 : vector<64x16xbf16> to vector<64x16xf32>
    %8 = arith.subf %7, %0 : vector<64x16xf32>
    %9 = arith.truncf %8 : vector<64x16xf32> to vector<64x16xbf16>
    %c0_5 = arith.constant 0 : index
    %c0_6 = arith.constant 0 : index
    %10 = vector.load %arg5[%c0_5, %c0_6] : memref<16x64xbf16, #tpu.memory_space<vmem>>, vector<16x64xbf16>
    %cst = arith.constant dense<0.000000e+00> : vector<64x64xf32>
    %11 = tpu.matmul %9, %10, %cst {dimension_numbers = #tpu.dot_dimension_numbers<[1], [0], [0], [1], [0, 0, 1, 1], [], []>} : vector<64x16xbf16>, vector<16x64xbf16>, vector<64x64xf32> -> vector<64x64xf32>
    %c0_7 = arith.constant 0 : index
    %c0_8 = arith.constant 0 : index
    %12 = vector.load %arg10[%c0_7, %c0_8] : memref<64x64xf32, #tpu.memory_space<vmem>>, vector<64x64xf32>
    %13 = arith.addf %11, %12 : vector<64x64xf32>
    %cst_9 = arith.constant 0.000000e+00 : f32
    %14 = vector.broadcast %cst_9 : f32 to vector<64x64xf32>
    %15 = arith.maximumf %13, %14 : vector<64x64xf32>
    %16 = arith.truncf %15 : vector<64x64xf32> to vector<64x64xbf16>
    %c0_10 = arith.constant 0 : index
    %c0_11 = arith.constant 0 : index
    %17 = vector.load %arg7[%c0_10, %c0_11] : memref<64x64xbf16, #tpu.memory_space<vmem>>, vector<64x64xbf16>
    %cst_12 = arith.constant dense<0.000000e+00> : vector<64x64xf32>
    %18 = tpu.matmul %16, %17, %cst_12 {dimension_numbers = #tpu.dot_dimension_numbers<[1], [0], [0], [1], [0, 0, 1, 1], [], []>} : vector<64x64xbf16>, vector<64x64xbf16>, vector<64x64xf32> -> vector<64x64xf32>
    %c0_13 = arith.constant 0 : index
    %c0_14 = arith.constant 0 : index
    %19 = vector.load %arg8[%c0_13, %c0_14] : memref<1x64xf32, #tpu.memory_space<vmem>>, vector<1x64xf32>
    %20 = vector.broadcast %19 : vector<1x64xf32> to vector<64x64xf32>
    %21 = arith.addf %18, %20 : vector<64x64xf32>
    %cst_15 = arith.constant 0.000000e+00 : f32
    %22 = vector.broadcast %cst_15 : f32 to vector<64x64xf32>
    %23 = arith.maximumf %21, %22 : vector<64x64xf32>
    %c0_i32_16 = arith.constant 0 : i32
    %24 = arith.cmpi eq, %arg1, %c0_i32_16 : i32
    %25 = arith.extui %24 : i1 to i32
    %c0_i32_17 = arith.constant 0 : i32
    %26 = arith.cmpi ne, %25, %c0_i32_17 : i32
    scf.if %26 {
      %c0_21 = arith.constant 0 : index
      %c0_22 = arith.constant 0 : index
      %33 = vector.load %arg11[%c0_21, %c0_22] : memref<64x64xf32, #tpu.memory_space<vmem>>, vector<64x64xf32>
      tpu.vector_store %arg11[%c0_21, %c0_22], %23 {strides = array<i32>} : memref<64x64xf32, #tpu.memory_space<vmem>>, vector<64x64xf32>,
    } else {
    }
    %c0_i32_18 = arith.constant 0 : i32
    %27 = arith.cmpi sgt, %arg1, %c0_i32_18 : i32
    %28 = arith.extui %27 : i1 to i32
    %c0_i32_19 = arith.constant 0 : i32
    %29 = arith.cmpi ne, %28, %c0_i32_19 : i32
    scf.if %29 {
      %c0_21 = arith.constant 0 : index
      %c0_22 = arith.constant 0 : index
      %33 = vector.load %arg11[%c0_21, %c0_22] : memref<64x64xf32, #tpu.memory_space<vmem>>, vector<64x64xf32>
      %34 = arith.maximumf %33, %23 : vector<64x64xf32>
      %c0_23 = arith.constant 0 : index
      %c0_24 = arith.constant 0 : index
      %35 = vector.load %arg11[%c0_23, %c0_24] : memref<64x64xf32, #tpu.memory_space<vmem>>, vector<64x64xf32>
      tpu.vector_store %arg11[%c0_23, %c0_24], %34 {strides = array<i32>} : memref<64x64xf32, #tpu.memory_space<vmem>>, vector<64x64xf32>,
    } else {
    }
    %c19_i32 = arith.constant 19 : i32
    %30 = arith.cmpi eq, %arg1, %c19_i32 : i32
    %31 = arith.extui %30 : i1 to i32
    %c0_i32_20 = arith.constant 0 : i32
    %32 = arith.cmpi ne, %31, %c0_i32_20 : i32
    scf.if %32 {
      %c0_21 = arith.constant 0 : index
      %c0_22 = arith.constant 0 : index
      %33 = vector.load %arg11[%c0_21, %c0_22] : memref<64x64xf32, #tpu.memory_space<vmem>>, vector<64x64xf32>
      %c0_23 = arith.constant 0 : index
      %c0_24 = arith.constant 0 : index
      %34 = vector.load %arg9[%c0_23, %c0_24] : memref<64x64xf32, #tpu.memory_space<vmem>>, vector<64x64xf32>
      tpu.vector_store %arg9[%c0_23, %c0_24], %33 {strides = array<i32>} : memref<64x64xf32, #tpu.memory_space<vmem>>, vector<64x64xf32>,
    } else {
    }
    return
  }
  func.func @transform_0(%arg0: i32, %arg1: i32) -> (i32, i32, i32) {
    %c0_i32 = arith.constant 0 : i32
    %c0_i32_0 = arith.constant 0 : i32
    return %arg1, %arg0, %c0_i32 : i32, i32, i32
  }
  func.func @transform_1(%arg0: i32, %arg1: i32) -> (i32, i32) {
    %c0_i32 = arith.constant 0 : i32
    %c0_i32_0 = arith.constant 0 : i32
    return %arg0, %c0_i32 : i32, i32
  }
  func.func @transform_2(%arg0: i32, %arg1: i32) -> (i32, i32) {
    %c0_i32 = arith.constant 0 : i32
    %c0_i32_0 = arith.constant 0 : i32
    %c0_i32_1 = arith.constant 0 : i32
    return %c0_i32, %c0_i32_0 : i32, i32
  }
  func.func @transform_3(%arg0: i32, %arg1: i32) -> (i32, i32) {
    %c0_i32 = arith.constant 0 : i32
    %c0_i32_0 = arith.constant 0 : i32
    %c0_i32_1 = arith.constant 0 : i32
    return %c0_i32, %c0_i32_0 : i32, i32
  }
  func.func @transform_4(%arg0: i32, %arg1: i32) -> (i32, i32) {
    %c0_i32 = arith.constant 0 : i32
    %c0_i32_0 = arith.constant 0 : i32
    %c0_i32_1 = arith.constant 0 : i32
    return %c0_i32, %c0_i32_0 : i32, i32
  }
  func.func @transform_5(%arg0: i32, %arg1: i32) -> (i32, i32) {
    %c0_i32 = arith.constant 0 : i32
    %c0_i32_0 = arith.constant 0 : i32
    %c0_i32_1 = arith.constant 0 : i32
    return %c0_i32, %c0_i32_0 : i32, i32
  }
  func.func @transform_6(%arg0: i32, %arg1: i32) -> (i32, i32) {
    %c0_i32 = arith.constant 0 : i32
    %c0_i32_0 = arith.constant 0 : i32
    %c0_i32_1 = arith.constant 0 : i32
    return %c0_i32, %c0_i32_0 : i32, i32
  }
  func.func @transform_7(%arg0: i32, %arg1: i32) -> (i32, i32) {
    %c0_i32 = arith.constant 0 : i32
    %c0_i32_0 = arith.constant 0 : i32
    return %arg0, %c0_i32 : i32, i32
  }
}

module attributes {stable_mosaic.version = 11 : i64} {
  func.func @_knn_score_kernel(%arg0: i32, %arg1: i32, %arg2: memref<1x32x64xbf16, #tpu.memory_space<vmem>>, %arg3: memref<1x64x64xbf16, #tpu.memory_space<vmem>>, %arg4: memref<1x1x64xf32, #tpu.memory_space<vmem>>, %arg5: memref<1x32x64xf32, #tpu.memory_space<vmem>>) attributes {dimension_semantics = [#tpu.dimension_semantics<parallel>, #tpu.dimension_semantics<parallel>], iteration_bounds = array<i64: 2, 2>, scalar_prefetch = 0 : i64, scratch_operands = 0 : i64, tpu.core_type = #tpu.core_type<tc>, window_params = [{transform_indices = @transform_0, window_bounds = array<i64: 1, 32, 64>}, {transform_indices = @transform_1, window_bounds = array<i64: 1, 64, 64>}, {transform_indices = @transform_2, window_bounds = array<i64: 1, 1, 64>}, {transform_indices = @transform_3, window_bounds = array<i64: 1, 32, 64>}]} {
    %c0 = arith.constant 0 : index
    %c0_0 = arith.constant 0 : index
    %c0_1 = arith.constant 0 : index
    %0 = vector.load %arg2[%c0, %c0_0, %c0_1] : memref<1x32x64xbf16, #tpu.memory_space<vmem>>, vector<1x32x64xbf16>
    %1 = vector.shape_cast %0 : vector<1x32x64xbf16> to vector<32x64xbf16>
    %c0_2 = arith.constant 0 : index
    %c0_3 = arith.constant 0 : index
    %c0_4 = arith.constant 0 : index
    %2 = vector.load %arg3[%c0_2, %c0_3, %c0_4] : memref<1x64x64xbf16, #tpu.memory_space<vmem>>, vector<1x64x64xbf16>
    %3 = vector.shape_cast %2 : vector<1x64x64xbf16> to vector<64x64xbf16>
    %cst = arith.constant dense<0.000000e+00> : vector<32x64xf32>
    %4 = tpu.matmul %1, %3, %cst {dimension_numbers = #tpu.dot_dimension_numbers<[1], [1], [0], [0], [0, 0, 1, 0], [], []>} : vector<32x64xbf16>, vector<64x64xbf16>, vector<32x64xf32> -> vector<32x64xf32>
    %cst_5 = arith.constant 2.000000e+00 : f32
    %5 = vector.broadcast %cst_5 : f32 to vector<32x64xf32>
    %6 = arith.mulf %5, %4 : vector<32x64xf32>
    %c0_6 = arith.constant 0 : index
    %c0_7 = arith.constant 0 : index
    %c0_8 = arith.constant 0 : index
    %7 = vector.load %arg4[%c0_6, %c0_7, %c0_8] : memref<1x1x64xf32, #tpu.memory_space<vmem>>, vector<1x1x64xf32>
    %8 = vector.shape_cast %7 : vector<1x1x64xf32> to vector<1x64xf32>
    %9 = vector.broadcast %8 : vector<1x64xf32> to vector<32x64xf32>
    %10 = arith.subf %6, %9 : vector<32x64xf32>
    %c0_9 = arith.constant 0 : index
    %c0_10 = arith.constant 0 : index
    %c0_11 = arith.constant 0 : index
    %11 = vector.load %arg5[%c0_9, %c0_10, %c0_11] : memref<1x32x64xf32, #tpu.memory_space<vmem>>, vector<1x32x64xf32>
    %12 = vector.shape_cast %11 : vector<1x32x64xf32> to vector<32x64xf32>
    %13 = vector.shape_cast %10 : vector<32x64xf32> to vector<1x32x64xf32>
    tpu.vector_store %arg5[%c0_9, %c0_10, %c0_11], %13 {strides = array<i32>} : memref<1x32x64xf32, #tpu.memory_space<vmem>>, vector<1x32x64xf32>,
    return
  }
  func.func @transform_0(%arg0: i32, %arg1: i32) -> (i32, i32, i32) {
    %c0_i32 = arith.constant 0 : i32
    %c0_i32_0 = arith.constant 0 : i32
    return %arg0, %arg1, %c0_i32 : i32, i32, i32
  }
  func.func @transform_1(%arg0: i32, %arg1: i32) -> (i32, i32, i32) {
    %c0_i32 = arith.constant 0 : i32
    %c0_i32_0 = arith.constant 0 : i32
    %c0_i32_1 = arith.constant 0 : i32
    return %arg0, %c0_i32, %c0_i32_0 : i32, i32, i32
  }
  func.func @transform_2(%arg0: i32, %arg1: i32) -> (i32, i32, i32) {
    %c0_i32 = arith.constant 0 : i32
    %c0_i32_0 = arith.constant 0 : i32
    %c0_i32_1 = arith.constant 0 : i32
    return %arg0, %c0_i32, %c0_i32_0 : i32, i32, i32
  }
  func.func @transform_3(%arg0: i32, %arg1: i32) -> (i32, i32, i32) {
    %c0_i32 = arith.constant 0 : i32
    %c0_i32_0 = arith.constant 0 : i32
    return %arg0, %arg1, %c0_i32 : i32, i32, i32
  }
}

module attributes {stable_mosaic.version = 11 : i64} {
  func.func @_edgeconv_kernel(%arg0: i32, %arg1: i32, %arg2: memref<1x64x64xbf16, #tpu.memory_space<vmem>>, %arg3: memref<64x64xf32, #tpu.memory_space<vmem>>, %arg4: memref<64x64xbf16, #tpu.memory_space<vmem>>, %arg5: memref<64x64xbf16, #tpu.memory_space<vmem>>, %arg6: memref<1x64xf32, #tpu.memory_space<vmem>>, %arg7: memref<64x64xf32, #tpu.memory_space<vmem>>, %arg8: memref<64x64xf32, #tpu.memory_space<vmem>>, %arg9: memref<64x64xf32, #tpu.memory_space<vmem>>) attributes {dimension_semantics = [#tpu.dimension_semantics<parallel>, #tpu.dimension_semantics<arbitrary>], iteration_bounds = array<i64: 2, 12>, scalar_prefetch = 0 : i64, scratch_operands = 2 : i64, tpu.core_type = #tpu.core_type<tc>, window_params = [{transform_indices = @transform_0, window_bounds = array<i64: 1, 64, 64>}, {transform_indices = @transform_1, window_bounds = array<i64: 64, 64>}, {pipeline_mode = #tpu.pipeline_mode<synchronous>, transform_indices = @transform_2, window_bounds = array<i64: 64, 64>}, {pipeline_mode = #tpu.pipeline_mode<synchronous>, transform_indices = @transform_3, window_bounds = array<i64: 64, 64>}, {pipeline_mode = #tpu.pipeline_mode<synchronous>, transform_indices = @transform_4, window_bounds = array<i64: 1, 64>}, {transform_indices = @transform_5, window_bounds = array<i64: 64, 64>}]} {
    %c0 = arith.constant 0 : index
    %c0_0 = arith.constant 0 : index
    %0 = vector.load %arg3[%c0, %c0_0] : memref<64x64xf32, #tpu.memory_space<vmem>>, vector<64x64xf32>
    %1 = arith.truncf %0 : vector<64x64xf32> to vector<64x64xbf16>
    %c0_i32 = arith.constant 0 : i32
    %2 = arith.cmpi eq, %arg1, %c0_i32 : i32
    %3 = arith.extui %2 : i1 to i32
    %c0_i32_1 = arith.constant 0 : i32
    %4 = arith.cmpi ne, %3, %c0_i32_1 : i32
    scf.if %4 {
      %c0_15 = arith.constant 0 : index
      %c0_16 = arith.constant 0 : index
      %25 = vector.load %arg4[%c0_15, %c0_16] : memref<64x64xbf16, #tpu.memory_space<vmem>>, vector<64x64xbf16>
      %cst_17 = arith.constant dense<0.000000e+00> : vector<64x64xf32>
      %26 = tpu.matmul %1, %25, %cst_17 {dimension_numbers = #tpu.dot_dimension_numbers<[1], [0], [0], [1], [0, 0, 1, 1], [], []>} : vector<64x64xbf16>, vector<64x64xbf16>, vector<64x64xf32> -> vector<64x64xf32>
      %c0_18 = arith.constant 0 : index
      %c0_19 = arith.constant 0 : index
      %27 = vector.load %arg6[%c0_18, %c0_19] : memref<1x64xf32, #tpu.memory_space<vmem>>, vector<1x64xf32>
      %28 = vector.broadcast %27 : vector<1x64xf32> to vector<64x64xf32>
      %29 = arith.addf %26, %28 : vector<64x64xf32>
      %c0_20 = arith.constant 0 : index
      %c0_21 = arith.constant 0 : index
      %30 = vector.load %arg8[%c0_20, %c0_21] : memref<64x64xf32, #tpu.memory_space<vmem>>, vector<64x64xf32>
      tpu.vector_store %arg8[%c0_20, %c0_21], %29 {strides = array<i32>} : memref<64x64xf32, #tpu.memory_space<vmem>>, vector<64x64xf32>,
    } else {
    }
    %c0_2 = arith.constant 0 : index
    %c0_3 = arith.constant 0 : index
    %c0_4 = arith.constant 0 : index
    %5 = vector.load %arg2[%c0_2, %c0_3, %c0_4] : memref<1x64x64xbf16, #tpu.memory_space<vmem>>, vector<1x64x64xbf16>
    %6 = vector.shape_cast %5 : vector<1x64x64xbf16> to vector<64x64xbf16>
    %7 = arith.extf %6 : vector<64x64xbf16> to vector<64x64xf32>
    %8 = arith.subf %7, %0 : vector<64x64xf32>
    %9 = arith.truncf %8 : vector<64x64xf32> to vector<64x64xbf16>
    %c0_5 = arith.constant 0 : index
    %c0_6 = arith.constant 0 : index
    %10 = vector.load %arg5[%c0_5, %c0_6] : memref<64x64xbf16, #tpu.memory_space<vmem>>, vector<64x64xbf16>
    %cst = arith.constant dense<0.000000e+00> : vector<64x64xf32>
    %11 = tpu.matmul %9, %10, %cst {dimension_numbers = #tpu.dot_dimension_numbers<[1], [0], [0], [1], [0, 0, 1, 1], [], []>} : vector<64x64xbf16>, vector<64x64xbf16>, vector<64x64xf32> -> vector<64x64xf32>
    %c0_7 = arith.constant 0 : index
    %c0_8 = arith.constant 0 : index
    %12 = vector.load %arg8[%c0_7, %c0_8] : memref<64x64xf32, #tpu.memory_space<vmem>>, vector<64x64xf32>
    %13 = arith.addf %11, %12 : vector<64x64xf32>
    %cst_9 = arith.constant 0.000000e+00 : f32
    %14 = vector.broadcast %cst_9 : f32 to vector<64x64xf32>
    %15 = arith.maximumf %13, %14 : vector<64x64xf32>
    %c0_i32_10 = arith.constant 0 : i32
    %16 = arith.cmpi eq, %arg1, %c0_i32_10 : i32
    %17 = arith.extui %16 : i1 to i32
    %c0_i32_11 = arith.constant 0 : i32
    %18 = arith.cmpi ne, %17, %c0_i32_11 : i32
    scf.if %18 {
      %c0_15 = arith.constant 0 : index
      %c0_16 = arith.constant 0 : index
      %25 = vector.load %arg9[%c0_15, %c0_16] : memref<64x64xf32, #tpu.memory_space<vmem>>, vector<64x64xf32>
      tpu.vector_store %arg9[%c0_15, %c0_16], %15 {strides = array<i32>} : memref<64x64xf32, #tpu.memory_space<vmem>>, vector<64x64xf32>,
    } else {
    }
    %c0_i32_12 = arith.constant 0 : i32
    %19 = arith.cmpi sgt, %arg1, %c0_i32_12 : i32
    %20 = arith.extui %19 : i1 to i32
    %c0_i32_13 = arith.constant 0 : i32
    %21 = arith.cmpi ne, %20, %c0_i32_13 : i32
    scf.if %21 {
      %c0_15 = arith.constant 0 : index
      %c0_16 = arith.constant 0 : index
      %25 = vector.load %arg9[%c0_15, %c0_16] : memref<64x64xf32, #tpu.memory_space<vmem>>, vector<64x64xf32>
      %26 = arith.maximumf %25, %15 : vector<64x64xf32>
      %c0_17 = arith.constant 0 : index
      %c0_18 = arith.constant 0 : index
      %27 = vector.load %arg9[%c0_17, %c0_18] : memref<64x64xf32, #tpu.memory_space<vmem>>, vector<64x64xf32>
      tpu.vector_store %arg9[%c0_17, %c0_18], %26 {strides = array<i32>} : memref<64x64xf32, #tpu.memory_space<vmem>>, vector<64x64xf32>,
    } else {
    }
    %c11_i32 = arith.constant 11 : i32
    %22 = arith.cmpi eq, %arg1, %c11_i32 : i32
    %23 = arith.extui %22 : i1 to i32
    %c0_i32_14 = arith.constant 0 : i32
    %24 = arith.cmpi ne, %23, %c0_i32_14 : i32
    scf.if %24 {
      %c0_15 = arith.constant 0 : index
      %c0_16 = arith.constant 0 : index
      %25 = vector.load %arg9[%c0_15, %c0_16] : memref<64x64xf32, #tpu.memory_space<vmem>>, vector<64x64xf32>
      %26 = arith.addf %25, %0 : vector<64x64xf32>
      %c0_17 = arith.constant 0 : index
      %c0_18 = arith.constant 0 : index
      %27 = vector.load %arg7[%c0_17, %c0_18] : memref<64x64xf32, #tpu.memory_space<vmem>>, vector<64x64xf32>
      tpu.vector_store %arg7[%c0_17, %c0_18], %26 {strides = array<i32>} : memref<64x64xf32, #tpu.memory_space<vmem>>, vector<64x64xf32>,
    } else {
    }
    return
  }
  func.func @transform_0(%arg0: i32, %arg1: i32) -> (i32, i32, i32) {
    %c0_i32 = arith.constant 0 : i32
    %c0_i32_0 = arith.constant 0 : i32
    return %arg1, %arg0, %c0_i32 : i32, i32, i32
  }
  func.func @transform_1(%arg0: i32, %arg1: i32) -> (i32, i32) {
    %c0_i32 = arith.constant 0 : i32
    %c0_i32_0 = arith.constant 0 : i32
    return %arg0, %c0_i32 : i32, i32
  }
  func.func @transform_2(%arg0: i32, %arg1: i32) -> (i32, i32) {
    %c0_i32 = arith.constant 0 : i32
    %c0_i32_0 = arith.constant 0 : i32
    %c0_i32_1 = arith.constant 0 : i32
    return %c0_i32, %c0_i32_0 : i32, i32
  }
  func.func @transform_3(%arg0: i32, %arg1: i32) -> (i32, i32) {
    %c0_i32 = arith.constant 0 : i32
    %c0_i32_0 = arith.constant 0 : i32
    %c0_i32_1 = arith.constant 0 : i32
    return %c0_i32, %c0_i32_0 : i32, i32
  }
  func.func @transform_4(%arg0: i32, %arg1: i32) -> (i32, i32) {
    %c0_i32 = arith.constant 0 : i32
    %c0_i32_0 = arith.constant 0 : i32
    %c0_i32_1 = arith.constant 0 : i32
    return %c0_i32, %c0_i32_0 : i32, i32
  }
  func.func @transform_5(%arg0: i32, %arg1: i32) -> (i32, i32) {
    %c0_i32 = arith.constant 0 : i32
    %c0_i32_0 = arith.constant 0 : i32
    return %arg0, %c0_i32 : i32, i32
  }
}

module attributes {stable_mosaic.version = 11 : i64} {
  func.func @_edgeconv_kernel(%arg0: i32, %arg1: i32, %arg2: memref<1x64x64xbf16, #tpu.memory_space<vmem>>, %arg3: memref<64x64xf32, #tpu.memory_space<vmem>>, %arg4: memref<64x32xbf16, #tpu.memory_space<vmem>>, %arg5: memref<64x32xbf16, #tpu.memory_space<vmem>>, %arg6: memref<1x32xf32, #tpu.memory_space<vmem>>, %arg7: memref<64x32xbf16, #tpu.memory_space<vmem>>, %arg8: memref<64x32xf32, #tpu.memory_space<vmem>>, %arg9: memref<64x32xf32, #tpu.memory_space<vmem>>, %arg10: memref<64x32xf32, #tpu.memory_space<vmem>>) attributes {dimension_semantics = [#tpu.dimension_semantics<parallel>, #tpu.dimension_semantics<arbitrary>], iteration_bounds = array<i64: 2, 12>, scalar_prefetch = 0 : i64, scratch_operands = 2 : i64, tpu.core_type = #tpu.core_type<tc>, window_params = [{transform_indices = @transform_0, window_bounds = array<i64: 1, 64, 64>}, {transform_indices = @transform_1, window_bounds = array<i64: 64, 64>}, {pipeline_mode = #tpu.pipeline_mode<synchronous>, transform_indices = @transform_2, window_bounds = array<i64: 64, 32>}, {pipeline_mode = #tpu.pipeline_mode<synchronous>, transform_indices = @transform_3, window_bounds = array<i64: 64, 32>}, {pipeline_mode = #tpu.pipeline_mode<synchronous>, transform_indices = @transform_4, window_bounds = array<i64: 1, 32>}, {pipeline_mode = #tpu.pipeline_mode<synchronous>, transform_indices = @transform_5, window_bounds = array<i64: 64, 32>}, {transform_indices = @transform_6, window_bounds = array<i64: 64, 32>}]} {
    %c0 = arith.constant 0 : index
    %c0_0 = arith.constant 0 : index
    %0 = vector.load %arg3[%c0, %c0_0] : memref<64x64xf32, #tpu.memory_space<vmem>>, vector<64x64xf32>
    %1 = arith.truncf %0 : vector<64x64xf32> to vector<64x64xbf16>
    %c0_i32 = arith.constant 0 : i32
    %2 = arith.cmpi eq, %arg1, %c0_i32 : i32
    %3 = arith.extui %2 : i1 to i32
    %c0_i32_1 = arith.constant 0 : i32
    %4 = arith.cmpi ne, %3, %c0_i32_1 : i32
    scf.if %4 {
      %c0_15 = arith.constant 0 : index
      %c0_16 = arith.constant 0 : index
      %25 = vector.load %arg4[%c0_15, %c0_16] : memref<64x32xbf16, #tpu.memory_space<vmem>>, vector<64x32xbf16>
      %cst_17 = arith.constant dense<0.000000e+00> : vector<64x32xf32>
      %26 = tpu.matmul %1, %25, %cst_17 {dimension_numbers = #tpu.dot_dimension_numbers<[1], [0], [0], [1], [0, 0, 1, 1], [], []>} : vector<64x64xbf16>, vector<64x32xbf16>, vector<64x32xf32> -> vector<64x32xf32>
      %c0_18 = arith.constant 0 : index
      %c0_19 = arith.constant 0 : index
      %27 = vector.load %arg6[%c0_18, %c0_19] : memref<1x32xf32, #tpu.memory_space<vmem>>, vector<1x32xf32>
      %28 = vector.broadcast %27 : vector<1x32xf32> to vector<64x32xf32>
      %29 = arith.addf %26, %28 : vector<64x32xf32>
      %c0_20 = arith.constant 0 : index
      %c0_21 = arith.constant 0 : index
      %30 = vector.load %arg9[%c0_20, %c0_21] : memref<64x32xf32, #tpu.memory_space<vmem>>, vector<64x32xf32>
      tpu.vector_store %arg9[%c0_20, %c0_21], %29 {strides = array<i32>} : memref<64x32xf32, #tpu.memory_space<vmem>>, vector<64x32xf32>,
    } else {
    }
    %c0_2 = arith.constant 0 : index
    %c0_3 = arith.constant 0 : index
    %c0_4 = arith.constant 0 : index
    %5 = vector.load %arg2[%c0_2, %c0_3, %c0_4] : memref<1x64x64xbf16, #tpu.memory_space<vmem>>, vector<1x64x64xbf16>
    %6 = vector.shape_cast %5 : vector<1x64x64xbf16> to vector<64x64xbf16>
    %7 = arith.extf %6 : vector<64x64xbf16> to vector<64x64xf32>
    %8 = arith.subf %7, %0 : vector<64x64xf32>
    %9 = arith.truncf %8 : vector<64x64xf32> to vector<64x64xbf16>
    %c0_5 = arith.constant 0 : index
    %c0_6 = arith.constant 0 : index
    %10 = vector.load %arg5[%c0_5, %c0_6] : memref<64x32xbf16, #tpu.memory_space<vmem>>, vector<64x32xbf16>
    %cst = arith.constant dense<0.000000e+00> : vector<64x32xf32>
    %11 = tpu.matmul %9, %10, %cst {dimension_numbers = #tpu.dot_dimension_numbers<[1], [0], [0], [1], [0, 0, 1, 1], [], []>} : vector<64x64xbf16>, vector<64x32xbf16>, vector<64x32xf32> -> vector<64x32xf32>
    %c0_7 = arith.constant 0 : index
    %c0_8 = arith.constant 0 : index
    %12 = vector.load %arg9[%c0_7, %c0_8] : memref<64x32xf32, #tpu.memory_space<vmem>>, vector<64x32xf32>
    %13 = arith.addf %11, %12 : vector<64x32xf32>
    %cst_9 = arith.constant 0.000000e+00 : f32
    %14 = vector.broadcast %cst_9 : f32 to vector<64x32xf32>
    %15 = arith.maximumf %13, %14 : vector<64x32xf32>
    %c0_i32_10 = arith.constant 0 : i32
    %16 = arith.cmpi eq, %arg1, %c0_i32_10 : i32
    %17 = arith.extui %16 : i1 to i32
    %c0_i32_11 = arith.constant 0 : i32
    %18 = arith.cmpi ne, %17, %c0_i32_11 : i32
    scf.if %18 {
      %c0_15 = arith.constant 0 : index
      %c0_16 = arith.constant 0 : index
      %25 = vector.load %arg10[%c0_15, %c0_16] : memref<64x32xf32, #tpu.memory_space<vmem>>, vector<64x32xf32>
      tpu.vector_store %arg10[%c0_15, %c0_16], %15 {strides = array<i32>} : memref<64x32xf32, #tpu.memory_space<vmem>>, vector<64x32xf32>,
    } else {
    }
    %c0_i32_12 = arith.constant 0 : i32
    %19 = arith.cmpi sgt, %arg1, %c0_i32_12 : i32
    %20 = arith.extui %19 : i1 to i32
    %c0_i32_13 = arith.constant 0 : i32
    %21 = arith.cmpi ne, %20, %c0_i32_13 : i32
    scf.if %21 {
      %c0_15 = arith.constant 0 : index
      %c0_16 = arith.constant 0 : index
      %25 = vector.load %arg10[%c0_15, %c0_16] : memref<64x32xf32, #tpu.memory_space<vmem>>, vector<64x32xf32>
      %26 = arith.maximumf %25, %15 : vector<64x32xf32>
      %c0_17 = arith.constant 0 : index
      %c0_18 = arith.constant 0 : index
      %27 = vector.load %arg10[%c0_17, %c0_18] : memref<64x32xf32, #tpu.memory_space<vmem>>, vector<64x32xf32>
      tpu.vector_store %arg10[%c0_17, %c0_18], %26 {strides = array<i32>} : memref<64x32xf32, #tpu.memory_space<vmem>>, vector<64x32xf32>,
    } else {
    }
    %c11_i32 = arith.constant 11 : i32
    %22 = arith.cmpi eq, %arg1, %c11_i32 : i32
    %23 = arith.extui %22 : i1 to i32
    %c0_i32_14 = arith.constant 0 : i32
    %24 = arith.cmpi ne, %23, %c0_i32_14 : i32
    scf.if %24 {
      %c0_15 = arith.constant 0 : index
      %c0_16 = arith.constant 0 : index
      %25 = vector.load %arg10[%c0_15, %c0_16] : memref<64x32xf32, #tpu.memory_space<vmem>>, vector<64x32xf32>
      %c0_17 = arith.constant 0 : index
      %c0_18 = arith.constant 0 : index
      %26 = vector.load %arg7[%c0_17, %c0_18] : memref<64x32xbf16, #tpu.memory_space<vmem>>, vector<64x32xbf16>
      %cst_19 = arith.constant dense<0.000000e+00> : vector<64x32xf32>
      %27 = tpu.matmul %1, %26, %cst_19 {dimension_numbers = #tpu.dot_dimension_numbers<[1], [0], [0], [1], [0, 0, 1, 1], [], []>} : vector<64x64xbf16>, vector<64x32xbf16>, vector<64x32xf32> -> vector<64x32xf32>
      %28 = arith.addf %25, %27 : vector<64x32xf32>
      %c0_20 = arith.constant 0 : index
      %c0_21 = arith.constant 0 : index
      %29 = vector.load %arg8[%c0_20, %c0_21] : memref<64x32xf32, #tpu.memory_space<vmem>>, vector<64x32xf32>
      tpu.vector_store %arg8[%c0_20, %c0_21], %28 {strides = array<i32>} : memref<64x32xf32, #tpu.memory_space<vmem>>, vector<64x32xf32>,
    } else {
    }
    return
  }
  func.func @transform_0(%arg0: i32, %arg1: i32) -> (i32, i32, i32) {
    %c0_i32 = arith.constant 0 : i32
    %c0_i32_0 = arith.constant 0 : i32
    return %arg1, %arg0, %c0_i32 : i32, i32, i32
  }
  func.func @transform_1(%arg0: i32, %arg1: i32) -> (i32, i32) {
    %c0_i32 = arith.constant 0 : i32
    %c0_i32_0 = arith.constant 0 : i32
    return %arg0, %c0_i32 : i32, i32
  }
  func.func @transform_2(%arg0: i32, %arg1: i32) -> (i32, i32) {
    %c0_i32 = arith.constant 0 : i32
    %c0_i32_0 = arith.constant 0 : i32
    %c0_i32_1 = arith.constant 0 : i32
    return %c0_i32, %c0_i32_0 : i32, i32
  }
  func.func @transform_3(%arg0: i32, %arg1: i32) -> (i32, i32) {
    %c0_i32 = arith.constant 0 : i32
    %c0_i32_0 = arith.constant 0 : i32
    %c0_i32_1 = arith.constant 0 : i32
    return %c0_i32, %c0_i32_0 : i32, i32
  }
  func.func @transform_4(%arg0: i32, %arg1: i32) -> (i32, i32) {
    %c0_i32 = arith.constant 0 : i32
    %c0_i32_0 = arith.constant 0 : i32
    %c0_i32_1 = arith.constant 0 : i32
    return %c0_i32, %c0_i32_0 : i32, i32
  }
  func.func @transform_5(%arg0: i32, %arg1: i32) -> (i32, i32) {
    %c0_i32 = arith.constant 0 : i32
    %c0_i32_0 = arith.constant 0 : i32
    %c0_i32_1 = arith.constant 0 : i32
    return %c0_i32, %c0_i32_0 : i32, i32
  }
  func.func @transform_6(%arg0: i32, %arg1: i32) -> (i32, i32) {
    %c0_i32 = arith.constant 0 : i32
    %c0_i32_0 = arith.constant 0 : i32
    return %arg0, %c0_i32 : i32, i32
  }
}

</mosaic_0001>

<llo_original>
// kernel: gcn_feature_extractor_forward.6
$region0: #{gcn_feature_extractor_forward.6}
  #allocation0 [shape = 'u32[]', space=smem, size = 0x4, offset = 0x4, fixed_abs, tag = 'smem constant byte address 0x4 - core index']
  #allocation1 [shape = 'u32[144,128]{1,0:T(1,128)}', space=vmem, size = 0x12000, scoped, tag = 'internal scratch']
  %s0 = inlined_call_operand.vmem [shape: bf16[2,64,16], index: 0, kind: input, shape index: {}, may-alias: {0,1}]
  %s1 = inlined_call_operand.vmem [shape: bf16[2,64,16], index: 1, kind: input, shape index: {}, may-alias: {0,1}]
  %s2 = inlined_call_operand.vmem [shape: f32[2,1,64], index: 2, kind: input, shape index: {}]
  %s3 = inlined_call_operand.vmem [shape: f32[2,64,64], index: 3, kind: output, shape index: {}]
  %s4 = sld [smem:[#allocation0]]
  $region45: #{gcn_feature_extractor_forward.6} parent=0
    _
  %s6 = ssub.s32 1, %s4
  %s7 = scalar_select 0, %s6, %s4
  loop: start=0, step=1, limit=6
  $region2: #{gcn_feature_extractor_forward.6} parent=0 // loop_pre_header
    _
  $region3: #{gcn_feature_extractor_forward.6} parent=0 // loop_header
    %s9 = sphi 0, %s13
    %p10 = scmp.ge.s32.totalorder %s9, 6
    %s16 = sphi 0, %s28
    %s17 = sphi 0, %s24
    %s18 = sphi 0, %s16
    %s19 = sphi 0, %s17
    %s20 = sphi 0, %s18
    %s21 = sphi 0, %s19
    %s33 = sphi 0, %s35
    %s36 = sphi 0, %s33
    %s37 = sphi 0, %s36
    %s53 = sphi 0, %s37
    %s59 = sphi 0, %s61
    %s62 = sphi 0, %s59
    %s63 = sphi 0, %s62
    %s79 = sphi 0, %s63
    %s85 = sphi 0, %s87
    %s88 = sphi 0, %s85
    %s89 = sphi 0, %s88
    %s105 = sphi 0, %s89
    %s113 = sphi 0, %s115
    %s116 = sphi 0, %s113
    %s117 = sphi 0, %s116
    %s133 = sphi 0, %s117
  $region4: #{gcn_feature_extractor_forward.6} parent=0 // loop_header_branch
    %12 = sbr.rel (%p10) target = $region8
  $region5: #{gcn_feature_extractor_forward.6} parent=0 // loop_body
    %s14 = ssub.s32 %s9, 1
    %s15 = ssub.s32 %s9, 2
    %s22 = sadd.s32 1, %s17
    %p23 = scmp.ge.s32.totalorder %s22, 2
    %s24 = scalar_select %p23, 0, %s22
    %s25 = sadd.s32 1, %s16
    %s26 = scalar_select %p23, %s25, %s16
    %p27 = scmp.ge.s32.totalorder %s26, 2
    %s28 = scalar_select %p27, 0, %s26
    %s29 = ssub.s32 %s16, %s28
    %s30 = ssub.s32 %s17, %s24
    %s31 = sor.u32 %s29, %s30
    %p32 = scmp.eq.s32.totalorder %s31, 0
    %s34 = sadd.s32 %s33, 1
    %s35 = scalar_select %p32, %s33, %s34
    %p38 = pneg %p32
    %p39 = scmp.eq.s32.totalorder %s9, 3
    %p40 = por %p38, %p39
    %p41 = scmp.ne.s32.totalorder %s33, %s36
    %p42 = scmp.eq.s32.totalorder %s9, 0
    %p43 = por %p41, %p42
    %p44 = scmp.ne.s32.totalorder %s33, %s36
    %p45 = scmp.eq.s32.totalorder %s14, 3
    %p46 = por %p44, %p45
    %p47 = scmp.ne.s32.totalorder %s36, %s37
    %p48 = scmp.eq.s32.totalorder %s14, 0
    %p49 = por %p47, %p48
    %p50 = scmp.ne.s32.totalorder %s36, %s37
    %p51 = scmp.eq.s32.totalorder %s15, 3
    %p52 = por %p50, %p51
    %p54 = scmp.ne.s32.totalorder %s37, %s53
    %p55 = scmp.eq.s32.totalorder %s15, 0
    %p56 = por %p54, %p55
    %s57 = ssub.s32 %s16, %s28
    %p58 = scmp.eq.s32.totalorder %s57, 0
    %s60 = sadd.s32 %s59, 1
    %s61 = scalar_select %p58, %s59, %s60
    %p64 = pneg %p58
    %p65 = scmp.eq.s32.totalorder %s9, 3
    %p66 = por %p64, %p65
    %p67 = scmp.ne.s32.totalorder %s59, %s62
    %p68 = scmp.eq.s32.totalorder %s9, 0
    %p69 = por %p67, %p68
    %p70 = scmp.ne.s32.totalorder %s59, %s62
    %p71 = scmp.eq.s32.totalorder %s14, 3
    %p72 = por %p70, %p71
    %p73 = scmp.ne.s32.totalorder %s62, %s63
    %p74 = scmp.eq.s32.totalorder %s14, 0
    %p75 = por %p73, %p74
    %p76 = scmp.ne.s32.totalorder %s62, %s63
    %p77 = scmp.eq.s32.totalorder %s15, 3
    %p78 = por %p76, %p77
    %p80 = scmp.ne.s32.totalorder %s63, %s79
    %p81 = scmp.eq.s32.totalorder %s15, 0
    %p82 = por %p80, %p81
    %s83 = ssub.s32 %s16, %s28
    %p84 = scmp.eq.s32.totalorder %s83, 0
    %s86 = sadd.s32 %s85, 1
    %s87 = scalar_select %p84, %s85, %s86
    %p90 = pneg %p84
    %p91 = scmp.eq.s32.totalorder %s9, 3
    %p92 = por %p90, %p91
    %p93 = scmp.ne.s32.totalorder %s85, %s88
    %p94 = scmp.eq.s32.totalorder %s9, 0
    %p95 = por %p93, %p94
    %p96 = scmp.ne.s32.totalorder %s85, %s88
    %p97 = scmp.eq.s32.totalorder %s14, 3
    %p98 = por %p96, %p97
    %p99 = scmp.ne.s32.totalorder %s88, %s89
    %p100 = scmp.eq.s32.totalorder %s14, 0
    %p101 = por %p99, %p100
    %p102 = scmp.ne.s32.totalorder %s88, %s89
    %p103 = scmp.eq.s32.totalorder %s15, 3
    %p104 = por %p102, %p103
    %p106 = scmp.ne.s32.totalorder %s89, %s105
    %p107 = scmp.eq.s32.totalorder %s15, 0
    %p108 = por %p106, %p107
    %s109 = ssub.s32 %s16, %s28
    %s110 = ssub.s32 %s17, %s24
    %s111 = sor.u32 %s109, %s110
    %p112 = scmp.eq.s32.totalorder %s111, 0
    %s114 = sadd.s32 %s113, 1
    %s115 = scalar_select %p112, %s113, %s114
    %p118 = pneg %p112
    %p119 = scmp.eq.s32.totalorder %s9, 3
    %p120 = por %p118, %p119
    %p121 = scmp.ne.s32.totalorder %s113, %s116
    %p122 = scmp.eq.s32.totalorder %s9, 0
    %p123 = por %p121, %p122
    %p124 = scmp.ne.s32.totalorder %s113, %s116
    %p125 = scmp.eq.s32.totalorder %s14, 3
    %p126 = por %p124, %p125
    %p127 = scmp.ne.s32.totalorder %s116, %s117
    %p128 = scmp.eq.s32.totalorder %s14, 0
    %p129 = por %p127, %p128
    %p130 = scmp.ne.s32.totalorder %s116, %s117
    %p131 = scmp.eq.s32.totalorder %s15, 3
    %p132 = por %p130, %p131
    %p134 = scmp.ne.s32.totalorder %s117, %s133
    %p135 = scmp.eq.s32.totalorder %s15, 0
    %p136 = por %p134, %p135
    %p137 = scmp.le.s32.totalorder 1, %s9
    %p138 = scmp.lt.s32.totalorder %s9, 5
    %p139 = pnand %p137, %p138
    %p140 = pneg %p139
    // Predicated region
    $region9: #{gcn_feature_extractor_forward.6} parent=5 // pred_check
      _
    $region10: #{gcn_feature_extractor_forward.6} parent=5 // pred_check_branch
      %142 = sbr.rel (%p139) target = $region12
    $region11: #{gcn_feature_extractor_forward.6} parent=5 // pred_region
      %s143 = ssub.s32 %s9, 1
    $region12: #{gcn_feature_extractor_forward.6} parent=5 // pred_fallthru
      _
    %p144 = scmp.lt.s32.totalorder %s9, 4
    // Predicated region
    $region13: #{gcn_feature_extractor_forward.6} parent=5 // pred_check
      %p145 = pneg %p144
    $region14: #{gcn_feature_extractor_forward.6} parent=5 // pred_check_branch
      %147 = sbr.rel (%p145) target = $region16
    $region15: #{gcn_feature_extractor_forward.6} parent=5 // pred_region
      // Predicated region
      $region17: #{gcn_feature_extractor_forward.6} parent=15 // pred_check
        %p148 = pneg %p43
      $region18: #{gcn_feature_extractor_forward.6} parent=15 // pred_check_branch
        %150 = sbr.rel (%p148) target = $region20
      $region19: #{gcn_feature_extractor_forward.6} parent=15 // pred_region
        %s151 = smul.u32 4, %s17
        %p152 = scmp.lt.s32.totalorder %s16, 1
        %s153 = scalar_select %p152, %s16, 1
        %p154 = scmp.lt.s32.totalorder %s151, 7
        %s155 = scalar_select %p154, %s151, 7
        %s156 = smul.addr %s153, 8
        %s157 = sadd.s32 %s155, %s156
        %s158 = smul.addr %s157, 4
        %s159 = scalar_lea.vmem %s0, %s158
        %s160 = smul.u32 4, %s17
      $region20: #{gcn_feature_extractor_forward.6} parent=15 // pred_fallthru
        _
      // Predicated region
      $region21: #{gcn_feature_extractor_forward.6} parent=15 // pred_check
        %p161 = pneg %p69
      $region22: #{gcn_feature_extractor_forward.6} parent=15 // pred_check_branch
        %163 = sbr.rel (%p161) target = $region24
      $region23: #{gcn_feature_extractor_forward.6} parent=15 // pred_region
        %p164 = scmp.lt.s32.totalorder %s16, 1
        %s165 = scalar_select %p164, %s16, 1
        %s166 = smul.addr %s165, 8
        %s167 = smul.addr %s166, 4
        %s168 = scalar_lea.vmem %s1, %s167
      $region24: #{gcn_feature_extractor_forward.6} parent=15 // pred_fallthru
        _
      // Predicated region
      $region25: #{gcn_feature_extractor_forward.6} parent=15 // pred_check
        %p169 = pneg %p95
      $region26: #{gcn_feature_extractor_forward.6} parent=15 // pred_check_branch
        %171 = sbr.rel (%p169) target = $region28
      $region27: #{gcn_feature_extractor_forward.6} parent=15 // pred_region
        %p172 = scmp.lt.s32.totalorder %s16, 1
        %s173 = scalar_select %p172, %s16, 1
        %s174 = scalar_lea.vmem %s2, %s173
      $region28: #{gcn_feature_extractor_forward.6} parent=15 // pred_fallthru
        _
    $region16: #{gcn_feature_extractor_forward.6} parent=5 // pred_fallthru
      _
    %p175 = scmp.le.s32.totalorder 1, %s9
    %p176 = scmp.lt.s32.totalorder %s9, 5
    %p177 = pnand %p175, %p176
    %p178 = pneg %p177
    // Predicated region
    $region29: #{gcn_feature_extractor_forward.6} parent=5 // pred_check
      _
    $region30: #{gcn_feature_extractor_forward.6} parent=5 // pred_check_branch
      %180 = sbr.rel (%p177) target = $region32
    $region31: #{gcn_feature_extractor_forward.6} parent=5 // pred_region
      %s181 = ssub.s32 %s9, 1
      %s182 = smul.u32 4, %s19
      %p183 = scmp.lt.s32.totalorder %s18, 1
      %s184 = scalar_select %p183, %s18, 1
      %p185 = scmp.lt.s32.totalorder %s182, 7
      %s186 = scalar_select %p185, %s182, 7
      %s187 = smul.addr %s184, 8
      %s188 = sadd.s32 %s186, %s187
      %s189 = smul.addr %s188, 4
      %s190 = scalar_lea.vmem %s0, %s189
      %p191 = pneg %p49
      %p192 = pneg %p46
      %p193 = scmp.lt.s32.totalorder %s18, 1
      %s194 = scalar_select %p193, %s18, 1
      %s195 = smul.addr %s194, 8
      %s196 = smul.addr %s195, 4
      %s197 = scalar_lea.vmem %s1, %s196
      %p198 = pneg %p75
      %p199 = pneg %p72
      %p200 = scmp.lt.s32.totalorder %s18, 1
      %s201 = scalar_select %p200, %s18, 1
      %s202 = scalar_lea.vmem %s2, %s201
      %p203 = pneg %p101
      %p204 = pneg %p98
      %p205 = pneg %p129
      %p206 = pneg %p126
      %s207 = smul.u32 4, %s19
      %p208 = scmp.lt.s32.totalorder %s18, 1
      %s209 = scalar_select %p208, %s18, 1
      %p210 = scmp.lt.s32.totalorder %s207, 7
      %s211 = scalar_select %p210, %s207, 7
      %s212 = smul.addr %s209, 8
      %s213 = sadd.s32 %s211, %s212
      %s214 = smul.addr %s213, 8
      %s215 = scalar_lea.vmem %s3, %s214
      %s216 = smul.u32 4, %s19
      %p217 = scmp.lt.s32.totalorder %s18, 1
      %s218 = scalar_select %p217, %s18, 1
      %p219 = scmp.lt.s32.totalorder %s216, 7
      %s220 = scalar_select %p219, %s216, 7
      %s221 = smul.addr %s218, 8
      %s222 = sadd.s32 %s220, %s221
      %s223 = smul.addr %s222, 4
      %s224 = scalar_lea.vmem %s0, %s223
      %s225 = smul.u32 4, %s19
      %p226 = scmp.lt.s32.totalorder %s18, 1
      %s227 = scalar_select %p226, %s18, 1
      %s228 = smul.addr %s227, 8
      %s229 = smul.addr %s228, 4
      %s230 = scalar_lea.vmem %s1, %s229
      %p231 = scmp.lt.s32.totalorder %s18, 1
      %s232 = scalar_select %p231, %s18, 1
      %s233 = scalar_lea.vmem %s2, %s232
      %s234 = smul.u32 4, %s19
      %p235 = scmp.lt.s32.totalorder %s18, 1
      %s236 = scalar_select %p235, %s18, 1
      %p237 = scmp.lt.s32.totalorder %s234, 7
      %s238 = scalar_select %p237, %s234, 7
      %s239 = smul.addr %s236, 8
      %s240 = sadd.s32 %s238, %s239
      %s241 = smul.addr %s240, 8
      %s242 = scalar_lea.vmem %s3, %s241
      %s243 = smul.u32 4, %s19
      %v245 = vld [vmem:[%s224] sm:$0xf]
      %v246 = vld [vmem:[%s224 + $0x4] sm:$0xf]
      %v247 = vld [vmem:[%s224 + $0x8] sm:$0xf]
      %v248 = vld [vmem:[%s224 + $0xc] sm:$0xf]
      %v249 = vld [vmem:[%s230] sm:$0xf]
      %v250 = vld [vmem:[%s230 + $0x4] sm:$0xf]
      %v251 = vld [vmem:[%s230 + $0x8] sm:$0xf]
      %v252 = vld [vmem:[%s230 + $0xc] sm:$0xf]
      %v253 = vld [vmem:[%s230 + $0x10] sm:$0xf]
      %v254 = vld [vmem:[%s230 + $0x14] sm:$0xf]
      %v255 = vld [vmem:[%s230 + $0x18] sm:$0xf]
      %v256 = vld [vmem:[%s230 + $0x1c] sm:$0xf]
      %v261 = vunpack.c.l.b16 %v245
      %v262 = vunpack.c.l.b16 %v246
      %v263 = vunpack.c.l.b16 %v247
      %v264 = vunpack.c.l.b16 %v248
      %v265 = vpack.c.b16 %v262, %v261
      %v266 = vpack.c.b16 %v264, %v263
      %v275 = vunpack.c.l.b16 %v249
      %v276 = vunpack.c.l.b16 %v250
      %v277 = vunpack.c.l.b16 %v251
      %v278 = vunpack.c.l.b16 %v252
      %v279 = vunpack.c.l.b16 %v253
      %v280 = vunpack.c.l.b16 %v254
      %v281 = vunpack.c.l.b16 %v255
      %v282 = vunpack.c.l.b16 %v256
      %v283 = vpack.c.b16 %v276, %v275
      %v284 = vpack.c.b16 %v278, %v277
      %v285 = vpack.c.b16 %v280, %v279
      %v286 = vpack.c.b16 %v282, %v281
      %vm287 = vcmask 130048
      %v289 = vsel %vm287, %v265, 0
      %v292 = vsel %vm287, %v266, 0
      %v295 = vsel %vm287, %v283, 0
      %v298 = vsel %vm287, %v284, 0
      %v301 = vsel %vm287, %v285, 0
      %v304 = vsel %vm287, %v286, 0
      %306 = vmatprep.subr.bf16.mxu0 0
      %307 = vmatpush1.bf16.xpose.msra.mxu0 %v295
      %308 = vmatprep.subr.bf16.mxu0 0
      %309 = vmatpush1.bf16.xpose.msra.mxu0 %v298
      %310 = vmatprep.subr.bf16.mxu0 0
      %311 = vmatpush1.bf16.xpose.msra.mxu0 %v301
      %312 = vmatprep.subr.bf16.mxu0 0
      %313 = vmatpush1.bf16.xpose.msra.mxu0 %v304
      %314 = vmatprep.subr.bf16.mxu0 0
      %315 = vmatpush1.bf16.xpose.msra.mxu0 0
      %316 = vmatprep.subr.bf16.mxu0 0
      %317 = vmatpush1.bf16.xpose.msra.mxu0 0
      %318 = vmatprep.subr.bf16.mxu0 0
      %319 = vmatpush1.bf16.xpose.msra.mxu0 0
      %320 = vmatprep.subr.bf16.mxu0 0
      %321 = vmatpush1.bf16.xpose.msra.mxu0 0
      %322 = vmatprep.subr.bf16.mxu0 0
      %323 = vmatpush1.bf16.xpose.msra.mxu0 0
      %324 = vmatprep.subr.bf16.mxu0 0
      %325 = vmatpush1.bf16.xpose.msra.mxu0 0
      %326 = vmatprep.subr.bf16.mxu0 0
      %327 = vmatpush1.bf16.xpose.msra.mxu0 0
      %328 = vmatprep.subr.bf16.mxu0 0
      %329 = vmatpush1.bf16.xpose.msra.mxu0 0
      %330 = vmatprep.subr.bf16.mxu0 0
      %331 = vmatpush1.bf16.xpose.msra.mxu0 0
      %332 = vmatprep.subr.bf16.mxu0 0
      %333 = vmatpush1.bf16.xpose.msra.mxu0 0
      %334 = vmatprep.subr.bf16.mxu0 0
      %335 = vmatpush1.bf16.xpose.msra.mxu0 0
      %336 = vmatprep.subr.bf16.mxu0 0
      %337 = vmatpush1.bf16.xpose.msra.mxu0 0
      %338 = vmatprep.mubr.bf16.mxu0 0
      %339 = vmatmul.mubr.bf16.gmra.mrb[0].mxu0 %v289
      %v340 = vpop.f32.mrb[0].mxu0
      %v341 = vadd.f32 0.0, %v340
      %v342 = vpop.f32.mrb[0].mxu0
      %v343 = vpop.f32.mrb[0].mxu0
      %v344 = vadd.f32 0.0, %v343
      %v345 = vpop.f32.mrb[0].mxu0
      %346 = vmatprep.mubr.bf16.mxu0 0
      %347 = vmatmul.mubr.bf16.gmra.mrb[0].mxu0 %v292
      %v348 = vpop.f32.mrb[0].mxu0
      %v349 = vadd.f32 0.0, %v348
      %v350 = vpop.f32.mrb[0].mxu0
      %v351 = vpop.f32.mrb[0].mxu0
      %v352 = vadd.f32 0.0, %v351
      %v353 = vpop.f32.mrb[0].mxu0
      %354 = vdwg.mxu0
      %v355 = vmul.f32 %v341, 2.0
      %v356 = vmul.f32 %v344, 2.0
      %v357 = vmul.f32 %v349, 2.0
      %v358 = vmul.f32 %v352, 2.0
      %v359 = vld [vmem:[%s233] sm:$0x1]
      %v361 = vlaneseq
      %v362 = vshrl.u32 %v361, 7
      %v363 = vsub.s32 0, %v362
      %v364 = vrot.slane %v359, %v363
      %v366 = vsub.f32 %v355, %v364
      %v367 = vsub.f32 %v356, %v364
      %v368 = vsub.f32 %v357, %v364
      %v369 = vsub.f32 %v358, %v364
      %vm370 = vcmask 523264
      %371 = vst.msk [vmem:[%s242] sm:$0xff] %vm370, %v366
      %372 = vst.msk [vmem:[%s242 + $0x8] sm:$0xff] %vm370, %v367
      %373 = vst.msk [vmem:[%s242 + $0x10] sm:$0xff] %vm370, %v368
      %374 = vst.msk [vmem:[%s242 + $0x18] sm:$0xff] %vm370, %v369
      %s375 = smul.u32 4, %s19
      %p376 = scmp.lt.s32.totalorder %s18, 1
      %s377 = scalar_select %p376, %s18, 1
      %p378 = scmp.lt.s32.totalorder %s375, 7
      %s379 = scalar_select %p378, %s375, 7
      %s380 = smul.addr %s377, 8
      %s381 = sadd.s32 %s379, %s380
      %s382 = smul.addr %s381, 8
      %s383 = scalar_lea.vmem %s3, %s382
      // Predicated region
      $region33: #{gcn_feature_extractor_forward.6} parent=31 // pred_check
        %p384 = pneg %p126
      $region34: #{gcn_feature_extractor_forward.6} parent=31 // pred_check_branch
        %386 = sbr.rel (%p384) target = $region36
      $region35: #{gcn_feature_extractor_forward.6} parent=31 // pred_region
        %s387 = smul.u32 4, %s19
      $region36: #{gcn_feature_extractor_forward.6} parent=31 // pred_fallthru
        _
    $region32: #{gcn_feature_extractor_forward.6} parent=5 // pred_fallthru
      _
    %p388 = scmp.le.s32.totalorder 2, %s9
    // Predicated region
    $region37: #{gcn_feature_extractor_forward.6} parent=5 // pred_check
      %p389 = pneg %p388
    $region38: #{gcn_feature_extractor_forward.6} parent=5 // pred_check_branch
      %391 = sbr.rel (%p389) target = $region40
    $region39: #{gcn_feature_extractor_forward.6} parent=5 // pred_region
      %s392 = ssub.s32 %s9, 2
      // Predicated region
      $region41: #{gcn_feature_extractor_forward.6} parent=39 // pred_check
        %p393 = pneg %p132
      $region42: #{gcn_feature_extractor_forward.6} parent=39 // pred_check_branch
        %395 = sbr.rel (%p393) target = $region44
      $region43: #{gcn_feature_extractor_forward.6} parent=39 // pred_region
        %s396 = smul.u32 4, %s21
        %p397 = scmp.lt.s32.totalorder %s20, 1
        %s398 = scalar_select %p397, %s20, 1
        %p399 = scmp.lt.s32.totalorder %s396, 7
        %s400 = scalar_select %p399, %s396, 7
        %s401 = smul.addr %s398, 8
        %s402 = sadd.s32 %s400, %s401
        %s403 = smul.addr %s402, 8
        %s404 = scalar_lea.vmem %s3, %s403
      $region44: #{gcn_feature_extractor_forward.6} parent=39 // pred_fallthru
        _
    $region40: #{gcn_feature_extractor_forward.6} parent=5 // pred_fallthru
      _
  $region6: #{gcn_feature_extractor_forward.6} parent=0 // loop_footer
    %s13 = sadd.s32 1, %s9
  $region7: #{gcn_feature_extractor_forward.6} parent=0 // loop_footer_branch
    %8 = sbr.rel target = $region3
  $region8: #{gcn_feature_extractor_forward.6} parent=0 // loop_exit
    _

// kernel: gcn_feature_extractor_forward.8
$region0: #{gcn_feature_extractor_forward.8}
  #allocation0 [shape = 'u32[]', space=smem, size = 0x4, offset = 0x4, fixed_abs, tag = 'smem constant byte address 0x4 - core index']
  #allocation1 [shape = 'u32[144,128]{1,0:T(1,128)}', space=vmem, size = 0x12000, scoped, tag = 'internal scratch']
  %s0 = inlined_call_operand.vmem [shape: bf16[2,64,64], index: 0, kind: input, shape index: {}, may-alias: {0,1}]
  %s1 = inlined_call_operand.vmem [shape: bf16[2,64,64], index: 1, kind: input, shape index: {}, may-alias: {0,1}]
  %s2 = inlined_call_operand.vmem [shape: f32[2,1,64], index: 2, kind: input, shape index: {}]
  %s3 = inlined_call_operand.vmem [shape: f32[2,64,64], index: 3, kind: output, shape index: {}]
  %s4 = sld [smem:[#allocation0]]
  $region45: #{gcn_feature_extractor_forward.8} parent=0
    _
  %s6 = ssub.s32 1, %s4
  %s7 = scalar_select 0, %s6, %s4
  loop: start=0, step=1, limit=6
  $region2: #{gcn_feature_extractor_forward.8} parent=0 // loop_pre_header
    _
  $region3: #{gcn_feature_extractor_forward.8} parent=0 // loop_header
    %s9 = sphi 0, %s13
    %p10 = scmp.ge.s32.totalorder %s9, 6
    %s16 = sphi 0, %s28
    %s17 = sphi 0, %s24
    %s18 = sphi 0, %s16
    %s19 = sphi 0, %s17
    %s20 = sphi 0, %s18
    %s21 = sphi 0, %s19
    %s33 = sphi 0, %s35
    %s36 = sphi 0, %s33
    %s37 = sphi 0, %s36
    %s53 = sphi 0, %s37
    %s59 = sphi 0, %s61
    %s62 = sphi 0, %s59
    %s63 = sphi 0, %s62
    %s79 = sphi 0, %s63
    %s85 = sphi 0, %s87
    %s88 = sphi 0, %s85
    %s89 = sphi 0, %s88
    %s105 = sphi 0, %s89
    %s113 = sphi 0, %s115
    %s116 = sphi 0, %s113
    %s117 = sphi 0, %s116
    %s133 = sphi 0, %s117
  $region4: #{gcn_feature_extractor_forward.8} parent=0 // loop_header_branch
    %12 = sbr.rel (%p10) target = $region8
  $region5: #{gcn_feature_extractor_forward.8} parent=0 // loop_body
    %s14 = ssub.s32 %s9, 1
    %s15 = ssub.s32 %s9, 2
    %s22 = sadd.s32 1, %s17
    %p23 = scmp.ge.s32.totalorder %s22, 2
    %s24 = scalar_select %p23, 0, %s22
    %s25 = sadd.s32 1, %s16
    %s26 = scalar_select %p23, %s25, %s16
    %p27 = scmp.ge.s32.totalorder %s26, 2
    %s28 = scalar_select %p27, 0, %s26
    %s29 = ssub.s32 %s16, %s28
    %s30 = ssub.s32 %s17, %s24
    %s31 = sor.u32 %s29, %s30
    %p32 = scmp.eq.s32.totalorder %s31, 0
    %s34 = sadd.s32 %s33, 1
    %s35 = scalar_select %p32, %s33, %s34
    %p38 = pneg %p32
    %p39 = scmp.eq.s32.totalorder %s9, 3
    %p40 = por %p38, %p39
    %p41 = scmp.ne.s32.totalorder %s33, %s36
    %p42 = scmp.eq.s32.totalorder %s9, 0
    %p43 = por %p41, %p42
    %p44 = scmp.ne.s32.totalorder %s33, %s36
    %p45 = scmp.eq.s32.totalorder %s14, 3
    %p46 = por %p44, %p45
    %p47 = scmp.ne.s32.totalorder %s36, %s37
    %p48 = scmp.eq.s32.totalorder %s14, 0
    %p49 = por %p47, %p48
    %p50 = scmp.ne.s32.totalorder %s36, %s37
    %p51 = scmp.eq.s32.totalorder %s15, 3
    %p52 = por %p50, %p51
    %p54 = scmp.ne.s32.totalorder %s37, %s53
    %p55 = scmp.eq.s32.totalorder %s15, 0
    %p56 = por %p54, %p55
    %s57 = ssub.s32 %s16, %s28
    %p58 = scmp.eq.s32.totalorder %s57, 0
    %s60 = sadd.s32 %s59, 1
    %s61 = scalar_select %p58, %s59, %s60
    %p64 = pneg %p58
    %p65 = scmp.eq.s32.totalorder %s9, 3
    %p66 = por %p64, %p65
    %p67 = scmp.ne.s32.totalorder %s59, %s62
    %p68 = scmp.eq.s32.totalorder %s9, 0
    %p69 = por %p67, %p68
    %p70 = scmp.ne.s32.totalorder %s59, %s62
    %p71 = scmp.eq.s32.totalorder %s14, 3
    %p72 = por %p70, %p71
    %p73 = scmp.ne.s32.totalorder %s62, %s63
    %p74 = scmp.eq.s32.totalorder %s14, 0
    %p75 = por %p73, %p74
    %p76 = scmp.ne.s32.totalorder %s62, %s63
    %p77 = scmp.eq.s32.totalorder %s15, 3
    %p78 = por %p76, %p77
    %p80 = scmp.ne.s32.totalorder %s63, %s79
    %p81 = scmp.eq.s32.totalorder %s15, 0
    %p82 = por %p80, %p81
    %s83 = ssub.s32 %s16, %s28
    %p84 = scmp.eq.s32.totalorder %s83, 0
    %s86 = sadd.s32 %s85, 1
    %s87 = scalar_select %p84, %s85, %s86
    %p90 = pneg %p84
    %p91 = scmp.eq.s32.totalorder %s9, 3
    %p92 = por %p90, %p91
    %p93 = scmp.ne.s32.totalorder %s85, %s88
    %p94 = scmp.eq.s32.totalorder %s9, 0
    %p95 = por %p93, %p94
    %p96 = scmp.ne.s32.totalorder %s85, %s88
    %p97 = scmp.eq.s32.totalorder %s14, 3
    %p98 = por %p96, %p97
    %p99 = scmp.ne.s32.totalorder %s88, %s89
    %p100 = scmp.eq.s32.totalorder %s14, 0
    %p101 = por %p99, %p100
    %p102 = scmp.ne.s32.totalorder %s88, %s89
    %p103 = scmp.eq.s32.totalorder %s15, 3
    %p104 = por %p102, %p103
    %p106 = scmp.ne.s32.totalorder %s89, %s105
    %p107 = scmp.eq.s32.totalorder %s15, 0
    %p108 = por %p106, %p107
    %s109 = ssub.s32 %s16, %s28
    %s110 = ssub.s32 %s17, %s24
    %s111 = sor.u32 %s109, %s110
    %p112 = scmp.eq.s32.totalorder %s111, 0
    %s114 = sadd.s32 %s113, 1
    %s115 = scalar_select %p112, %s113, %s114
    %p118 = pneg %p112
    %p119 = scmp.eq.s32.totalorder %s9, 3
    %p120 = por %p118, %p119
    %p121 = scmp.ne.s32.totalorder %s113, %s116
    %p122 = scmp.eq.s32.totalorder %s9, 0
    %p123 = por %p121, %p122
    %p124 = scmp.ne.s32.totalorder %s113, %s116
    %p125 = scmp.eq.s32.totalorder %s14, 3
    %p126 = por %p124, %p125
    %p127 = scmp.ne.s32.totalorder %s116, %s117
    %p128 = scmp.eq.s32.totalorder %s14, 0
    %p129 = por %p127, %p128
    %p130 = scmp.ne.s32.totalorder %s116, %s117
    %p131 = scmp.eq.s32.totalorder %s15, 3
    %p132 = por %p130, %p131
    %p134 = scmp.ne.s32.totalorder %s117, %s133
    %p135 = scmp.eq.s32.totalorder %s15, 0
    %p136 = por %p134, %p135
    %p137 = scmp.le.s32.totalorder 1, %s9
    %p138 = scmp.lt.s32.totalorder %s9, 5
    %p139 = pnand %p137, %p138
    %p140 = pneg %p139
    // Predicated region
    $region9: #{gcn_feature_extractor_forward.8} parent=5 // pred_check
      _
    $region10: #{gcn_feature_extractor_forward.8} parent=5 // pred_check_branch
      %142 = sbr.rel (%p139) target = $region12
    $region11: #{gcn_feature_extractor_forward.8} parent=5 // pred_region
      %s143 = ssub.s32 %s9, 1
    $region12: #{gcn_feature_extractor_forward.8} parent=5 // pred_fallthru
      _
    %p144 = scmp.lt.s32.totalorder %s9, 4
    // Predicated region
    $region13: #{gcn_feature_extractor_forward.8} parent=5 // pred_check
      %p145 = pneg %p144
    $region14: #{gcn_feature_extractor_forward.8} parent=5 // pred_check_branch
      %147 = sbr.rel (%p145) target = $region16
    $region15: #{gcn_feature_extractor_forward.8} parent=5 // pred_region
      // Predicated region
      $region17: #{gcn_feature_extractor_forward.8} parent=15 // pred_check
        %p148 = pneg %p43
      $region18: #{gcn_feature_extractor_forward.8} parent=15 // pred_check_branch
        %150 = sbr.rel (%p148) target = $region20
      $region19: #{gcn_feature_extractor_forward.8} parent=15 // pred_region
        %s151 = smul.u32 4, %s17
        %p152 = scmp.lt.s32.totalorder %s16, 1
        %s153 = scalar_select %p152, %s16, 1
        %p154 = scmp.lt.s32.totalorder %s151, 7
        %s155 = scalar_select %p154, %s151, 7
        %s156 = smul.addr %s153, 8
        %s157 = sadd.s32 %s155, %s156
        %s158 = smul.addr %s157, 4
        %s159 = scalar_lea.vmem %s0, %s158
        %s160 = smul.u32 4, %s17
      $region20: #{gcn_feature_extractor_forward.8} parent=15 // pred_fallthru
        _
      // Predicated region
      $region21: #{gcn_feature_extractor_forward.8} parent=15 // pred_check
        %p161 = pneg %p69
      $region22: #{gcn_feature_extractor_forward.8} parent=15 // pred_check_branch
        %163 = sbr.rel (%p161) target = $region24
      $region23: #{gcn_feature_extractor_forward.8} parent=15 // pred_region
        %p164 = scmp.lt.s32.totalorder %s16, 1
        %s165 = scalar_select %p164, %s16, 1
        %s166 = smul.addr %s165, 8
        %s167 = smul.addr %s166, 4
        %s168 = scalar_lea.vmem %s1, %s167
      $region24: #{gcn_feature_extractor_forward.8} parent=15 // pred_fallthru
        _
      // Predicated region
      $region25: #{gcn_feature_extractor_forward.8} parent=15 // pred_check
        %p169 = pneg %p95
      $region26: #{gcn_feature_extractor_forward.8} parent=15 // pred_check_branch
        %171 = sbr.rel (%p169) target = $region28
      $region27: #{gcn_feature_extractor_forward.8} parent=15 // pred_region
        %p172 = scmp.lt.s32.totalorder %s16, 1
        %s173 = scalar_select %p172, %s16, 1
        %s174 = scalar_lea.vmem %s2, %s173
      $region28: #{gcn_feature_extractor_forward.8} parent=15 // pred_fallthru
        _
    $region16: #{gcn_feature_extractor_forward.8} parent=5 // pred_fallthru
      _
    %p175 = scmp.le.s32.totalorder 1, %s9
    %p176 = scmp.lt.s32.totalorder %s9, 5
    %p177 = pnand %p175, %p176
    %p178 = pneg %p177
    // Predicated region
    $region29: #{gcn_feature_extractor_forward.8} parent=5 // pred_check
      _
    $region30: #{gcn_feature_extractor_forward.8} parent=5 // pred_check_branch
      %180 = sbr.rel (%p177) target = $region32
    $region31: #{gcn_feature_extractor_forward.8} parent=5 // pred_region
      %s181 = ssub.s32 %s9, 1
      %s182 = smul.u32 4, %s19
      %p183 = scmp.lt.s32.totalorder %s18, 1
      %s184 = scalar_select %p183, %s18, 1
      %p185 = scmp.lt.s32.totalorder %s182, 7
      %s186 = scalar_select %p185, %s182, 7
      %s187 = smul.addr %s184, 8
      %s188 = sadd.s32 %s186, %s187
      %s189 = smul.addr %s188, 4
      %s190 = scalar_lea.vmem %s0, %s189
      %p191 = pneg %p49
      %p192 = pneg %p46
      %p193 = scmp.lt.s32.totalorder %s18, 1
      %s194 = scalar_select %p193, %s18, 1
      %s195 = smul.addr %s194, 8
      %s196 = smul.addr %s195, 4
      %s197 = scalar_lea.vmem %s1, %s196
      %p198 = pneg %p75
      %p199 = pneg %p72
      %p200 = scmp.lt.s32.totalorder %s18, 1
      %s201 = scalar_select %p200, %s18, 1
      %s202 = scalar_lea.vmem %s2, %s201
      %p203 = pneg %p101
      %p204 = pneg %p98
      %p205 = pneg %p129
      %p206 = pneg %p126
      %s207 = smul.u32 4, %s19
      %p208 = scmp.lt.s32.totalorder %s18, 1
      %s209 = scalar_select %p208, %s18, 1
      %p210 = scmp.lt.s32.totalorder %s207, 7
      %s211 = scalar_select %p210, %s207, 7
      %s212 = smul.addr %s209, 8
      %s213 = sadd.s32 %s211, %s212
      %s214 = smul.addr %s213, 8
      %s215 = scalar_lea.vmem %s3, %s214
      %s216 = smul.u32 4, %s19
      %p217 = scmp.lt.s32.totalorder %s18, 1
      %s218 = scalar_select %p217, %s18, 1
      %p219 = scmp.lt.s32.totalorder %s216, 7
      %s220 = scalar_select %p219, %s216, 7
      %s221 = smul.addr %s218, 8
      %s222 = sadd.s32 %s220, %s221
      %s223 = smul.addr %s222, 4
      %s224 = scalar_lea.vmem %s0, %s223
      %s225 = smul.u32 4, %s19
      %p226 = scmp.lt.s32.totalorder %s18, 1
      %s227 = scalar_select %p226, %s18, 1
      %s228 = smul.addr %s227, 8
      %s229 = smul.addr %s228, 4
      %s230 = scalar_lea.vmem %s1, %s229
      %p231 = scmp.lt.s32.totalorder %s18, 1
      %s232 = scalar_select %p231, %s18, 1
      %s233 = scalar_lea.vmem %s2, %s232
      %s234 = smul.u32 4, %s19
      %p235 = scmp.lt.s32.totalorder %s18, 1
      %s236 = scalar_select %p235, %s18, 1
      %p237 = scmp.lt.s32.totalorder %s234, 7
      %s238 = scalar_select %p237, %s234, 7
      %s239 = smul.addr %s236, 8
      %s240 = sadd.s32 %s238, %s239
      %s241 = smul.addr %s240, 8
      %s242 = scalar_lea.vmem %s3, %s241
      %s243 = smul.u32 4, %s19
      %v245 = vld [vmem:[%s224] sm:$0xf]
      %v246 = vld [vmem:[%s224 + $0x4] sm:$0xf]
      %v247 = vld [vmem:[%s224 + $0x8] sm:$0xf]
      %v248 = vld [vmem:[%s224 + $0xc] sm:$0xf]
      %v249 = vld [vmem:[%s230] sm:$0xf]
      %v250 = vld [vmem:[%s230 + $0x4] sm:$0xf]
      %v251 = vld [vmem:[%s230 + $0x8] sm:$0xf]
      %v252 = vld [vmem:[%s230 + $0xc] sm:$0xf]
      %v253 = vld [vmem:[%s230 + $0x10] sm:$0xf]
      %v254 = vld [vmem:[%s230 + $0x14] sm:$0xf]
      %v255 = vld [vmem:[%s230 + $0x18] sm:$0xf]
      %v256 = vld [vmem:[%s230 + $0x1c] sm:$0xf]
      %v261 = vunpack.c.l.b16 %v245
      %v262 = vunpack.c.l.b16 %v246
      %v263 = vunpack.c.l.b16 %v247
      %v264 = vunpack.c.l.b16 %v248
      %v265 = vpack.c.b16 %v262, %v261
      %v266 = vpack.c.b16 %v264, %v263
      %v275 = vunpack.c.l.b16 %v249
      %v276 = vunpack.c.l.b16 %v250
      %v277 = vunpack.c.l.b16 %v251
      %v278 = vunpack.c.l.b16 %v252
      %v279 = vunpack.c.l.b16 %v253
      %v280 = vunpack.c.l.b16 %v254
      %v281 = vunpack.c.l.b16 %v255
      %v282 = vunpack.c.l.b16 %v256
      %v283 = vpack.c.b16 %v276, %v275
      %v284 = vpack.c.b16 %v278, %v277
      %v285 = vpack.c.b16 %v280, %v279
      %v286 = vpack.c.b16 %v282, %v281
      %vm287 = vcmask 523264
      %v289 = vsel %vm287, %v265, 0
      %v292 = vsel %vm287, %v266, 0
      %v295 = vsel %vm287, %v283, 0
      %v298 = vsel %vm287, %v284, 0
      %v301 = vsel %vm287, %v285, 0
      %v304 = vsel %vm287, %v286, 0
      %306 = vmatprep.subr.bf16.mxu0 0
      %307 = vmatpush1.bf16.xpose.msra.mxu0 %v295
      %308 = vmatprep.subr.bf16.mxu0 0
      %309 = vmatpush1.bf16.xpose.msra.mxu0 %v298
      %310 = vmatprep.subr.bf16.mxu0 0
      %311 = vmatpush1.bf16.xpose.msra.mxu0 %v301
      %312 = vmatprep.subr.bf16.mxu0 0
      %313 = vmatpush1.bf16.xpose.msra.mxu0 %v304
      %314 = vmatprep.subr.bf16.mxu0 0
      %315 = vmatpush1.bf16.xpose.msra.mxu0 0
      %316 = vmatprep.subr.bf16.mxu0 0
      %317 = vmatpush1.bf16.xpose.msra.mxu0 0
      %318 = vmatprep.subr.bf16.mxu0 0
      %319 = vmatpush1.bf16.xpose.msra.mxu0 0
      %320 = vmatprep.subr.bf16.mxu0 0
      %321 = vmatpush1.bf16.xpose.msra.mxu0 0
      %322 = vmatprep.subr.bf16.mxu0 0
      %323 = vmatpush1.bf16.xpose.msra.mxu0 0
      %324 = vmatprep.subr.bf16.mxu0 0
      %325 = vmatpush1.bf16.xpose.msra.mxu0 0
      %326 = vmatprep.subr.bf16.mxu0 0
      %327 = vmatpush1.bf16.xpose.msra.mxu0 0
      %328 = vmatprep.subr.bf16.mxu0 0
      %329 = vmatpush1.bf16.xpose.msra.mxu0 0
      %330 = vmatprep.subr.bf16.mxu0 0
      %331 = vmatpush1.bf16.xpose.msra.mxu0 0
      %332 = vmatprep.subr.bf16.mxu0 0
      %333 = vmatpush1.bf16.xpose.msra.mxu0 0
      %334 = vmatprep.subr.bf16.mxu0 0
      %335 = vmatpush1.bf16.xpose.msra.mxu0 0
      %336 = vmatprep.subr.bf16.mxu0 0
      %337 = vmatpush1.bf16.xpose.msra.mxu0 0
      %338 = vmatprep.mubr.bf16.mxu0 0
      %339 = vmatmul.mubr.bf16.gmra.mrb[0].mxu0 %v289
      %v340 = vpop.f32.mrb[0].mxu0
      %v341 = vadd.f32 0.0, %v340
      %v342 = vpop.f32.mrb[0].mxu0
      %v343 = vpop.f32.mrb[0].mxu0
      %v344 = vadd.f32 0.0, %v343
      %v345 = vpop.f32.mrb[0].mxu0
      %346 = vmatprep.mubr.bf16.mxu0 0
      %347 = vmatmul.mubr.bf16.gmra.mrb[0].mxu0 %v292
      %v348 = vpop.f32.mrb[0].mxu0
      %v349 = vadd.f32 0.0, %v348
      %v350 = vpop.f32.mrb[0].mxu0
      %v351 = vpop.f32.mrb[0].mxu0
      %v352 = vadd.f32 0.0, %v351
      %v353 = vpop.f32.mrb[0].mxu0
      %354 = vdwg.mxu0
      %v355 = vmul.f32 %v341, 2.0
      %v356 = vmul.f32 %v344, 2.0
      %v357 = vmul.f32 %v349, 2.0
      %v358 = vmul.f32 %v352, 2.0
      %v359 = vld [vmem:[%s233] sm:$0x1]
      %v361 = vlaneseq
      %v362 = vshrl.u32 %v361, 7
      %v363 = vsub.s32 0, %v362
      %v364 = vrot.slane %v359, %v363
      %v366 = vsub.f32 %v355, %v364
      %v367 = vsub.f32 %v356, %v364
      %v368 = vsub.f32 %v357, %v364
      %v369 = vsub.f32 %v358, %v364
      %370 = vst.msk [vmem:[%s242] sm:$0xff] %vm287, %v366
      %371 = vst.msk [vmem:[%s242 + $0x8] sm:$0xff] %vm287, %v367
      %372 = vst.msk [vmem:[%s242 + $0x10] sm:$0xff] %vm287, %v368
      %373 = vst.msk [vmem:[%s242 + $0x18] sm:$0xff] %vm287, %v369
      %s374 = smul.u32 4, %s19
      %p375 = scmp.lt.s32.totalorder %s18, 1
      %s376 = scalar_select %p375, %s18, 1
      %p377 = scmp.lt.s32.totalorder %s374, 7
      %s378 = scalar_select %p377, %s374, 7
      %s379 = smul.addr %s376, 8
      %s380 = sadd.s32 %s378, %s379
      %s381 = smul.addr %s380, 8
      %s382 = scalar_lea.vmem %s3, %s381
      // Predicated region
      $region33: #{gcn_feature_extractor_forward.8} parent=31 // pred_check
        %p383 = pneg %p126
      $region34: #{gcn_feature_extractor_forward.8} parent=31 // pred_check_branch
        %385 = sbr.rel (%p383) target = $region36
      $region35: #{gcn_feature_extractor_forward.8} parent=31 // pred_region
        %s386 = smul.u32 4, %s19
      $region36: #{gcn_feature_extractor_forward.8} parent=31 // pred_fallthru
        _
    $region32: #{gcn_feature_extractor_forward.8} parent=5 // pred_fallthru
      _
    %p387 = scmp.le.s32.totalorder 2, %s9
    // Predicated region
    $region37: #{gcn_feature_extractor_forward.8} parent=5 // pred_check
      %p388 = pneg %p387
    $region38: #{gcn_feature_extractor_forward.8} parent=5 // pred_check_branch
      %390 = sbr.rel (%p388) target = $region40
    $region39: #{gcn_feature_extractor_forward.8} parent=5 // pred_region
      %s391 = ssub.s32 %s9, 2
      // Predicated region
      $region41: #{gcn_feature_extractor_forward.8} parent=39 // pred_check
        %p392 = pneg %p132
      $region42: #{gcn_feature_extractor_forward.8} parent=39 // pred_check_branch
        %394 = sbr.rel (%p392) target = $region44
      $region43: #{gcn_feature_extractor_forward.8} parent=39 // pred_region
        %s395 = smul.u32 4, %s21
        %p396 = scmp.lt.s32.totalorder %s20, 1
        %s397 = scalar_select %p396, %s20, 1
        %p398 = scmp.lt.s32.totalorder %s395, 7
        %s399 = scalar_select %p398, %s395, 7
        %s400 = smul.addr %s397, 8
        %s401 = sadd.s32 %s399, %s400
        %s402 = smul.addr %s401, 8
        %s403 = scalar_lea.vmem %s3, %s402
      $region44: #{gcn_feature_extractor_forward.8} parent=39 // pred_fallthru
        _
    $region40: #{gcn_feature_extractor_forward.8} parent=5 // pred_fallthru
      _
  $region6: #{gcn_feature_extractor_forward.8} parent=0 // loop_footer
    %s13 = sadd.s32 1, %s9
  $region7: #{gcn_feature_extractor_forward.8} parent=0 // loop_footer_branch
    %8 = sbr.rel target = $region3
  $region8: #{gcn_feature_extractor_forward.8} parent=0 // loop_exit
    _

// kernel: gcn_feature_extractor_forward.7
$region0: #{gcn_feature_extractor_forward.7}
  #allocation0 [shape = 'u32[]', space=smem, size = 0x4, offset = 0x4, fixed_abs, tag = 'smem constant byte address 0x4 - core index']
  #allocation1 [shape = 'u32[144,128]{1,0:T(1,128)}', space=vmem, size = 0x12000, scoped, tag = 'internal scratch']
  #allocation2 [shape = 'f32[64,64]{1,0:T(8,128)}', space=vmem, size = 0x8000, scoped, tag = 'scratch operand']
  #allocation3 [shape = 'f32[64,64]{1,0:T(8,128)}', space=vmem, size = 0x8000, scoped, tag = 'scratch operand']
  %s0 = inlined_call_operand.vmem [shape: bf16[20,128,16], index: 0, kind: input, shape index: {}]
  %s1 = inlined_call_operand.vmem [shape: f32[128,16], index: 1, kind: input, shape index: {}]
  %s2 = inlined_call_operand.vmem [shape: bf16[16,64], index: 2, kind: input, shape index: {}]
  %s3 = inlined_call_operand.vmem [shape: bf16[16,64], index: 3, kind: input, shape index: {}]
  %s4 = inlined_call_operand.vmem [shape: f32[1,64], index: 4, kind: input, shape index: {}]
  %s5 = inlined_call_operand.vmem [shape: bf16[64,64], index: 5, kind: input, shape index: {}]
  %s6 = inlined_call_operand.vmem [shape: f32[1,64], index: 6, kind: input, shape index: {}]
  %s7 = inlined_call_operand.vmem [shape: f32[128,64], index: 7, kind: output, shape index: {}]
  %s8 = sld [smem:[#allocation0]]
  $region77: #{gcn_feature_extractor_forward.7} parent=0
    _
  %s10 = ssub.s32 1, %s8
  %s11 = scalar_select 0, %s10, %s8
  loop: start=0, step=1, limit=42
  $region2: #{gcn_feature_extractor_forward.7} parent=0 // loop_pre_header
    _
  $region3: #{gcn_feature_extractor_forward.7} parent=0 // loop_header
    %s13 = sphi 0, %s17
    %p14 = scmp.ge.s32.totalorder %s13, 42
    %s20 = sphi 0, %s32
    %s21 = sphi 0, %s28
    %s22 = sphi 0, %s20
    %s23 = sphi 0, %s21
    %s24 = sphi 0, %s22
    %s25 = sphi 0, %s23
    %s37 = sphi 0, %s39
    %s40 = sphi 0, %s37
    %s41 = sphi 0, %s40
    %s57 = sphi 0, %s41
    %s63 = sphi 0, %s65
    %s66 = sphi 0, %s63
    %s67 = sphi 0, %s66
    %s83 = sphi 0, %s67
    %s87 = sphi 0, %s87
    %s89 = sphi 0, %s87
    %s90 = sphi 0, %s89
    %s104 = sphi 0, %s90
    %s108 = sphi 0, %s108
    %s110 = sphi 0, %s108
    %s111 = sphi 0, %s110
    %s125 = sphi 0, %s111
    %s129 = sphi 0, %s129
    %s131 = sphi 0, %s129
    %s132 = sphi 0, %s131
    %s146 = sphi 0, %s132
    %s150 = sphi 0, %s150
    %s152 = sphi 0, %s150
    %s153 = sphi 0, %s152
    %s167 = sphi 0, %s153
    %s171 = sphi 0, %s171
    %s173 = sphi 0, %s171
    %s174 = sphi 0, %s173
    %s188 = sphi 0, %s174
    %s194 = sphi 0, %s196
    %s197 = sphi 0, %s194
    %s198 = sphi 0, %s197
    %s214 = sphi 0, %s198
  $region4: #{gcn_feature_extractor_forward.7} parent=0 // loop_header_branch
    %16 = sbr.rel (%p14) target = $region8
  $region5: #{gcn_feature_extractor_forward.7} parent=0 // loop_body
    %s18 = ssub.s32 %s13, 1
    %s19 = ssub.s32 %s13, 2
    %s26 = sadd.s32 1, %s21
    %p27 = scmp.ge.s32.totalorder %s26, 20
    %s28 = scalar_select %p27, 0, %s26
    %s29 = sadd.s32 1, %s20
    %s30 = scalar_select %p27, %s29, %s20
    %p31 = scmp.ge.s32.totalorder %s30, 2
    %s32 = scalar_select %p31, 0, %s30
    %s33 = ssub.s32 %s21, %s28
    %s34 = ssub.s32 %s20, %s32
    %s35 = sor.u32 %s33, %s34
    %p36 = scmp.eq.s32.totalorder %s35, 0
    %s38 = sadd.s32 %s37, 1
    %s39 = scalar_select %p36, %s37, %s38
    %p42 = pneg %p36
    %p43 = scmp.eq.s32.totalorder %s13, 39
    %p44 = por %p42, %p43
    %p45 = scmp.ne.s32.totalorder %s37, %s40
    %p46 = scmp.eq.s32.totalorder %s13, 0
    %p47 = por %p45, %p46
    %p48 = scmp.ne.s32.totalorder %s37, %s40
    %p49 = scmp.eq.s32.totalorder %s18, 39
    %p50 = por %p48, %p49
    %p51 = scmp.ne.s32.totalorder %s40, %s41
    %p52 = scmp.eq.s32.totalorder %s18, 0
    %p53 = por %p51, %p52
    %p54 = scmp.ne.s32.totalorder %s40, %s41
    %p55 = scmp.eq.s32.totalorder %s19, 39
    %p56 = por %p54, %p55
    %p58 = scmp.ne.s32.totalorder %s41, %s57
    %p59 = scmp.eq.s32.totalorder %s19, 0
    %p60 = por %p58, %p59
    %s61 = ssub.s32 %s20, %s32
    %p62 = scmp.eq.s32.totalorder %s61, 0
    %s64 = sadd.s32 %s63, 1
    %s65 = scalar_select %p62, %s63, %s64
    %p68 = pneg %p62
    %p69 = scmp.eq.s32.totalorder %s13, 39
    %p70 = por %p68, %p69
    %p71 = scmp.ne.s32.totalorder %s63, %s66
    %p72 = scmp.eq.s32.totalorder %s13, 0
    %p73 = por %p71, %p72
    %p74 = scmp.ne.s32.totalorder %s63, %s66
    %p75 = scmp.eq.s32.totalorder %s18, 39
    %p76 = por %p74, %p75
    %p77 = scmp.ne.s32.totalorder %s66, %s67
    %p78 = scmp.eq.s32.totalorder %s18, 0
    %p79 = por %p77, %p78
    %p80 = scmp.ne.s32.totalorder %s66, %s67
    %p81 = scmp.eq.s32.totalorder %s19, 39
    %p82 = por %p80, %p81
    %p84 = scmp.ne.s32.totalorder %s67, %s83
    %p85 = scmp.eq.s32.totalorder %s19, 0
    %p86 = por %p84, %p85
    %s88 = sadd.s32 %s87, 1
    %p91 = scmp.eq.s32.totalorder %s13, 39
    %p92 = scmp.ne.s32.totalorder %s87, %s89
    %p93 = scmp.eq.s32.totalorder %s13, 0
    %p94 = por %p92, %p93
    %p95 = scmp.ne.s32.totalorder %s87, %s89
    %p96 = scmp.eq.s32.totalorder %s18, 39
    %p97 = por %p95, %p96
    %p98 = scmp.ne.s32.totalorder %s89, %s90
    %p99 = scmp.eq.s32.totalorder %s18, 0
    %p100 = por %p98, %p99
    %p101 = scmp.ne.s32.totalorder %s89, %s90
    %p102 = scmp.eq.s32.totalorder %s19, 39
    %p103 = por %p101, %p102
    %p105 = scmp.ne.s32.totalorder %s90, %s104
    %p106 = scmp.eq.s32.totalorder %s19, 0
    %p107 = por %p105, %p106
    %s109 = sadd.s32 %s108, 1
    %p112 = scmp.eq.s32.totalorder %s13, 39
    %p113 = scmp.ne.s32.totalorder %s108, %s110
    %p114 = scmp.eq.s32.totalorder %s13, 0
    %p115 = por %p113, %p114
    %p116 = scmp.ne.s32.totalorder %s108, %s110
    %p117 = scmp.eq.s32.totalorder %s18, 39
    %p118 = por %p116, %p117
    %p119 = scmp.ne.s32.totalorder %s110, %s111
    %p120 = scmp.eq.s32.totalorder %s18, 0
    %p121 = por %p119, %p120
    %p122 = scmp.ne.s32.totalorder %s110, %s111
    %p123 = scmp.eq.s32.totalorder %s19, 39
    %p124 = por %p122, %p123
    %p126 = scmp.ne.s32.totalorder %s111, %s125
    %p127 = scmp.eq.s32.totalorder %s19, 0
    %p128 = por %p126, %p127
    %s130 = sadd.s32 %s129, 1
    %p133 = scmp.eq.s32.totalorder %s13, 39
    %p134 = scmp.ne.s32.totalorder %s129, %s131
    %p135 = scmp.eq.s32.totalorder %s13, 0
    %p136 = por %p134, %p135
    %p137 = scmp.ne.s32.totalorder %s129, %s131
    %p138 = scmp.eq.s32.totalorder %s18, 39
    %p139 = por %p137, %p138
    %p140 = scmp.ne.s32.totalorder %s131, %s132
    %p141 = scmp.eq.s32.totalorder %s18, 0
    %p142 = por %p140, %p141
    %p143 = scmp.ne.s32.totalorder %s131, %s132
    %p144 = scmp.eq.s32.totalorder %s19, 39
    %p145 = por %p143, %p144
    %p147 = scmp.ne.s32.totalorder %s132, %s146
    %p148 = scmp.eq.s32.totalorder %s19, 0
    %p149 = por %p147, %p148
    %s151 = sadd.s32 %s150, 1
    %p154 = scmp.eq.s32.totalorder %s13, 39
    %p155 = scmp.ne.s32.totalorder %s150, %s152
    %p156 = scmp.eq.s32.totalorder %s13, 0
    %p157 = por %p155, %p156
    %p158 = scmp.ne.s32.totalorder %s150, %s152
    %p159 = scmp.eq.s32.totalorder %s18, 39
    %p160 = por %p158, %p159
    %p161 = scmp.ne.s32.totalorder %s152, %s153
    %p162 = scmp.eq.s32.totalorder %s18, 0
    %p163 = por %p161, %p162
    %p164 = scmp.ne.s32.totalorder %s152, %s153
    %p165 = scmp.eq.s32.totalorder %s19, 39
    %p166 = por %p164, %p165
    %p168 = scmp.ne.s32.totalorder %s153, %s167
    %p169 = scmp.eq.s32.totalorder %s19, 0
    %p170 = por %p168, %p169
    %s172 = sadd.s32 %s171, 1
    %p175 = scmp.eq.s32.totalorder %s13, 39
    %p176 = scmp.ne.s32.totalorder %s171, %s173
    %p177 = scmp.eq.s32.totalorder %s13, 0
    %p178 = por %p176, %p177
    %p179 = scmp.ne.s32.totalorder %s171, %s173
    %p180 = scmp.eq.s32.totalorder %s18, 39
    %p181 = por %p179, %p180
    %p182 = scmp.ne.s32.totalorder %s173, %s174
    %p183 = scmp.eq.s32.totalorder %s18, 0
    %p184 = por %p182, %p183
    %p185 = scmp.ne.s32.totalorder %s173, %s174
    %p186 = scmp.eq.s32.totalorder %s19, 39
    %p187 = por %p185, %p186
    %p189 = scmp.ne.s32.totalorder %s174, %s188
    %p190 = scmp.eq.s32.totalorder %s19, 0
    %p191 = por %p189, %p190
    %s192 = ssub.s32 %s20, %s32
    %p193 = scmp.eq.s32.totalorder %s192, 0
    %s195 = sadd.s32 %s194, 1
    %s196 = scalar_select %p193, %s194, %s195
    %p199 = pneg %p193
    %p200 = scmp.eq.s32.totalorder %s13, 39
    %p201 = por %p199, %p200
    %p202 = scmp.ne.s32.totalorder %s194, %s197
    %p203 = scmp.eq.s32.totalorder %s13, 0
    %p204 = por %p202, %p203
    %p205 = scmp.ne.s32.totalorder %s194, %s197
    %p206 = scmp.eq.s32.totalorder %s18, 39
    %p207 = por %p205, %p206
    %p208 = scmp.ne.s32.totalorder %s197, %s198
    %p209 = scmp.eq.s32.totalorder %s18, 0
    %p210 = por %p208, %p209
    %p211 = scmp.ne.s32.totalorder %s197, %s198
    %p212 = scmp.eq.s32.totalorder %s19, 39
    %p213 = por %p211, %p212
    %p215 = scmp.ne.s32.totalorder %s198, %s214
    %p216 = scmp.eq.s32.totalorder %s19, 0
    %p217 = por %p215, %p216
    %p218 = scmp.le.s32.totalorder 1, %s13
    %p219 = scmp.lt.s32.totalorder %s13, 41
    %p220 = pnand %p218, %p219
    %p221 = pneg %p220
    // Predicated region
    $region9: #{gcn_feature_extractor_forward.7} parent=5 // pred_check
      _
    $region10: #{gcn_feature_extractor_forward.7} parent=5 // pred_check_branch
      %223 = sbr.rel (%p220) target = $region12
    $region11: #{gcn_feature_extractor_forward.7} parent=5 // pred_region
      %s224 = ssub.s32 %s13, 1
      // Predicated region
      $region13: #{gcn_feature_extractor_forward.7} parent=11 // pred_check
        %p225 = pneg %p100
      $region14: #{gcn_feature_extractor_forward.7} parent=11 // pred_check_branch
        %227 = sbr.rel (%p225) target = $region16
      $region15: #{gcn_feature_extractor_forward.7} parent=11 // pred_region
        _
      $region16: #{gcn_feature_extractor_forward.7} parent=11 // pred_fallthru
        _
      // Predicated region
      $region17: #{gcn_feature_extractor_forward.7} parent=11 // pred_check
        %p228 = pneg %p121
      $region18: #{gcn_feature_extractor_forward.7} parent=11 // pred_check_branch
        %230 = sbr.rel (%p228) target = $region20
      $region19: #{gcn_feature_extractor_forward.7} parent=11 // pred_region
        _
      $region20: #{gcn_feature_extractor_forward.7} parent=11 // pred_fallthru
        _
      // Predicated region
      $region21: #{gcn_feature_extractor_forward.7} parent=11 // pred_check
        %p231 = pneg %p142
      $region22: #{gcn_feature_extractor_forward.7} parent=11 // pred_check_branch
        %233 = sbr.rel (%p231) target = $region24
      $region23: #{gcn_feature_extractor_forward.7} parent=11 // pred_region
        _
      $region24: #{gcn_feature_extractor_forward.7} parent=11 // pred_fallthru
        _
      // Predicated region
      $region25: #{gcn_feature_extractor_forward.7} parent=11 // pred_check
        %p234 = pneg %p163
      $region26: #{gcn_feature_extractor_forward.7} parent=11 // pred_check_branch
        %236 = sbr.rel (%p234) target = $region28
      $region27: #{gcn_feature_extractor_forward.7} parent=11 // pred_region
        _
      $region28: #{gcn_feature_extractor_forward.7} parent=11 // pred_fallthru
        _
      // Predicated region
      $region29: #{gcn_feature_extractor_forward.7} parent=11 // pred_check
        %p237 = pneg %p184
      $region30: #{gcn_feature_extractor_forward.7} parent=11 // pred_check_branch
        %239 = sbr.rel (%p237) target = $region32
      $region31: #{gcn_feature_extractor_forward.7} parent=11 // pred_region
        _
      $region32: #{gcn_feature_extractor_forward.7} parent=11 // pred_fallthru
        _
    $region12: #{gcn_feature_extractor_forward.7} parent=5 // pred_fallthru
      _
    %p240 = scmp.lt.s32.totalorder %s13, 40
    // Predicated region
    $region33: #{gcn_feature_extractor_forward.7} parent=5 // pred_check
      %p241 = pneg %p240
    $region34: #{gcn_feature_extractor_forward.7} parent=5 // pred_check_branch
      %243 = sbr.rel (%p241) target = $region36
    $region35: #{gcn_feature_extractor_forward.7} parent=5 // pred_region
      // Predicated region
      $region37: #{gcn_feature_extractor_forward.7} parent=35 // pred_check
        %p244 = pneg %p47
      $region38: #{gcn_feature_extractor_forward.7} parent=35 // pred_check_branch
        %246 = sbr.rel (%p244) target = $region40
      $region39: #{gcn_feature_extractor_forward.7} parent=35 // pred_region
        %s247 = smul.u32 8, %s20
        %p248 = scmp.lt.s32.totalorder %s21, 19
        %s249 = scalar_select %p248, %s21, 19
        %p250 = scmp.lt.s32.totalorder %s247, 15
        %s251 = scalar_select %p250, %s247, 15
        %s252 = smul.addr %s249, 16
        %s253 = sadd.s32 %s251, %s252
        %s254 = smul.addr %s253, 4
        %s255 = scalar_lea.vmem %s0, %s254
        %s256 = smul.u32 8, %s20
      $region40: #{gcn_feature_extractor_forward.7} parent=35 // pred_fallthru
        _
      // Predicated region
      $region41: #{gcn_feature_extractor_forward.7} parent=35 // pred_check
        %p257 = pneg %p73
      $region42: #{gcn_feature_extractor_forward.7} parent=35 // pred_check_branch
        %259 = sbr.rel (%p257) target = $region44
      $region43: #{gcn_feature_extractor_forward.7} parent=35 // pred_region
        %s260 = smul.u32 8, %s20
        %p261 = scmp.lt.s32.totalorder %s260, 15
        %s262 = scalar_select %p261, %s260, 15
        %s263 = smul.addr %s262, 8
        %s264 = scalar_lea.vmem %s1, %s263
        %s265 = smul.u32 8, %s20
      $region44: #{gcn_feature_extractor_forward.7} parent=35 // pred_fallthru
        _
    $region36: #{gcn_feature_extractor_forward.7} parent=5 // pred_fallthru
      _
    %p266 = scmp.le.s32.totalorder 1, %s13
    %p267 = scmp.lt.s32.totalorder %s13, 41
    %p268 = pnand %p266, %p267
    %p269 = pneg %p268
    // Predicated region
    $region45: #{gcn_feature_extractor_forward.7} parent=5 // pred_check
      _
    $region46: #{gcn_feature_extractor_forward.7} parent=5 // pred_check_branch
      %271 = sbr.rel (%p268) target = $region48
    $region47: #{gcn_feature_extractor_forward.7} parent=5 // pred_region
      %s272 = ssub.s32 %s13, 1
      %s273 = smul.u32 8, %s22
      %p274 = scmp.lt.s32.totalorder %s23, 19
      %s275 = scalar_select %p274, %s23, 19
      %p276 = scmp.lt.s32.totalorder %s273, 15
      %s277 = scalar_select %p276, %s273, 15
      %s278 = smul.addr %s275, 16
      %s279 = sadd.s32 %s277, %s278
      %s280 = smul.addr %s279, 4
      %s281 = scalar_lea.vmem %s0, %s280
      %p282 = pneg %p53
      %p283 = pneg %p50
      %s284 = smul.u32 8, %s22
      %p285 = scmp.lt.s32.totalorder %s284, 15
      %s286 = scalar_select %p285, %s284, 15
      %s287 = smul.addr %s286, 8
      %s288 = scalar_lea.vmem %s1, %s287
      %p289 = pneg %p79
      %p290 = pneg %p76
      %p291 = pneg %p100
      %p292 = pneg %p97
      %p293 = pneg %p121
      %p294 = pneg %p118
      %p295 = pneg %p142
      %p296 = pneg %p139
      %p297 = pneg %p163
      %p298 = pneg %p160
      %p299 = pneg %p184
      %p300 = pneg %p181
      %p301 = pneg %p210
      %p302 = pneg %p207
      %s303 = smul.u32 8, %s22
      %p304 = scmp.lt.s32.totalorder %s303, 15
      %s305 = scalar_select %p304, %s303, 15
      %s306 = smul.addr %s305, 8
      %s307 = scalar_lea.vmem %s7, %s306
      %s308 = smul.u32 8, %s22
      %p309 = scmp.lt.s32.totalorder %s23, 19
      %s310 = scalar_select %p309, %s23, 19
      %p311 = scmp.lt.s32.totalorder %s308, 15
      %s312 = scalar_select %p311, %s308, 15
      %s313 = smul.addr %s310, 16
      %s314 = sadd.s32 %s312, %s313
      %s315 = smul.addr %s314, 4
      %s316 = scalar_lea.vmem %s0, %s315
      %s317 = smul.u32 8, %s22
      %s318 = smul.u32 8, %s22
      %p319 = scmp.lt.s32.totalorder %s318, 15
      %s320 = scalar_select %p319, %s318, 15
      %s321 = smul.addr %s320, 8
      %s322 = scalar_lea.vmem %s1, %s321
      %s323 = smul.u32 8, %s22
      %s324 = smul.u32 8, %s22
      %p325 = scmp.lt.s32.totalorder %s324, 15
      %s326 = scalar_select %p325, %s324, 15
      %s327 = smul.addr %s326, 8
      %s328 = scalar_lea.vmem %s7, %s327
      %s329 = smul.u32 8, %s22
      %v331 = vld [vmem:[%s322] sm:$0xff]
      %v332 = vld [vmem:[%s322 + $0x8] sm:$0xff]
      %v333 = vld [vmem:[%s322 + $0x10] sm:$0xff]
      %v334 = vld [vmem:[%s322 + $0x18] sm:$0xff]
      %v335 = vld [vmem:[%s322 + $0x20] sm:$0xff]
      %v336 = vld [vmem:[%s322 + $0x28] sm:$0xff]
      %v337 = vld [vmem:[%s322 + $0x30] sm:$0xff]
      %v338 = vld [vmem:[%s322 + $0x38] sm:$0xff]
      %v339 = vpack.c.bf16 %v332, %v331
      %v340 = vpack.c.bf16 %v334, %v333
      %v341 = vpack.c.bf16 %v336, %v335
      %v342 = vpack.c.bf16 %v338, %v337
      %p343 = scmp.eq.s32.totalorder %s23, 0
      // Predicated region
      $region49: #{gcn_feature_extractor_forward.7} parent=47 // pred_check
        %p344 = pneg %p343
      $region50: #{gcn_feature_extractor_forward.7} parent=47 // pred_check_branch
        %346 = sbr.rel (%p344) target = $region52
      $region51: #{gcn_feature_extractor_forward.7} parent=47 // pred_region
        %v347 = vld [vmem:[%s2] sm:$0xf]
        %v348 = vld [vmem:[%s2 + $0x4] sm:$0xf]
        %v349 = vld [vmem:[%s4] sm:$0x1]
        %v351 = vlaneseq
        %v352 = vshrl.u32 %v351, 7
        %v353 = vsub.s32 0, %v352
        %v354 = vrot.slane %v349, %v353
        %v358 = vunpack.c.l.b16 %v347
        %v359 = vunpack.c.l.b16 %v348
        %v360 = vpack.c.b16 %v359, %v358
        %vm362 = vcmask 130048
        %v364 = vsel %vm362, %v339, 0
        %v367 = vsel %vm362, %v340, 0
        %v370 = vsel %vm362, %v341, 0
        %v373 = vsel %vm362, %v342, 0
        %375 = vmatprep.subr.bf16.mxu0 0
        %376 = vmatpush1.bf16.msra.mxu0 %v360
        %377 = vmatprep.subr.bf16.mxu0 0
        %378 = vmatpush1.bf16.msra.mxu0 0
        %379 = vmatprep.subr.bf16.mxu0 0
        %380 = vmatpush1.bf16.msra.mxu0 0
        %381 = vmatprep.subr.bf16.mxu0 0
        %382 = vmatpush1.bf16.msra.mxu0 0
        %383 = vmatprep.subr.bf16.mxu0 0
        %384 = vmatpush1.bf16.msra.mxu0 0
        %385 = vmatprep.subr.bf16.mxu0 0
        %386 = vmatpush1.bf16.msra.mxu0 0
        %387 = vmatprep.subr.bf16.mxu0 0
        %388 = vmatpush1.bf16.msra.mxu0 0
        %389 = vmatprep.subr.bf16.mxu0 0
        %390 = vmatpush1.bf16.msra.mxu0 0
        %391 = vmatprep.subr.bf16.mxu0 0
        %392 = vmatpush1.bf16.msra.mxu0 0
        %393 = vmatprep.subr.bf16.mxu0 0
        %394 = vmatpush1.bf16.msra.mxu0 0
        %395 = vmatprep.subr.bf16.mxu0 0
        %396 = vmatpush1.bf16.msra.mxu0 0
        %397 = vmatprep.subr.bf16.mxu0 0
        %398 = vmatpush1.bf16.msra.mxu0 0
        %399 = vmatprep.subr.bf16.mxu0 0
        %400 = vmatpush1.bf16.msra.mxu0 0
        %401 = vmatprep.subr.bf16.mxu0 0
        %402 = vmatpush1.bf16.msra.mxu0 0
        %403 = vmatprep.subr.bf16.mxu0 0
        %404 = vmatpush1.bf16.msra.mxu0 0
        %405 = vmatprep.subr.bf16.mxu0 0
        %406 = vmatpush1.bf16.msra.mxu0 0
        %407 = vmatprep.mubr.bf16.mxu0 0
        %408 = vmatmul.mubr.bf16.gmra.mrb[0].mxu0 %v364
        %v409 = vpop.f32.mrb[0].mxu0
        %v410 = vadd.f32 %v354, %v409
        %v411 = vpop.f32.mrb[0].mxu0
        %v412 = vpop.f32.mrb[0].mxu0
        %v413 = vadd.f32 %v354, %v412
        %v414 = vpop.f32.mrb[0].mxu0
        %415 = vmatprep.mubr.bf16.mxu0 0
        %416 = vmatmul.mubr.bf16.gmra.mrb[0].mxu0 %v367
        %v417 = vpop.f32.mrb[0].mxu0
        %v418 = vadd.f32 %v354, %v417
        %v419 = vpop.f32.mrb[0].mxu0
        %v420 = vpop.f32.mrb[0].mxu0
        %v421 = vadd.f32 %v354, %v420
        %v422 = vpop.f32.mrb[0].mxu0
        %423 = vmatprep.mubr.bf16.mxu0 0
        %424 = vmatmul.mubr.bf16.gmra.mrb[0].mxu0 %v370
        %v425 = vpop.f32.mrb[0].mxu0
        %v426 = vadd.f32 %v354, %v425
        %v427 = vpop.f32.mrb[0].mxu0
        %v428 = vpop.f32.mrb[0].mxu0
        %v429 = vadd.f32 %v354, %v428
        %v430 = vpop.f32.mrb[0].mxu0
        %431 = vmatprep.mubr.bf16.mxu0 0
        %432 = vmatmul.mubr.bf16.gmra.mrb[0].mxu0 %v373
        %v433 = vpop.f32.mrb[0].mxu0
        %v434 = vadd.f32 %v354, %v433
        %v435 = vpop.f32.mrb[0].mxu0
        %v436 = vpop.f32.mrb[0].mxu0
        %v437 = vadd.f32 %v354, %v436
        %v438 = vpop.f32.mrb[0].mxu0
        %439 = vdwg.mxu0
        %vm440 = vcmask 523264
        %441 = vst.msk [vmem:[#allocation2] sm:$0xff] %vm440, %v410
        %442 = vst.msk [vmem:[#allocation2 + $0x8] sm:$0xff] %vm440, %v413
        %443 = vst.msk [vmem:[#allocation2 + $0x10] sm:$0xff] %vm440, %v418
        %444 = vst.msk [vmem:[#allocation2 + $0x18] sm:$0xff] %vm440, %v421
        %445 = vst.msk [vmem:[#allocation2 + $0x20] sm:$0xff] %vm440, %v426
        %446 = vst.msk [vmem:[#allocation2 + $0x28] sm:$0xff] %vm440, %v429
        %447 = vst.msk [vmem:[#allocation2 + $0x30] sm:$0xff] %vm440, %v434
        %448 = vst.msk [vmem:[#allocation2 + $0x38] sm:$0xff] %vm440, %v437
      $region52: #{gcn_feature_extractor_forward.7} parent=47 // pred_fallthru
        _
      %v449 = vld [vmem:[%s316] sm:$0xf]
      %v450 = vld [vmem:[%s316 + $0x4] sm:$0xf]
      %v451 = vld [vmem:[%s316 + $0x8] sm:$0xf]
      %v452 = vld [vmem:[%s316 + $0xc] sm:$0xf]
      %v453 = vld [vmem:[%s316 + $0x10] sm:$0xf]
      %v454 = vld [vmem:[%s316 + $0x14] sm:$0xf]
      %v455 = vld [vmem:[%s316 + $0x18] sm:$0xf]
      %v456 = vld [vmem:[%s316 + $0x1c] sm:$0xf]
      %v457 = vunpack.c.l.bf16 %v449
      %v458 = vunpack.c.l.bf16 %v450
      %v459 = vunpack.c.l.bf16 %v451
      %v460 = vunpack.c.l.bf16 %v452
      %v461 = vunpack.c.l.bf16 %v453
      %v462 = vunpack.c.l.bf16 %v454
      %v463 = vunpack.c.l.bf16 %v455
      %v464 = vunpack.c.l.bf16 %v456
      %v465 = vsub.f32 %v457, %v331
      %v466 = vsub.f32 %v458, %v332
      %v467 = vsub.f32 %v459, %v333
      %v468 = vsub.f32 %v460, %v334
      %v469 = vsub.f32 %v461, %v335
      %v470 = vsub.f32 %v462, %v336
      %v471 = vsub.f32 %v463, %v337
      %v472 = vsub.f32 %v464, %v338
      %v473 = vpack.c.bf16 %v466, %v465
      %v474 = vpack.c.bf16 %v468, %v467
      %v475 = vpack.c.bf16 %v470, %v469
      %v476 = vpack.c.bf16 %v472, %v471
      %v477 = vld [vmem:[%s3] sm:$0xf]
      %v478 = vld [vmem:[%s3 + $0x4] sm:$0xf]
      %v479 = vld [vmem:[#allocation2] sm:$0xff]
      %v480 = vld [vmem:[#allocation2 + $0x8] sm:$0xff]
      %v481 = vld [vmem:[#allocation2 + $0x10] sm:$0xff]
      %v482 = vld [vmem:[#allocation2 + $0x18] sm:$0xff]
      %v483 = vld [vmem:[#allocation2 + $0x20] sm:$0xff]
      %v484 = vld [vmem:[#allocation2 + $0x28] sm:$0xff]
      %v485 = vld [vmem:[#allocation2 + $0x30] sm:$0xff]
      %v486 = vld [vmem:[#allocation2 + $0x38] sm:$0xff]
      %v489 = vunpack.c.l.b16 %v477
      %v490 = vunpack.c.l.b16 %v478
      %v491 = vpack.c.b16 %v490, %v489
      %vm493 = vcmask 130048
      %v495 = vsel %vm493, %v473, 0
      %v498 = vsel %vm493, %v474, 0
      %v501 = vsel %vm493, %v475, 0
      %v504 = vsel %vm493, %v476, 0
      %506 = vmatprep.subr.bf16.mxu0 0
      %507 = vmatpush1.bf16.msra.mxu0 %v491
      %508 = vmatprep.subr.bf16.mxu0 0
      %509 = vmatpush1.bf16.msra.mxu0 0
      %510 = vmatprep.subr.bf16.mxu0 0
      %511 = vmatpush1.bf16.msra.mxu0 0
      %512 = vmatprep.subr.bf16.mxu0 0
      %513 = vmatpush1.bf16.msra.mxu0 0
      %514 = vmatprep.subr.bf16.mxu0 0
      %515 = vmatpush1.bf16.msra.mxu0 0
      %516 = vmatprep.subr.bf16.mxu0 0
      %517 = vmatpush1.bf16.msra.mxu0 0
      %518 = vmatprep.subr.bf16.mxu0 0
      %519 = vmatpush1.bf16.msra.mxu0 0
      %520 = vmatprep.subr.bf16.mxu0 0
      %521 = vmatpush1.bf16.msra.mxu0 0
      %522 = vmatprep.subr.bf16.mxu0 0
      %523 = vmatpush1.bf16.msra.mxu0 0
      %524 = vmatprep.subr.bf16.mxu0 0
      %525 = vmatpush1.bf16.msra.mxu0 0
      %526 = vmatprep.subr.bf16.mxu0 0
      %527 = vmatpush1.bf16.msra.mxu0 0
      %528 = vmatprep.subr.bf16.mxu0 0
      %529 = vmatpush1.bf16.msra.mxu0 0
      %530 = vmatprep.subr.bf16.mxu0 0
      %531 = vmatpush1.bf16.msra.mxu0 0
      %532 = vmatprep.subr.bf16.mxu0 0
      %533 = vmatpush1.bf16.msra.mxu0 0
      %534 = vmatprep.subr.bf16.mxu0 0
      %535 = vmatpush1.bf16.msra.mxu0 0
      %536 = vmatprep.subr.bf16.mxu0 0
      %537 = vmatpush1.bf16.msra.mxu0 0
      %538 = vmatprep.mubr.bf16.mxu0 0
      %539 = vmatmul.mubr.bf16.gmra.mrb[0].mxu0 %v495
      %v540 = vpop.f32.mrb[0].mxu0
      %v541 = vadd.f32 %v479, %v540
      %v542 = vpop.f32.mrb[0].mxu0
      %v543 = vpop.f32.mrb[0].mxu0
      %v544 = vadd.f32 %v480, %v543
      %v545 = vpop.f32.mrb[0].mxu0
      %546 = vmatprep.mubr.bf16.mxu0 0
      %547 = vmatmul.mubr.bf16.gmra.mrb[0].mxu0 %v498
      %v548 = vpop.f32.mrb[0].mxu0
      %v549 = vadd.f32 %v481, %v548
      %v550 = vpop.f32.mrb[0].mxu0
      %v551 = vpop.f32.mrb[0].mxu0
      %v552 = vadd.f32 %v482, %v551
      %v553 = vpop.f32.mrb[0].mxu0
      %554 = vmatprep.mubr.bf16.mxu0 0
      %555 = vmatmul.mubr.bf16.gmra.mrb[0].mxu0 %v501
      %v556 = vpop.f32.mrb[0].mxu0
      %v557 = vadd.f32 %v483, %v556
      %v558 = vpop.f32.mrb[0].mxu0
      %v559 = vpop.f32.mrb[0].mxu0
      %v560 = vadd.f32 %v484, %v559
      %v561 = vpop.f32.mrb[0].mxu0
      %562 = vmatprep.mubr.bf16.mxu0 0
      %563 = vmatmul.mubr.bf16.gmra.mrb[0].mxu0 %v504
      %v564 = vpop.f32.mrb[0].mxu0
      %v565 = vadd.f32 %v485, %v564
      %v566 = vpop.f32.mrb[0].mxu0
      %v567 = vpop.f32.mrb[0].mxu0
      %v568 = vadd.f32 %v486, %v567
      %v569 = vpop.f32.mrb[0].mxu0
      %570 = vdwg.mxu0
      %v571 = vmax.f32 %v541, 0.0
      %v572 = vmax.f32 %v544, 0.0
      %v573 = vmax.f32 %v549, 0.0
      %v574 = vmax.f32 %v552, 0.0
      %v575 = vmax.f32 %v557, 0.0
      %v576 = vmax.f32 %v560, 0.0
      %v577 = vmax.f32 %v565, 0.0
      %v578 = vmax.f32 %v568, 0.0
      %v579 = vpack.c.bf16 %v572, %v571
      %v580 = vpack.c.bf16 %v574, %v573
      %v581 = vpack.c.bf16 %v576, %v575
      %v582 = vpack.c.bf16 %v578, %v577
      %v583 = vld [vmem:[%s5] sm:$0xf]
      %v584 = vld [vmem:[%s5 + $0x4] sm:$0xf]
      %v585 = vld [vmem:[%s5 + $0x8] sm:$0xf]
      %v586 = vld [vmem:[%s5 + $0xc] sm:$0xf]
      %v587 = vld [vmem:[%s5 + $0x10] sm:$0xf]
      %v588 = vld [vmem:[%s5 + $0x14] sm:$0xf]
      %v589 = vld [vmem:[%s5 + $0x18] sm:$0xf]
      %v590 = vld [vmem:[%s5 + $0x1c] sm:$0xf]
      %v591 = vld [vmem:[%s6] sm:$0x1]
      %v593 = vlaneseq
      %v594 = vshrl.u32 %v593, 7
      %v595 = vsub.s32 0, %v594
      %v596 = vrot.slane %v591, %v595
      %v606 = vunpack.c.l.b16 %v583
      %v607 = vunpack.c.l.b16 %v584
      %v608 = vunpack.c.l.b16 %v585
      %v609 = vunpack.c.l.b16 %v586
      %v610 = vunpack.c.l.b16 %v587
      %v611 = vunpack.c.l.b16 %v588
      %v612 = vunpack.c.l.b16 %v589
      %v613 = vunpack.c.l.b16 %v590
      %v614 = vpack.c.b16 %v607, %v606
      %v615 = vpack.c.b16 %v609, %v608
      %v616 = vpack.c.b16 %v611, %v610
      %v617 = vpack.c.b16 %v613, %v612
      %vm622 = vcmask 523264
      %v624 = vsel %vm622, %v579, 0
      %v627 = vsel %vm622, %v580, 0
      %v630 = vsel %vm622, %v581, 0
      %v633 = vsel %vm622, %v582, 0
      %635 = vmatprep.subr.bf16.mxu0 0
      %636 = vmatpush1.bf16.msra.mxu0 %v614
      %637 = vmatprep.subr.bf16.mxu0 0
      %638 = vmatpush1.bf16.msra.mxu0 %v615
      %639 = vmatprep.subr.bf16.mxu0 0
      %640 = vmatpush1.bf16.msra.mxu0 %v616
      %641 = vmatprep.subr.bf16.mxu0 0
      %642 = vmatpush1.bf16.msra.mxu0 %v617
      %643 = vmatprep.subr.bf16.mxu0 0
      %644 = vmatpush1.bf16.msra.mxu0 0
      %645 = vmatprep.subr.bf16.mxu0 0
      %646 = vmatpush1.bf16.msra.mxu0 0
      %647 = vmatprep.subr.bf16.mxu0 0
      %648 = vmatpush1.bf16.msra.mxu0 0
      %649 = vmatprep.subr.bf16.mxu0 0
      %650 = vmatpush1.bf16.msra.mxu0 0
      %651 = vmatprep.subr.bf16.mxu0 0
      %652 = vmatpush1.bf16.msra.mxu0 0
      %653 = vmatprep.subr.bf16.mxu0 0
      %654 = vmatpush1.bf16.msra.mxu0 0
      %655 = vmatprep.subr.bf16.mxu0 0
      %656 = vmatpush1.bf16.msra.mxu0 0
      %657 = vmatprep.subr.bf16.mxu0 0
      %658 = vmatpush1.bf16.msra.mxu0 0
      %659 = vmatprep.subr.bf16.mxu0 0
      %660 = vmatpush1.bf16.msra.mxu0 0
      %661 = vmatprep.subr.bf16.mxu0 0
      %662 = vmatpush1.bf16.msra.mxu0 0
      %663 = vmatprep.subr.bf16.mxu0 0
      %664 = vmatpush1.bf16.msra.mxu0 0
      %665 = vmatprep.subr.bf16.mxu0 0
      %666 = vmatpush1.bf16.msra.mxu0 0
      %667 = vmatprep.mubr.bf16.mxu0 0
      %668 = vmatmul.mubr.bf16.gmra.mrb[0].mxu0 %v624
      %v669 = vpop.f32.mrb[0].mxu0
      %v670 = vadd.f32 %v596, %v669
      %v671 = vpop.f32.mrb[0].mxu0
      %v672 = vpop.f32.mrb[0].mxu0
      %v673 = vadd.f32 %v596, %v672
      %v674 = vpop.f32.mrb[0].mxu0
      %675 = vmatprep.mubr.bf16.mxu0 0
      %676 = vmatmul.mubr.bf16.gmra.mrb[0].mxu0 %v627
      %v677 = vpop.f32.mrb[0].mxu0
      %v678 = vadd.f32 %v596, %v677
      %v679 = vpop.f32.mrb[0].mxu0
      %v680 = vpop.f32.mrb[0].mxu0
      %v681 = vadd.f32 %v596, %v680
      %v682 = vpop.f32.mrb[0].mxu0
      %683 = vmatprep.mubr.bf16.mxu0 0
      %684 = vmatmul.mubr.bf16.gmra.mrb[0].mxu0 %v630
      %v685 = vpop.f32.mrb[0].mxu0
      %v686 = vadd.f32 %v596, %v685
      %v687 = vpop.f32.mrb[0].mxu0
      %v688 = vpop.f32.mrb[0].mxu0
      %v689 = vadd.f32 %v596, %v688
      %v690 = vpop.f32.mrb[0].mxu0
      %691 = vmatprep.mubr.bf16.mxu0 0
      %692 = vmatmul.mubr.bf16.gmra.mrb[0].mxu0 %v633
      %v693 = vpop.f32.mrb[0].mxu0
      %v694 = vadd.f32 %v596, %v693
      %v695 = vpop.f32.mrb[0].mxu0
      %v696 = vpop.f32.mrb[0].mxu0
      %v697 = vadd.f32 %v596, %v696
      %v698 = vpop.f32.mrb[0].mxu0
      %699 = vdwg.mxu0
      %v700 = vmax.f32 %v670, 0.0
      %v701 = vmax.f32 %v673, 0.0
      %v702 = vmax.f32 %v678, 0.0
      %v703 = vmax.f32 %v681, 0.0
      %v704 = vmax.f32 %v686, 0.0
      %v705 = vmax.f32 %v689, 0.0
      %v706 = vmax.f32 %v694, 0.0
      %v707 = vmax.f32 %v697, 0.0
      // Predicated region
      $region53: #{gcn_feature_extractor_forward.7} parent=47 // pred_check
        %p708 = pneg %p343
      $region54: #{gcn_feature_extractor_forward.7} parent=47 // pred_check_branch
        %710 = sbr.rel (%p708) target = $region56
      $region55: #{gcn_feature_extractor_forward.7} parent=47 // pred_region
        %711 = vst.msk [vmem:[#allocation3] sm:$0xff] %vm622, %v700
        %712 = vst.msk [vmem:[#allocation3 + $0x8] sm:$0xff] %vm622, %v701
        %713 = vst.msk [vmem:[#allocation3 + $0x10] sm:$0xff] %vm622, %v702
        %714 = vst.msk [vmem:[#allocation3 + $0x18] sm:$0xff] %vm622, %v703
        %715 = vst.msk [vmem:[#allocation3 + $0x20] sm:$0xff] %vm622, %v704
        %716 = vst.msk [vmem:[#allocation3 + $0x28] sm:$0xff] %vm622, %v705
        %717 = vst.msk [vmem:[#allocation3 + $0x30] sm:$0xff] %vm622, %v706
        %718 = vst.msk [vmem:[#allocation3 + $0x38] sm:$0xff] %vm622, %v707
      $region56: #{gcn_feature_extractor_forward.7} parent=47 // pred_fallthru
        _
      %p719 = scmp.gt.s32.totalorder %s23, 0
      // Predicated region
      $region57: #{gcn_feature_extractor_forward.7} parent=47 // pred_check
        %p720 = pneg %p719
      $region58: #{gcn_feature_extractor_forward.7} parent=47 // pred_check_branch
        %722 = sbr.rel (%p720) target = $region60
      $region59: #{gcn_feature_extractor_forward.7} parent=47 // pred_region
        %v723 = vld [vmem:[#allocation3] sm:$0xff]
        %v724 = vld [vmem:[#allocation3 + $0x8] sm:$0xff]
        %v725 = vld [vmem:[#allocation3 + $0x10] sm:$0xff]
        %v726 = vld [vmem:[#allocation3 + $0x18] sm:$0xff]
        %v727 = vld [vmem:[#allocation3 + $0x20] sm:$0xff]
        %v728 = vld [vmem:[#allocation3 + $0x28] sm:$0xff]
        %v729 = vld [vmem:[#allocation3 + $0x30] sm:$0xff]
        %v730 = vld [vmem:[#allocation3 + $0x38] sm:$0xff]
        %v731 = vmax.f32 %v723, %v700
        %v732 = vmax.f32 %v724, %v701
        %v733 = vmax.f32 %v725, %v702
        %v734 = vmax.f32 %v726, %v703
        %v735 = vmax.f32 %v727, %v704
        %v736 = vmax.f32 %v728, %v705
        %v737 = vmax.f32 %v729, %v706
        %v738 = vmax.f32 %v730, %v707
        %739 = vst.msk [vmem:[#allocation3] sm:$0xff] %vm622, %v731
        %740 = vst.msk [vmem:[#allocation3 + $0x8] sm:$0xff] %vm622, %v732
        %741 = vst.msk [vmem:[#allocation3 + $0x10] sm:$0xff] %vm622, %v733
        %742 = vst.msk [vmem:[#allocation3 + $0x18] sm:$0xff] %vm622, %v734
        %743 = vst.msk [vmem:[#allocation3 + $0x20] sm:$0xff] %vm622, %v735
        %744 = vst.msk [vmem:[#allocation3 + $0x28] sm:$0xff] %vm622, %v736
        %745 = vst.msk [vmem:[#allocation3 + $0x30] sm:$0xff] %vm622, %v737
        %746 = vst.msk [vmem:[#allocation3 + $0x38] sm:$0xff] %vm622, %v738
      $region60: #{gcn_feature_extractor_forward.7} parent=47 // pred_fallthru
        _
      %p747 = scmp.eq.s32.totalorder %s23, 19
      // Predicated region
      $region61: #{gcn_feature_extractor_forward.7} parent=47 // pred_check
        %p748 = pneg %p747
      $region62: #{gcn_feature_extractor_forward.7} parent=47 // pred_check_branch
        %750 = sbr.rel (%p748) target = $region64
      $region63: #{gcn_feature_extractor_forward.7} parent=47 // pred_region
        %v751 = vld [vmem:[#allocation3] sm:$0xff]
        %v752 = vld [vmem:[#allocation3 + $0x8] sm:$0xff]
        %v753 = vld [vmem:[#allocation3 + $0x10] sm:$0xff]
        %v754 = vld [vmem:[#allocation3 + $0x18] sm:$0xff]
        %v755 = vld [vmem:[#allocation3 + $0x20] sm:$0xff]
        %v756 = vld [vmem:[#allocation3 + $0x28] sm:$0xff]
        %v757 = vld [vmem:[#allocation3 + $0x30] sm:$0xff]
        %v758 = vld [vmem:[#allocation3 + $0x38] sm:$0xff]
        %759 = vst.msk [vmem:[%s328] sm:$0xff] %vm622, %v751
        %760 = vst.msk [vmem:[%s328 + $0x8] sm:$0xff] %vm622, %v752
        %761 = vst.msk [vmem:[%s328 + $0x10] sm:$0xff] %vm622, %v753
        %762 = vst.msk [vmem:[%s328 + $0x18] sm:$0xff] %vm622, %v754
        %763 = vst.msk [vmem:[%s328 + $0x20] sm:$0xff] %vm622, %v755
        %764 = vst.msk [vmem:[%s328 + $0x28] sm:$0xff] %vm622, %v756
        %765 = vst.msk [vmem:[%s328 + $0x30] sm:$0xff] %vm622, %v757
        %766 = vst.msk [vmem:[%s328 + $0x38] sm:$0xff] %vm622, %v758
      $region64: #{gcn_feature_extractor_forward.7} parent=47 // pred_fallthru
        _
      %s767 = smul.u32 8, %s22
      %p768 = scmp.lt.s32.totalorder %s767, 15
      %s769 = scalar_select %p768, %s767, 15
      %s770 = smul.addr %s769, 8
      %s771 = scalar_lea.vmem %s7, %s770
      // Predicated region
      $region65: #{gcn_feature_extractor_forward.7} parent=47 // pred_check
        %p772 = pneg %p207
      $region66: #{gcn_feature_extractor_forward.7} parent=47 // pred_check_branch
        %774 = sbr.rel (%p772) target = $region68
      $region67: #{gcn_feature_extractor_forward.7} parent=47 // pred_region
        %s775 = smul.u32 8, %s22
      $region68: #{gcn_feature_extractor_forward.7} parent=47 // pred_fallthru
        _
    $region48: #{gcn_feature_extractor_forward.7} parent=5 // pred_fallthru
      _
    %p776 = scmp.le.s32.totalorder 2, %s13
    // Predicated region
    $region69: #{gcn_feature_extractor_forward.7} parent=5 // pred_check
      %p777 = pneg %p776
    $region70: #{gcn_feature_extractor_forward.7} parent=5 // pred_check_branch
      %779 = sbr.rel (%p777) target = $region72
    $region71: #{gcn_feature_extractor_forward.7} parent=5 // pred_region
      %s780 = ssub.s32 %s13, 2
      // Predicated region
      $region73: #{gcn_feature_extractor_forward.7} parent=71 // pred_check
        %p781 = pneg %p213
      $region74: #{gcn_feature_extractor_forward.7} parent=71 // pred_check_branch
        %783 = sbr.rel (%p781) target = $region76
      $region75: #{gcn_feature_extractor_forward.7} parent=71 // pred_region
        %s784 = smul.u32 8, %s24
        %p785 = scmp.lt.s32.totalorder %s784, 15
        %s786 = scalar_select %p785, %s784, 15
        %s787 = smul.addr %s786, 8
        %s788 = scalar_lea.vmem %s7, %s787
      $region76: #{gcn_feature_extractor_forward.7} parent=71 // pred_fallthru
        _
    $region72: #{gcn_feature_extractor_forward.7} parent=5 // pred_fallthru
      _
  $region6: #{gcn_feature_extractor_forward.7} parent=0 // loop_footer
    %s17 = sadd.s32 1, %s13
  $region7: #{gcn_feature_extractor_forward.7} parent=0 // loop_footer_branch
    %12 = sbr.rel target = $region3
  $region8: #{gcn_feature_extractor_forward.7} parent=0 // loop_exit
    _

// kernel: gcn_feature_extractor_forward.9
$region0: #{gcn_feature_extractor_forward.9}
  #allocation0 [shape = 'u32[]', space=smem, size = 0x4, offset = 0x4, fixed_abs, tag = 'smem constant byte address 0x4 - core index']
  #allocation1 [shape = 'u32[144,128]{1,0:T(1,128)}', space=vmem, size = 0x12000, scoped, tag = 'internal scratch']
  #allocation2 [shape = 'f32[64,64]{1,0:T(8,128)}', space=vmem, size = 0x8000, scoped, tag = 'scratch operand']
  #allocation3 [shape = 'f32[64,64]{1,0:T(8,128)}', space=vmem, size = 0x8000, scoped, tag = 'scratch operand']
  %s0 = inlined_call_operand.vmem [shape: bf16[12,128,64], index: 0, kind: input, shape index: {}]
  %s1 = inlined_call_operand.vmem [shape: f32[128,64], index: 1, kind: input, shape index: {}]
  %s2 = inlined_call_operand.vmem [shape: bf16[64,64], index: 2, kind: input, shape index: {}]
  %s3 = inlined_call_operand.vmem [shape: bf16[64,64], index: 3, kind: input, shape index: {}]
  %s4 = inlined_call_operand.vmem [shape: f32[1,64], index: 4, kind: input, shape index: {}]
  %s5 = inlined_call_operand.vmem [shape: f32[128,64], index: 5, kind: output, shape index: {}]
  %s6 = sld [smem:[#allocation0]]
  $region69: #{gcn_feature_extractor_forward.9} parent=0
    _
  %s8 = ssub.s32 1, %s6
  %s9 = scalar_select 0, %s8, %s6
  loop: start=0, step=1, limit=26
  $region2: #{gcn_feature_extractor_forward.9} parent=0 // loop_pre_header
    _
  $region3: #{gcn_feature_extractor_forward.9} parent=0 // loop_header
    %s11 = sphi 0, %s15
    %p12 = scmp.ge.s32.totalorder %s11, 26
    %s18 = sphi 0, %s30
    %s19 = sphi 0, %s26
    %s20 = sphi 0, %s18
    %s21 = sphi 0, %s19
    %s22 = sphi 0, %s20
    %s23 = sphi 0, %s21
    %s35 = sphi 0, %s37
    %s38 = sphi 0, %s35
    %s39 = sphi 0, %s38
    %s55 = sphi 0, %s39
    %s61 = sphi 0, %s63
    %s64 = sphi 0, %s61
    %s65 = sphi 0, %s64
    %s81 = sphi 0, %s65
    %s85 = sphi 0, %s85
    %s87 = sphi 0, %s85
    %s88 = sphi 0, %s87
    %s102 = sphi 0, %s88
    %s106 = sphi 0, %s106
    %s108 = sphi 0, %s106
    %s109 = sphi 0, %s108
    %s123 = sphi 0, %s109
    %s127 = sphi 0, %s127
    %s129 = sphi 0, %s127
    %s130 = sphi 0, %s129
    %s144 = sphi 0, %s130
    %s150 = sphi 0, %s152
    %s153 = sphi 0, %s150
    %s154 = sphi 0, %s153
    %s170 = sphi 0, %s154
  $region4: #{gcn_feature_extractor_forward.9} parent=0 // loop_header_branch
    %14 = sbr.rel (%p12) target = $region8
  $region5: #{gcn_feature_extractor_forward.9} parent=0 // loop_body
    %s16 = ssub.s32 %s11, 1
    %s17 = ssub.s32 %s11, 2
    %s24 = sadd.s32 1, %s19
    %p25 = scmp.ge.s32.totalorder %s24, 12
    %s26 = scalar_select %p25, 0, %s24
    %s27 = sadd.s32 1, %s18
    %s28 = scalar_select %p25, %s27, %s18
    %p29 = scmp.ge.s32.totalorder %s28, 2
    %s30 = scalar_select %p29, 0, %s28
    %s31 = ssub.s32 %s19, %s26
    %s32 = ssub.s32 %s18, %s30
    %s33 = sor.u32 %s31, %s32
    %p34 = scmp.eq.s32.totalorder %s33, 0
    %s36 = sadd.s32 %s35, 1
    %s37 = scalar_select %p34, %s35, %s36
    %p40 = pneg %p34
    %p41 = scmp.eq.s32.totalorder %s11, 23
    %p42 = por %p40, %p41
    %p43 = scmp.ne.s32.totalorder %s35, %s38
    %p44 = scmp.eq.s32.totalorder %s11, 0
    %p45 = por %p43, %p44
    %p46 = scmp.ne.s32.totalorder %s35, %s38
    %p47 = scmp.eq.s32.totalorder %s16, 23
    %p48 = por %p46, %p47
    %p49 = scmp.ne.s32.totalorder %s38, %s39
    %p50 = scmp.eq.s32.totalorder %s16, 0
    %p51 = por %p49, %p50
    %p52 = scmp.ne.s32.totalorder %s38, %s39
    %p53 = scmp.eq.s32.totalorder %s17, 23
    %p54 = por %p52, %p53
    %p56 = scmp.ne.s32.totalorder %s39, %s55
    %p57 = scmp.eq.s32.totalorder %s17, 0
    %p58 = por %p56, %p57
    %s59 = ssub.s32 %s18, %s30
    %p60 = scmp.eq.s32.totalorder %s59, 0
    %s62 = sadd.s32 %s61, 1
    %s63 = scalar_select %p60, %s61, %s62
    %p66 = pneg %p60
    %p67 = scmp.eq.s32.totalorder %s11, 23
    %p68 = por %p66, %p67
    %p69 = scmp.ne.s32.totalorder %s61, %s64
    %p70 = scmp.eq.s32.totalorder %s11, 0
    %p71 = por %p69, %p70
    %p72 = scmp.ne.s32.totalorder %s61, %s64
    %p73 = scmp.eq.s32.totalorder %s16, 23
    %p74 = por %p72, %p73
    %p75 = scmp.ne.s32.totalorder %s64, %s65
    %p76 = scmp.eq.s32.totalorder %s16, 0
    %p77 = por %p75, %p76
    %p78 = scmp.ne.s32.totalorder %s64, %s65
    %p79 = scmp.eq.s32.totalorder %s17, 23
    %p80 = por %p78, %p79
    %p82 = scmp.ne.s32.totalorder %s65, %s81
    %p83 = scmp.eq.s32.totalorder %s17, 0
    %p84 = por %p82, %p83
    %s86 = sadd.s32 %s85, 1
    %p89 = scmp.eq.s32.totalorder %s11, 23
    %p90 = scmp.ne.s32.totalorder %s85, %s87
    %p91 = scmp.eq.s32.totalorder %s11, 0
    %p92 = por %p90, %p91
    %p93 = scmp.ne.s32.totalorder %s85, %s87
    %p94 = scmp.eq.s32.totalorder %s16, 23
    %p95 = por %p93, %p94
    %p96 = scmp.ne.s32.totalorder %s87, %s88
    %p97 = scmp.eq.s32.totalorder %s16, 0
    %p98 = por %p96, %p97
    %p99 = scmp.ne.s32.totalorder %s87, %s88
    %p100 = scmp.eq.s32.totalorder %s17, 23
    %p101 = por %p99, %p100
    %p103 = scmp.ne.s32.totalorder %s88, %s102
    %p104 = scmp.eq.s32.totalorder %s17, 0
    %p105 = por %p103, %p104
    %s107 = sadd.s32 %s106, 1
    %p110 = scmp.eq.s32.totalorder %s11, 23
    %p111 = scmp.ne.s32.totalorder %s106, %s108
    %p112 = scmp.eq.s32.totalorder %s11, 0
    %p113 = por %p111, %p112
    %p114 = scmp.ne.s32.totalorder %s106, %s108
    %p115 = scmp.eq.s32.totalorder %s16, 23
    %p116 = por %p114, %p115
    %p117 = scmp.ne.s32.totalorder %s108, %s109
    %p118 = scmp.eq.s32.totalorder %s16, 0
    %p119 = por %p117, %p118
    %p120 = scmp.ne.s32.totalorder %s108, %s109
    %p121 = scmp.eq.s32.totalorder %s17, 23
    %p122 = por %p120, %p121
    %p124 = scmp.ne.s32.totalorder %s109, %s123
    %p125 = scmp.eq.s32.totalorder %s17, 0
    %p126 = por %p124, %p125
    %s128 = sadd.s32 %s127, 1
    %p131 = scmp.eq.s32.totalorder %s11, 23
    %p132 = scmp.ne.s32.totalorder %s127, %s129
    %p133 = scmp.eq.s32.totalorder %s11, 0
    %p134 = por %p132, %p133
    %p135 = scmp.ne.s32.totalorder %s127, %s129
    %p136 = scmp.eq.s32.totalorder %s16, 23
    %p137 = por %p135, %p136
    %p138 = scmp.ne.s32.totalorder %s129, %s130
    %p139 = scmp.eq.s32.totalorder %s16, 0
    %p140 = por %p138, %p139
    %p141 = scmp.ne.s32.totalorder %s129, %s130
    %p142 = scmp.eq.s32.totalorder %s17, 23
    %p143 = por %p141, %p142
    %p145 = scmp.ne.s32.totalorder %s130, %s144
    %p146 = scmp.eq.s32.totalorder %s17, 0
    %p147 = por %p145, %p146
    %s148 = ssub.s32 %s18, %s30
    %p149 = scmp.eq.s32.totalorder %s148, 0
    %s151 = sadd.s32 %s150, 1
    %s152 = scalar_select %p149, %s150, %s151
    %p155 = pneg %p149
    %p156 = scmp.eq.s32.totalorder %s11, 23
    %p157 = por %p155, %p156
    %p158 = scmp.ne.s32.totalorder %s150, %s153
    %p159 = scmp.eq.s32.totalorder %s11, 0
    %p160 = por %p158, %p159
    %p161 = scmp.ne.s32.totalorder %s150, %s153
    %p162 = scmp.eq.s32.totalorder %s16, 23
    %p163 = por %p161, %p162
    %p164 = scmp.ne.s32.totalorder %s153, %s154
    %p165 = scmp.eq.s32.totalorder %s16, 0
    %p166 = por %p164, %p165
    %p167 = scmp.ne.s32.totalorder %s153, %s154
    %p168 = scmp.eq.s32.totalorder %s17, 23
    %p169 = por %p167, %p168
    %p171 = scmp.ne.s32.totalorder %s154, %s170
    %p172 = scmp.eq.s32.totalorder %s17, 0
    %p173 = por %p171, %p172
    %p174 = scmp.le.s32.totalorder 1, %s11
    %p175 = scmp.lt.s32.totalorder %s11, 25
    %p176 = pnand %p174, %p175
    %p177 = pneg %p176
    // Predicated region
    $region9: #{gcn_feature_extractor_forward.9} parent=5 // pred_check
      _
    $region10: #{gcn_feature_extractor_forward.9} parent=5 // pred_check_branch
      %179 = sbr.rel (%p176) target = $region12
    $region11: #{gcn_feature_extractor_forward.9} parent=5 // pred_region
      %s180 = ssub.s32 %s11, 1
      // Predicated region
      $region13: #{gcn_feature_extractor_forward.9} parent=11 // pred_check
        %p181 = pneg %p98
      $region14: #{gcn_feature_extractor_forward.9} parent=11 // pred_check_branch
        %183 = sbr.rel (%p181) target = $region16
      $region15: #{gcn_feature_extractor_forward.9} parent=11 // pred_region
        _
      $region16: #{gcn_feature_extractor_forward.9} parent=11 // pred_fallthru
        _
      // Predicated region
      $region17: #{gcn_feature_extractor_forward.9} parent=11 // pred_check
        %p184 = pneg %p119
      $region18: #{gcn_feature_extractor_forward.9} parent=11 // pred_check_branch
        %186 = sbr.rel (%p184) target = $region20
      $region19: #{gcn_feature_extractor_forward.9} parent=11 // pred_region
        _
      $region20: #{gcn_feature_extractor_forward.9} parent=11 // pred_fallthru
        _
      // Predicated region
      $region21: #{gcn_feature_extractor_forward.9} parent=11 // pred_check
        %p187 = pneg %p140
      $region22: #{gcn_feature_extractor_forward.9} parent=11 // pred_check_branch
        %189 = sbr.rel (%p187) target = $region24
      $region23: #{gcn_feature_extractor_forward.9} parent=11 // pred_region
        _
      $region24: #{gcn_feature_extractor_forward.9} parent=11 // pred_fallthru
        _
    $region12: #{gcn_feature_extractor_forward.9} parent=5 // pred_fallthru
      _
    %p190 = scmp.lt.s32.totalorder %s11, 24
    // Predicated region
    $region25: #{gcn_feature_extractor_forward.9} parent=5 // pred_check
      %p191 = pneg %p190
    $region26: #{gcn_feature_extractor_forward.9} parent=5 // pred_check_branch
      %193 = sbr.rel (%p191) target = $region28
    $region27: #{gcn_feature_extractor_forward.9} parent=5 // pred_region
      // Predicated region
      $region29: #{gcn_feature_extractor_forward.9} parent=27 // pred_check
        %p194 = pneg %p45
      $region30: #{gcn_feature_extractor_forward.9} parent=27 // pred_check_branch
        %196 = sbr.rel (%p194) target = $region32
      $region31: #{gcn_feature_extractor_forward.9} parent=27 // pred_region
        %s197 = smul.u32 8, %s18
        %p198 = scmp.lt.s32.totalorder %s19, 11
        %s199 = scalar_select %p198, %s19, 11
        %p200 = scmp.lt.s32.totalorder %s197, 15
        %s201 = scalar_select %p200, %s197, 15
        %s202 = smul.addr %s199, 16
        %s203 = sadd.s32 %s201, %s202
        %s204 = smul.addr %s203, 4
        %s205 = scalar_lea.vmem %s0, %s204
        %s206 = smul.u32 8, %s18
      $region32: #{gcn_feature_extractor_forward.9} parent=27 // pred_fallthru
        _
      // Predicated region
      $region33: #{gcn_feature_extractor_forward.9} parent=27 // pred_check
        %p207 = pneg %p71
      $region34: #{gcn_feature_extractor_forward.9} parent=27 // pred_check_branch
        %209 = sbr.rel (%p207) target = $region36
      $region35: #{gcn_feature_extractor_forward.9} parent=27 // pred_region
        %s210 = smul.u32 8, %s18
        %p211 = scmp.lt.s32.totalorder %s210, 15
        %s212 = scalar_select %p211, %s210, 15
        %s213 = smul.addr %s212, 8
        %s214 = scalar_lea.vmem %s1, %s213
        %s215 = smul.u32 8, %s18
      $region36: #{gcn_feature_extractor_forward.9} parent=27 // pred_fallthru
        _
    $region28: #{gcn_feature_extractor_forward.9} parent=5 // pred_fallthru
      _
    %p216 = scmp.le.s32.totalorder 1, %s11
    %p217 = scmp.lt.s32.totalorder %s11, 25
    %p218 = pnand %p216, %p217
    %p219 = pneg %p218
    // Predicated region
    $region37: #{gcn_feature_extractor_forward.9} parent=5 // pred_check
      _
    $region38: #{gcn_feature_extractor_forward.9} parent=5 // pred_check_branch
      %221 = sbr.rel (%p218) target = $region40
    $region39: #{gcn_feature_extractor_forward.9} parent=5 // pred_region
      %s222 = ssub.s32 %s11, 1
      %s223 = smul.u32 8, %s20
      %p224 = scmp.lt.s32.totalorder %s21, 11
      %s225 = scalar_select %p224, %s21, 11
      %p226 = scmp.lt.s32.totalorder %s223, 15
      %s227 = scalar_select %p226, %s223, 15
      %s228 = smul.addr %s225, 16
      %s229 = sadd.s32 %s227, %s228
      %s230 = smul.addr %s229, 4
      %s231 = scalar_lea.vmem %s0, %s230
      %p232 = pneg %p51
      %p233 = pneg %p48
      %s234 = smul.u32 8, %s20
      %p235 = scmp.lt.s32.totalorder %s234, 15
      %s236 = scalar_select %p235, %s234, 15
      %s237 = smul.addr %s236, 8
      %s238 = scalar_lea.vmem %s1, %s237
      %p239 = pneg %p77
      %p240 = pneg %p74
      %p241 = pneg %p98
      %p242 = pneg %p95
      %p243 = pneg %p119
      %p244 = pneg %p116
      %p245 = pneg %p140
      %p246 = pneg %p137
      %p247 = pneg %p166
      %p248 = pneg %p163
      %s249 = smul.u32 8, %s20
      %p250 = scmp.lt.s32.totalorder %s249, 15
      %s251 = scalar_select %p250, %s249, 15
      %s252 = smul.addr %s251, 8
      %s253 = scalar_lea.vmem %s5, %s252
      %s254 = smul.u32 8, %s20
      %p255 = scmp.lt.s32.totalorder %s21, 11
      %s256 = scalar_select %p255, %s21, 11
      %p257 = scmp.lt.s32.totalorder %s254, 15
      %s258 = scalar_select %p257, %s254, 15
      %s259 = smul.addr %s256, 16
      %s260 = sadd.s32 %s258, %s259
      %s261 = smul.addr %s260, 4
      %s262 = scalar_lea.vmem %s0, %s261
      %s263 = smul.u32 8, %s20
      %s264 = smul.u32 8, %s20
      %p265 = scmp.lt.s32.totalorder %s264, 15
      %s266 = scalar_select %p265, %s264, 15
      %s267 = smul.addr %s266, 8
      %s268 = scalar_lea.vmem %s1, %s267
      %s269 = smul.u32 8, %s20
      %s270 = smul.u32 8, %s20
      %p271 = scmp.lt.s32.totalorder %s270, 15
      %s272 = scalar_select %p271, %s270, 15
      %s273 = smul.addr %s272, 8
      %s274 = scalar_lea.vmem %s5, %s273
      %s275 = smul.u32 8, %s20
      %v277 = vld [vmem:[%s268] sm:$0xff]
      %v278 = vld [vmem:[%s268 + $0x8] sm:$0xff]
      %v279 = vld [vmem:[%s268 + $0x10] sm:$0xff]
      %v280 = vld [vmem:[%s268 + $0x18] sm:$0xff]
      %v281 = vld [vmem:[%s268 + $0x20] sm:$0xff]
      %v282 = vld [vmem:[%s268 + $0x28] sm:$0xff]
      %v283 = vld [vmem:[%s268 + $0x30] sm:$0xff]
      %v284 = vld [vmem:[%s268 + $0x38] sm:$0xff]
      %v285 = vpack.c.bf16 %v278, %v277
      %v286 = vpack.c.bf16 %v280, %v279
      %v287 = vpack.c.bf16 %v282, %v281
      %v288 = vpack.c.bf16 %v284, %v283
      %p289 = scmp.eq.s32.totalorder %s21, 0
      // Predicated region
      $region41: #{gcn_feature_extractor_forward.9} parent=39 // pred_check
        %p290 = pneg %p289
      $region42: #{gcn_feature_extractor_forward.9} parent=39 // pred_check_branch
        %292 = sbr.rel (%p290) target = $region44
      $region43: #{gcn_feature_extractor_forward.9} parent=39 // pred_region
        %v293 = vld [vmem:[%s2] sm:$0xf]
        %v294 = vld [vmem:[%s2 + $0x4] sm:$0xf]
        %v295 = vld [vmem:[%s2 + $0x8] sm:$0xf]
        %v296 = vld [vmem:[%s2 + $0xc] sm:$0xf]
        %v297 = vld [vmem:[%s2 + $0x10] sm:$0xf]
        %v298 = vld [vmem:[%s2 + $0x14] sm:$0xf]
        %v299 = vld [vmem:[%s2 + $0x18] sm:$0xf]
        %v300 = vld [vmem:[%s2 + $0x1c] sm:$0xf]
        %v301 = vld [vmem:[%s4] sm:$0x1]
        %v303 = vlaneseq
        %v304 = vshrl.u32 %v303, 7
        %v305 = vsub.s32 0, %v304
        %v306 = vrot.slane %v301, %v305
        %v316 = vunpack.c.l.b16 %v293
        %v317 = vunpack.c.l.b16 %v294
        %v318 = vunpack.c.l.b16 %v295
        %v319 = vunpack.c.l.b16 %v296
        %v320 = vunpack.c.l.b16 %v297
        %v321 = vunpack.c.l.b16 %v298
        %v322 = vunpack.c.l.b16 %v299
        %v323 = vunpack.c.l.b16 %v300
        %v324 = vpack.c.b16 %v317, %v316
        %v325 = vpack.c.b16 %v319, %v318
        %v326 = vpack.c.b16 %v321, %v320
        %v327 = vpack.c.b16 %v323, %v322
        %vm332 = vcmask 523264
        %v334 = vsel %vm332, %v285, 0
        %v337 = vsel %vm332, %v286, 0
        %v340 = vsel %vm332, %v287, 0
        %v343 = vsel %vm332, %v288, 0
        %345 = vmatprep.subr.bf16.mxu0 0
        %346 = vmatpush1.bf16.msra.mxu0 %v324
        %347 = vmatprep.subr.bf16.mxu0 0
        %348 = vmatpush1.bf16.msra.mxu0 %v325
        %349 = vmatprep.subr.bf16.mxu0 0
        %350 = vmatpush1.bf16.msra.mxu0 %v326
        %351 = vmatprep.subr.bf16.mxu0 0
        %352 = vmatpush1.bf16.msra.mxu0 %v327
        %353 = vmatprep.subr.bf16.mxu0 0
        %354 = vmatpush1.bf16.msra.mxu0 0
        %355 = vmatprep.subr.bf16.mxu0 0
        %356 = vmatpush1.bf16.msra.mxu0 0
        %357 = vmatprep.subr.bf16.mxu0 0
        %358 = vmatpush1.bf16.msra.mxu0 0
        %359 = vmatprep.subr.bf16.mxu0 0
        %360 = vmatpush1.bf16.msra.mxu0 0
        %361 = vmatprep.subr.bf16.mxu0 0
        %362 = vmatpush1.bf16.msra.mxu0 0
        %363 = vmatprep.subr.bf16.mxu0 0
        %364 = vmatpush1.bf16.msra.mxu0 0
        %365 = vmatprep.subr.bf16.mxu0 0
        %366 = vmatpush1.bf16.msra.mxu0 0
        %367 = vmatprep.subr.bf16.mxu0 0
        %368 = vmatpush1.bf16.msra.mxu0 0
        %369 = vmatprep.subr.bf16.mxu0 0
        %370 = vmatpush1.bf16.msra.mxu0 0
        %371 = vmatprep.subr.bf16.mxu0 0
        %372 = vmatpush1.bf16.msra.mxu0 0
        %373 = vmatprep.subr.bf16.mxu0 0
        %374 = vmatpush1.bf16.msra.mxu0 0
        %375 = vmatprep.subr.bf16.mxu0 0
        %376 = vmatpush1.bf16.msra.mxu0 0
        %377 = vmatprep.mubr.bf16.mxu0 0
        %378 = vmatmul.mubr.bf16.gmra.mrb[0].mxu0 %v334
        %v379 = vpop.f32.mrb[0].mxu0
        %v380 = vadd.f32 %v306, %v379
        %v381 = vpop.f32.mrb[0].mxu0
        %v382 = vpop.f32.mrb[0].mxu0
        %v383 = vadd.f32 %v306, %v382
        %v384 = vpop.f32.mrb[0].mxu0
        %385 = vmatprep.mubr.bf16.mxu0 0
        %386 = vmatmul.mubr.bf16.gmra.mrb[0].mxu0 %v337
        %v387 = vpop.f32.mrb[0].mxu0
        %v388 = vadd.f32 %v306, %v387
        %v389 = vpop.f32.mrb[0].mxu0
        %v390 = vpop.f32.mrb[0].mxu0
        %v391 = vadd.f32 %v306, %v390
        %v392 = vpop.f32.mrb[0].mxu0
        %393 = vmatprep.mubr.bf16.mxu0 0
        %394 = vmatmul.mubr.bf16.gmra.mrb[0].mxu0 %v340
        %v395 = vpop.f32.mrb[0].mxu0
        %v396 = vadd.f32 %v306, %v395
        %v397 = vpop.f32.mrb[0].mxu0
        %v398 = vpop.f32.mrb[0].mxu0
        %v399 = vadd.f32 %v306, %v398
        %v400 = vpop.f32.mrb[0].mxu0
        %401 = vmatprep.mubr.bf16.mxu0 0
        %402 = vmatmul.mubr.bf16.gmra.mrb[0].mxu0 %v343
        %v403 = vpop.f32.mrb[0].mxu0
        %v404 = vadd.f32 %v306, %v403
        %v405 = vpop.f32.mrb[0].mxu0
        %v406 = vpop.f32.mrb[0].mxu0
        %v407 = vadd.f32 %v306, %v406
        %v408 = vpop.f32.mrb[0].mxu0
        %409 = vdwg.mxu0
        %410 = vst.msk [vmem:[#allocation2] sm:$0xff] %vm332, %v380
        %411 = vst.msk [vmem:[#allocation2 + $0x8] sm:$0xff] %vm332, %v383
        %412 = vst.msk [vmem:[#allocation2 + $0x10] sm:$0xff] %vm332, %v388
        %413 = vst.msk [vmem:[#allocation2 + $0x18] sm:$0xff] %vm332, %v391
        %414 = vst.msk [vmem:[#allocation2 + $0x20] sm:$0xff] %vm332, %v396
        %415 = vst.msk [vmem:[#allocation2 + $0x28] sm:$0xff] %vm332, %v399
        %416 = vst.msk [vmem:[#allocation2 + $0x30] sm:$0xff] %vm332, %v404
        %417 = vst.msk [vmem:[#allocation2 + $0x38] sm:$0xff] %vm332, %v407
      $region44: #{gcn_feature_extractor_forward.9} parent=39 // pred_fallthru
        _
      %v418 = vld [vmem:[%s262] sm:$0xf]
      %v419 = vld [vmem:[%s262 + $0x4] sm:$0xf]
      %v420 = vld [vmem:[%s262 + $0x8] sm:$0xf]
      %v421 = vld [vmem:[%s262 + $0xc] sm:$0xf]
      %v422 = vld [vmem:[%s262 + $0x10] sm:$0xf]
      %v423 = vld [vmem:[%s262 + $0x14] sm:$0xf]
      %v424 = vld [vmem:[%s262 + $0x18] sm:$0xf]
      %v425 = vld [vmem:[%s262 + $0x1c] sm:$0xf]
      %v426 = vunpack.c.l.bf16 %v418
      %v427 = vunpack.c.l.bf16 %v419
      %v428 = vunpack.c.l.bf16 %v420
      %v429 = vunpack.c.l.bf16 %v421
      %v430 = vunpack.c.l.bf16 %v422
      %v431 = vunpack.c.l.bf16 %v423
      %v432 = vunpack.c.l.bf16 %v424
      %v433 = vunpack.c.l.bf16 %v425
      %v434 = vsub.f32 %v426, %v277
      %v435 = vsub.f32 %v427, %v278
      %v436 = vsub.f32 %v428, %v279
      %v437 = vsub.f32 %v429, %v280
      %v438 = vsub.f32 %v430, %v281
      %v439 = vsub.f32 %v431, %v282
      %v440 = vsub.f32 %v432, %v283
      %v441 = vsub.f32 %v433, %v284
      %v442 = vpack.c.bf16 %v435, %v434
      %v443 = vpack.c.bf16 %v437, %v436
      %v444 = vpack.c.bf16 %v439, %v438
      %v445 = vpack.c.bf16 %v441, %v440
      %v446 = vld [vmem:[%s3] sm:$0xf]
      %v447 = vld [vmem:[%s3 + $0x4] sm:$0xf]
      %v448 = vld [vmem:[%s3 + $0x8] sm:$0xf]
      %v449 = vld [vmem:[%s3 + $0xc] sm:$0xf]
      %v450 = vld [vmem:[%s3 + $0x10] sm:$0xf]
      %v451 = vld [vmem:[%s3 + $0x14] sm:$0xf]
      %v452 = vld [vmem:[%s3 + $0x18] sm:$0xf]
      %v453 = vld [vmem:[%s3 + $0x1c] sm:$0xf]
      %v454 = vld [vmem:[#allocation2] sm:$0xff]
      %v455 = vld [vmem:[#allocation2 + $0x8] sm:$0xff]
      %v456 = vld [vmem:[#allocation2 + $0x10] sm:$0xff]
      %v457 = vld [vmem:[#allocation2 + $0x18] sm:$0xff]
      %v458 = vld [vmem:[#allocation2 + $0x20] sm:$0xff]
      %v459 = vld [vmem:[#allocation2 + $0x28] sm:$0xff]
      %v460 = vld [vmem:[#allocation2 + $0x30] sm:$0xff]
      %v461 = vld [vmem:[#allocation2 + $0x38] sm:$0xff]
      %v470 = vunpack.c.l.b16 %v446
      %v471 = vunpack.c.l.b16 %v447
      %v472 = vunpack.c.l.b16 %v448
      %v473 = vunpack.c.l.b16 %v449
      %v474 = vunpack.c.l.b16 %v450
      %v475 = vunpack.c.l.b16 %v451
      %v476 = vunpack.c.l.b16 %v452
      %v477 = vunpack.c.l.b16 %v453
      %v478 = vpack.c.b16 %v471, %v470
      %v479 = vpack.c.b16 %v473, %v472
      %v480 = vpack.c.b16 %v475, %v474
      %v481 = vpack.c.b16 %v477, %v476
      %vm486 = vcmask 523264
      %v488 = vsel %vm486, %v442, 0
      %v491 = vsel %vm486, %v443, 0
      %v494 = vsel %vm486, %v444, 0
      %v497 = vsel %vm486, %v445, 0
      %499 = vmatprep.subr.bf16.mxu0 0
      %500 = vmatpush1.bf16.msra.mxu0 %v478
      %501 = vmatprep.subr.bf16.mxu0 0
      %502 = vmatpush1.bf16.msra.mxu0 %v479
      %503 = vmatprep.subr.bf16.mxu0 0
      %504 = vmatpush1.bf16.msra.mxu0 %v480
      %505 = vmatprep.subr.bf16.mxu0 0
      %506 = vmatpush1.bf16.msra.mxu0 %v481
      %507 = vmatprep.subr.bf16.mxu0 0
      %508 = vmatpush1.bf16.msra.mxu0 0
      %509 = vmatprep.subr.bf16.mxu0 0
      %510 = vmatpush1.bf16.msra.mxu0 0
      %511 = vmatprep.subr.bf16.mxu0 0
      %512 = vmatpush1.bf16.msra.mxu0 0
      %513 = vmatprep.subr.bf16.mxu0 0
      %514 = vmatpush1.bf16.msra.mxu0 0
      %515 = vmatprep.subr.bf16.mxu0 0
      %516 = vmatpush1.bf16.msra.mxu0 0
      %517 = vmatprep.subr.bf16.mxu0 0
      %518 = vmatpush1.bf16.msra.mxu0 0
      %519 = vmatprep.subr.bf16.mxu0 0
      %520 = vmatpush1.bf16.msra.mxu0 0
      %521 = vmatprep.subr.bf16.mxu0 0
      %522 = vmatpush1.bf16.msra.mxu0 0
      %523 = vmatprep.subr.bf16.mxu0 0
      %524 = vmatpush1.bf16.msra.mxu0 0
      %525 = vmatprep.subr.bf16.mxu0 0
      %526 = vmatpush1.bf16.msra.mxu0 0
      %527 = vmatprep.subr.bf16.mxu0 0
      %528 = vmatpush1.bf16.msra.mxu0 0
      %529 = vmatprep.subr.bf16.mxu0 0
      %530 = vmatpush1.bf16.msra.mxu0 0
      %531 = vmatprep.mubr.bf16.mxu0 0
      %532 = vmatmul.mubr.bf16.gmra.mrb[0].mxu0 %v488
      %v533 = vpop.f32.mrb[0].mxu0
      %v534 = vadd.f32 %v454, %v533
      %v535 = vpop.f32.mrb[0].mxu0
      %v536 = vpop.f32.mrb[0].mxu0
      %v537 = vadd.f32 %v455, %v536
      %v538 = vpop.f32.mrb[0].mxu0
      %539 = vmatprep.mubr.bf16.mxu0 0
      %540 = vmatmul.mubr.bf16.gmra.mrb[0].mxu0 %v491
      %v541 = vpop.f32.mrb[0].mxu0
      %v542 = vadd.f32 %v456, %v541
      %v543 = vpop.f32.mrb[0].mxu0
      %v544 = vpop.f32.mrb[0].mxu0
      %v545 = vadd.f32 %v457, %v544
      %v546 = vpop.f32.mrb[0].mxu0
      %547 = vmatprep.mubr.bf16.mxu0 0
      %548 = vmatmul.mubr.bf16.gmra.mrb[0].mxu0 %v494
      %v549 = vpop.f32.mrb[0].mxu0
      %v550 = vadd.f32 %v458, %v549
      %v551 = vpop.f32.mrb[0].mxu0
      %v552 = vpop.f32.mrb[0].mxu0
      %v553 = vadd.f32 %v459, %v552
      %v554 = vpop.f32.mrb[0].mxu0
      %555 = vmatprep.mubr.bf16.mxu0 0
      %556 = vmatmul.mubr.bf16.gmra.mrb[0].mxu0 %v497
      %v557 = vpop.f32.mrb[0].mxu0
      %v558 = vadd.f32 %v460, %v557
      %v559 = vpop.f32.mrb[0].mxu0
      %v560 = vpop.f32.mrb[0].mxu0
      %v561 = vadd.f32 %v461, %v560
      %v562 = vpop.f32.mrb[0].mxu0
      %563 = vdwg.mxu0
      %v564 = vmax.f32 %v534, 0.0
      %v565 = vmax.f32 %v537, 0.0
      %v566 = vmax.f32 %v542, 0.0
      %v567 = vmax.f32 %v545, 0.0
      %v568 = vmax.f32 %v550, 0.0
      %v569 = vmax.f32 %v553, 0.0
      %v570 = vmax.f32 %v558, 0.0
      %v571 = vmax.f32 %v561, 0.0
      // Predicated region
      $region45: #{gcn_feature_extractor_forward.9} parent=39 // pred_check
        %p572 = pneg %p289
      $region46: #{gcn_feature_extractor_forward.9} parent=39 // pred_check_branch
        %574 = sbr.rel (%p572) target = $region48
      $region47: #{gcn_feature_extractor_forward.9} parent=39 // pred_region
        %575 = vst.msk [vmem:[#allocation3] sm:$0xff] %vm486, %v564
        %576 = vst.msk [vmem:[#allocation3 + $0x8] sm:$0xff] %vm486, %v565
        %577 = vst.msk [vmem:[#allocation3 + $0x10] sm:$0xff] %vm486, %v566
        %578 = vst.msk [vmem:[#allocation3 + $0x18] sm:$0xff] %vm486, %v567
        %579 = vst.msk [vmem:[#allocation3 + $0x20] sm:$0xff] %vm486, %v568
        %580 = vst.msk [vmem:[#allocation3 + $0x28] sm:$0xff] %vm486, %v569
        %581 = vst.msk [vmem:[#allocation3 + $0x30] sm:$0xff] %vm486, %v570
        %582 = vst.msk [vmem:[#allocation3 + $0x38] sm:$0xff] %vm486, %v571
      $region48: #{gcn_feature_extractor_forward.9} parent=39 // pred_fallthru
        _
      %p583 = scmp.gt.s32.totalorder %s21, 0
      // Predicated region
      $region49: #{gcn_feature_extractor_forward.9} parent=39 // pred_check
        %p584 = pneg %p583
      $region50: #{gcn_feature_extractor_forward.9} parent=39 // pred_check_branch
        %586 = sbr.rel (%p584) target = $region52
      $region51: #{gcn_feature_extractor_forward.9} parent=39 // pred_region
        %v587 = vld [vmem:[#allocation3] sm:$0xff]
        %v588 = vld [vmem:[#allocation3 + $0x8] sm:$0xff]
        %v589 = vld [vmem:[#allocation3 + $0x10] sm:$0xff]
        %v590 = vld [vmem:[#allocation3 + $0x18] sm:$0xff]
        %v591 = vld [vmem:[#allocation3 + $0x20] sm:$0xff]
        %v592 = vld [vmem:[#allocation3 + $0x28] sm:$0xff]
        %v593 = vld [vmem:[#allocation3 + $0x30] sm:$0xff]
        %v594 = vld [vmem:[#allocation3 + $0x38] sm:$0xff]
        %v595 = vmax.f32 %v587, %v564
        %v596 = vmax.f32 %v588, %v565
        %v597 = vmax.f32 %v589, %v566
        %v598 = vmax.f32 %v590, %v567
        %v599 = vmax.f32 %v591, %v568
        %v600 = vmax.f32 %v592, %v569
        %v601 = vmax.f32 %v593, %v570
        %v602 = vmax.f32 %v594, %v571
        %603 = vst.msk [vmem:[#allocation3] sm:$0xff] %vm486, %v595
        %604 = vst.msk [vmem:[#allocation3 + $0x8] sm:$0xff] %vm486, %v596
        %605 = vst.msk [vmem:[#allocation3 + $0x10] sm:$0xff] %vm486, %v597
        %606 = vst.msk [vmem:[#allocation3 + $0x18] sm:$0xff] %vm486, %v598
        %607 = vst.msk [vmem:[#allocation3 + $0x20] sm:$0xff] %vm486, %v599
        %608 = vst.msk [vmem:[#allocation3 + $0x28] sm:$0xff] %vm486, %v600
        %609 = vst.msk [vmem:[#allocation3 + $0x30] sm:$0xff] %vm486, %v601
        %610 = vst.msk [vmem:[#allocation3 + $0x38] sm:$0xff] %vm486, %v602
      $region52: #{gcn_feature_extractor_forward.9} parent=39 // pred_fallthru
        _
      %p611 = scmp.eq.s32.totalorder %s21, 11
      // Predicated region
      $region53: #{gcn_feature_extractor_forward.9} parent=39 // pred_check
        %p612 = pneg %p611
      $region54: #{gcn_feature_extractor_forward.9} parent=39 // pred_check_branch
        %614 = sbr.rel (%p612) target = $region56
      $region55: #{gcn_feature_extractor_forward.9} parent=39 // pred_region
        %v615 = vld [vmem:[#allocation3] sm:$0xff]
        %v616 = vld [vmem:[#allocation3 + $0x8] sm:$0xff]
        %v617 = vld [vmem:[#allocation3 + $0x10] sm:$0xff]
        %v618 = vld [vmem:[#allocation3 + $0x18] sm:$0xff]
        %v619 = vld [vmem:[#allocation3 + $0x20] sm:$0xff]
        %v620 = vld [vmem:[#allocation3 + $0x28] sm:$0xff]
        %v621 = vld [vmem:[#allocation3 + $0x30] sm:$0xff]
        %v622 = vld [vmem:[#allocation3 + $0x38] sm:$0xff]
        %v623 = vadd.f32 %v615, %v277
        %v624 = vadd.f32 %v616, %v278
        %v625 = vadd.f32 %v617, %v279
        %v626 = vadd.f32 %v618, %v280
        %v627 = vadd.f32 %v619, %v281
        %v628 = vadd.f32 %v620, %v282
        %v629 = vadd.f32 %v621, %v283
        %v630 = vadd.f32 %v622, %v284
        %631 = vst.msk [vmem:[%s274] sm:$0xff] %vm486, %v623
        %632 = vst.msk [vmem:[%s274 + $0x8] sm:$0xff] %vm486, %v624
        %633 = vst.msk [vmem:[%s274 + $0x10] sm:$0xff] %vm486, %v625
        %634 = vst.msk [vmem:[%s274 + $0x18] sm:$0xff] %vm486, %v626
        %635 = vst.msk [vmem:[%s274 + $0x20] sm:$0xff] %vm486, %v627
        %636 = vst.msk [vmem:[%s274 + $0x28] sm:$0xff] %vm486, %v628
        %637 = vst.msk [vmem:[%s274 + $0x30] sm:$0xff] %vm486, %v629
        %638 = vst.msk [vmem:[%s274 + $0x38] sm:$0xff] %vm486, %v630
      $region56: #{gcn_feature_extractor_forward.9} parent=39 // pred_fallthru
        _
      %s639 = smul.u32 8, %s20
      %p640 = scmp.lt.s32.totalorder %s639, 15
      %s641 = scalar_select %p640, %s639, 15
      %s642 = smul.addr %s641, 8
      %s643 = scalar_lea.vmem %s5, %s642
      // Predicated region
      $region57: #{gcn_feature_extractor_forward.9} parent=39 // pred_check
        %p644 = pneg %p163
      $region58: #{gcn_feature_extractor_forward.9} parent=39 // pred_check_branch
        %646 = sbr.rel (%p644) target = $region60
      $region59: #{gcn_feature_extractor_forward.9} parent=39 // pred_region
        %s647 = smul.u32 8, %s20
      $region60: #{gcn_feature_extractor_forward.9} parent=39 // pred_fallthru
        _
    $region40: #{gcn_feature_extractor_forward.9} parent=5 // pred_fallthru
      _
    %p648 = scmp.le.s32.totalorder 2, %s11
    // Predicated region
    $region61: #{gcn_feature_extractor_forward.9} parent=5 // pred_check
      %p649 = pneg %p648
    $region62: #{gcn_feature_extractor_forward.9} parent=5 // pred_check_branch
      %651 = sbr.rel (%p649) target = $region64
    $region63: #{gcn_feature_extractor_forward.9} parent=5 // pred_region
      %s652 = ssub.s32 %s11, 2
      // Predicated region
      $region65: #{gcn_feature_extractor_forward.9} parent=63 // pred_check
        %p653 = pneg %p169
      $region66: #{gcn_feature_extractor_forward.9} parent=63 // pred_check_branch
        %655 = sbr.rel (%p653) target = $region68
      $region67: #{gcn_feature_extractor_forward.9} parent=63 // pred_region
        %s656 = smul.u32 8, %s22
        %p657 = scmp.lt.s32.totalorder %s656, 15
        %s658 = scalar_select %p657, %s656, 15
        %s659 = smul.addr %s658, 8
        %s660 = scalar_lea.vmem %s5, %s659
      $region68: #{gcn_feature_extractor_forward.9} parent=63 // pred_fallthru
        _
    $region64: #{gcn_feature_extractor_forward.9} parent=5 // pred_fallthru
      _
  $region6: #{gcn_feature_extractor_forward.9} parent=0 // loop_footer
    %s15 = sadd.s32 1, %s11
  $region7: #{gcn_feature_extractor_forward.9} parent=0 // loop_footer_branch
    %10 = sbr.rel target = $region3
  $region8: #{gcn_feature_extractor_forward.9} parent=0 // loop_exit
    _

// kernel: gcn_feature_extractor_forward.11
$region0: #{gcn_feature_extractor_forward.11}
  #allocation0 [shape = 'u32[]', space=smem, size = 0x4, offset = 0x4, fixed_abs, tag = 'smem constant byte address 0x4 - core index']
  #allocation1 [shape = 'u32[144,128]{1,0:T(1,128)}', space=vmem, size = 0x12000, scoped, tag = 'internal scratch']
  #allocation2 [shape = 'f32[64,32]{1,0:T(8,128)}', space=vmem, size = 0x8000, scoped, tag = 'scratch operand']
  #allocation3 [shape = 'f32[64,32]{1,0:T(8,128)}', space=vmem, size = 0x8000, scoped, tag = 'scratch operand']
  %s0 = inlined_call_operand.vmem [shape: bf16[12,128,64], index: 0, kind: input, shape index: {}]
  %s1 = inlined_call_operand.vmem [shape: f32[128,64], index: 1, kind: input, shape index: {}]
  %s2 = inlined_call_operand.vmem [shape: bf16[64,32], index: 2, kind: input, shape index: {}]
  %s3 = inlined_call_operand.vmem [shape: bf16[64,32], index: 3, kind: input, shape index: {}]
  %s4 = inlined_call_operand.vmem [shape: f32[1,32], index: 4, kind: input, shape index: {}]
  %s5 = inlined_call_operand.vmem [shape: bf16[64,32], index: 5, kind: input, shape index: {}]
  %s6 = inlined_call_operand.vmem [shape: f32[128,32], index: 6, kind: output, shape index: {}]
  %s7 = sld [smem:[#allocation0]]
  $region73: #{gcn_feature_extractor_forward.11} parent=0
    _
  %s9 = ssub.s32 1, %s7
  %s10 = scalar_select 0, %s9, %s7
  loop: start=0, step=1, limit=26
  $region2: #{gcn_feature_extractor_forward.11} parent=0 // loop_pre_header
    _
  $region3: #{gcn_feature_extractor_forward.11} parent=0 // loop_header
    %s12 = sphi 0, %s16
    %p13 = scmp.ge.s32.totalorder %s12, 26
    %s19 = sphi 0, %s31
    %s20 = sphi 0, %s27
    %s21 = sphi 0, %s19
    %s22 = sphi 0, %s20
    %s23 = sphi 0, %s21
    %s24 = sphi 0, %s22
    %s36 = sphi 0, %s38
    %s39 = sphi 0, %s36
    %s40 = sphi 0, %s39
    %s56 = sphi 0, %s40
    %s62 = sphi 0, %s64
    %s65 = sphi 0, %s62
    %s66 = sphi 0, %s65
    %s82 = sphi 0, %s66
    %s86 = sphi 0, %s86
    %s88 = sphi 0, %s86
    %s89 = sphi 0, %s88
    %s103 = sphi 0, %s89
    %s107 = sphi 0, %s107
    %s109 = sphi 0, %s107
    %s110 = sphi 0, %s109
    %s124 = sphi 0, %s110
    %s128 = sphi 0, %s128
    %s130 = sphi 0, %s128
    %s131 = sphi 0, %s130
    %s145 = sphi 0, %s131
    %s149 = sphi 0, %s149
    %s151 = sphi 0, %s149
    %s152 = sphi 0, %s151
    %s166 = sphi 0, %s152
    %s172 = sphi 0, %s174
    %s175 = sphi 0, %s172
    %s176 = sphi 0, %s175
    %s192 = sphi 0, %s176
  $region4: #{gcn_feature_extractor_forward.11} parent=0 // loop_header_branch
    %15 = sbr.rel (%p13) target = $region8
  $region5: #{gcn_feature_extractor_forward.11} parent=0 // loop_body
    %s17 = ssub.s32 %s12, 1
    %s18 = ssub.s32 %s12, 2
    %s25 = sadd.s32 1, %s20
    %p26 = scmp.ge.s32.totalorder %s25, 12
    %s27 = scalar_select %p26, 0, %s25
    %s28 = sadd.s32 1, %s19
    %s29 = scalar_select %p26, %s28, %s19
    %p30 = scmp.ge.s32.totalorder %s29, 2
    %s31 = scalar_select %p30, 0, %s29
    %s32 = ssub.s32 %s20, %s27
    %s33 = ssub.s32 %s19, %s31
    %s34 = sor.u32 %s32, %s33
    %p35 = scmp.eq.s32.totalorder %s34, 0
    %s37 = sadd.s32 %s36, 1
    %s38 = scalar_select %p35, %s36, %s37
    %p41 = pneg %p35
    %p42 = scmp.eq.s32.totalorder %s12, 23
    %p43 = por %p41, %p42
    %p44 = scmp.ne.s32.totalorder %s36, %s39
    %p45 = scmp.eq.s32.totalorder %s12, 0
    %p46 = por %p44, %p45
    %p47 = scmp.ne.s32.totalorder %s36, %s39
    %p48 = scmp.eq.s32.totalorder %s17, 23
    %p49 = por %p47, %p48
    %p50 = scmp.ne.s32.totalorder %s39, %s40
    %p51 = scmp.eq.s32.totalorder %s17, 0
    %p52 = por %p50, %p51
    %p53 = scmp.ne.s32.totalorder %s39, %s40
    %p54 = scmp.eq.s32.totalorder %s18, 23
    %p55 = por %p53, %p54
    %p57 = scmp.ne.s32.totalorder %s40, %s56
    %p58 = scmp.eq.s32.totalorder %s18, 0
    %p59 = por %p57, %p58
    %s60 = ssub.s32 %s19, %s31
    %p61 = scmp.eq.s32.totalorder %s60, 0
    %s63 = sadd.s32 %s62, 1
    %s64 = scalar_select %p61, %s62, %s63
    %p67 = pneg %p61
    %p68 = scmp.eq.s32.totalorder %s12, 23
    %p69 = por %p67, %p68
    %p70 = scmp.ne.s32.totalorder %s62, %s65
    %p71 = scmp.eq.s32.totalorder %s12, 0
    %p72 = por %p70, %p71
    %p73 = scmp.ne.s32.totalorder %s62, %s65
    %p74 = scmp.eq.s32.totalorder %s17, 23
    %p75 = por %p73, %p74
    %p76 = scmp.ne.s32.totalorder %s65, %s66
    %p77 = scmp.eq.s32.totalorder %s17, 0
    %p78 = por %p76, %p77
    %p79 = scmp.ne.s32.totalorder %s65, %s66
    %p80 = scmp.eq.s32.totalorder %s18, 23
    %p81 = por %p79, %p80
    %p83 = scmp.ne.s32.totalorder %s66, %s82
    %p84 = scmp.eq.s32.totalorder %s18, 0
    %p85 = por %p83, %p84
    %s87 = sadd.s32 %s86, 1
    %p90 = scmp.eq.s32.totalorder %s12, 23
    %p91 = scmp.ne.s32.totalorder %s86, %s88
    %p92 = scmp.eq.s32.totalorder %s12, 0
    %p93 = por %p91, %p92
    %p94 = scmp.ne.s32.totalorder %s86, %s88
    %p95 = scmp.eq.s32.totalorder %s17, 23
    %p96 = por %p94, %p95
    %p97 = scmp.ne.s32.totalorder %s88, %s89
    %p98 = scmp.eq.s32.totalorder %s17, 0
    %p99 = por %p97, %p98
    %p100 = scmp.ne.s32.totalorder %s88, %s89
    %p101 = scmp.eq.s32.totalorder %s18, 23
    %p102 = por %p100, %p101
    %p104 = scmp.ne.s32.totalorder %s89, %s103
    %p105 = scmp.eq.s32.totalorder %s18, 0
    %p106 = por %p104, %p105
    %s108 = sadd.s32 %s107, 1
    %p111 = scmp.eq.s32.totalorder %s12, 23
    %p112 = scmp.ne.s32.totalorder %s107, %s109
    %p113 = scmp.eq.s32.totalorder %s12, 0
    %p114 = por %p112, %p113
    %p115 = scmp.ne.s32.totalorder %s107, %s109
    %p116 = scmp.eq.s32.totalorder %s17, 23
    %p117 = por %p115, %p116
    %p118 = scmp.ne.s32.totalorder %s109, %s110
    %p119 = scmp.eq.s32.totalorder %s17, 0
    %p120 = por %p118, %p119
    %p121 = scmp.ne.s32.totalorder %s109, %s110
    %p122 = scmp.eq.s32.totalorder %s18, 23
    %p123 = por %p121, %p122
    %p125 = scmp.ne.s32.totalorder %s110, %s124
    %p126 = scmp.eq.s32.totalorder %s18, 0
    %p127 = por %p125, %p126
    %s129 = sadd.s32 %s128, 1
    %p132 = scmp.eq.s32.totalorder %s12, 23
    %p133 = scmp.ne.s32.totalorder %s128, %s130
    %p134 = scmp.eq.s32.totalorder %s12, 0
    %p135 = por %p133, %p134
    %p136 = scmp.ne.s32.totalorder %s128, %s130
    %p137 = scmp.eq.s32.totalorder %s17, 23
    %p138 = por %p136, %p137
    %p139 = scmp.ne.s32.totalorder %s130, %s131
    %p140 = scmp.eq.s32.totalorder %s17, 0
    %p141 = por %p139, %p140
    %p142 = scmp.ne.s32.totalorder %s130, %s131
    %p143 = scmp.eq.s32.totalorder %s18, 23
    %p144 = por %p142, %p143
    %p146 = scmp.ne.s32.totalorder %s131, %s145
    %p147 = scmp.eq.s32.totalorder %s18, 0
    %p148 = por %p146, %p147
    %s150 = sadd.s32 %s149, 1
    %p153 = scmp.eq.s32.totalorder %s12, 23
    %p154 = scmp.ne.s32.totalorder %s149, %s151
    %p155 = scmp.eq.s32.totalorder %s12, 0
    %p156 = por %p154, %p155
    %p157 = scmp.ne.s32.totalorder %s149, %s151
    %p158 = scmp.eq.s32.totalorder %s17, 23
    %p159 = por %p157, %p158
    %p160 = scmp.ne.s32.totalorder %s151, %s152
    %p161 = scmp.eq.s32.totalorder %s17, 0
    %p162 = por %p160, %p161
    %p163 = scmp.ne.s32.totalorder %s151, %s152
    %p164 = scmp.eq.s32.totalorder %s18, 23
    %p165 = por %p163, %p164
    %p167 = scmp.ne.s32.totalorder %s152, %s166
    %p168 = scmp.eq.s32.totalorder %s18, 0
    %p169 = por %p167, %p168
    %s170 = ssub.s32 %s19, %s31
    %p171 = scmp.eq.s32.totalorder %s170, 0
    %s173 = sadd.s32 %s172, 1
    %s174 = scalar_select %p171, %s172, %s173
    %p177 = pneg %p171
    %p178 = scmp.eq.s32.totalorder %s12, 23
    %p179 = por %p177, %p178
    %p180 = scmp.ne.s32.totalorder %s172, %s175
    %p181 = scmp.eq.s32.totalorder %s12, 0
    %p182 = por %p180, %p181
    %p183 = scmp.ne.s32.totalorder %s172, %s175
    %p184 = scmp.eq.s32.totalorder %s17, 23
    %p185 = por %p183, %p184
    %p186 = scmp.ne.s32.totalorder %s175, %s176
    %p187 = scmp.eq.s32.totalorder %s17, 0
    %p188 = por %p186, %p187
    %p189 = scmp.ne.s32.totalorder %s175, %s176
    %p190 = scmp.eq.s32.totalorder %s18, 23
    %p191 = por %p189, %p190
    %p193 = scmp.ne.s32.totalorder %s176, %s192
    %p194 = scmp.eq.s32.totalorder %s18, 0
    %p195 = por %p193, %p194
    %p196 = scmp.le.s32.totalorder 1, %s12
    %p197 = scmp.lt.s32.totalorder %s12, 25
    %p198 = pnand %p196, %p197
    %p199 = pneg %p198
    // Predicated region
    $region9: #{gcn_feature_extractor_forward.11} parent=5 // pred_check
      _
    $region10: #{gcn_feature_extractor_forward.11} parent=5 // pred_check_branch
      %201 = sbr.rel (%p198) target = $region12
    $region11: #{gcn_feature_extractor_forward.11} parent=5 // pred_region
      %s202 = ssub.s32 %s12, 1
      // Predicated region
      $region13: #{gcn_feature_extractor_forward.11} parent=11 // pred_check
        %p203 = pneg %p99
      $region14: #{gcn_feature_extractor_forward.11} parent=11 // pred_check_branch
        %205 = sbr.rel (%p203) target = $region16
      $region15: #{gcn_feature_extractor_forward.11} parent=11 // pred_region
        _
      $region16: #{gcn_feature_extractor_forward.11} parent=11 // pred_fallthru
        _
      // Predicated region
      $region17: #{gcn_feature_extractor_forward.11} parent=11 // pred_check
        %p206 = pneg %p120
      $region18: #{gcn_feature_extractor_forward.11} parent=11 // pred_check_branch
        %208 = sbr.rel (%p206) target = $region20
      $region19: #{gcn_feature_extractor_forward.11} parent=11 // pred_region
        _
      $region20: #{gcn_feature_extractor_forward.11} parent=11 // pred_fallthru
        _
      // Predicated region
      $region21: #{gcn_feature_extractor_forward.11} parent=11 // pred_check
        %p209 = pneg %p141
      $region22: #{gcn_feature_extractor_forward.11} parent=11 // pred_check_branch
        %211 = sbr.rel (%p209) target = $region24
      $region23: #{gcn_feature_extractor_forward.11} parent=11 // pred_region
        _
      $region24: #{gcn_feature_extractor_forward.11} parent=11 // pred_fallthru
        _
      // Predicated region
      $region25: #{gcn_feature_extractor_forward.11} parent=11 // pred_check
        %p212 = pneg %p162
      $region26: #{gcn_feature_extractor_forward.11} parent=11 // pred_check_branch
        %214 = sbr.rel (%p212) target = $region28
      $region27: #{gcn_feature_extractor_forward.11} parent=11 // pred_region
        _
      $region28: #{gcn_feature_extractor_forward.11} parent=11 // pred_fallthru
        _
    $region12: #{gcn_feature_extractor_forward.11} parent=5 // pred_fallthru
      _
    %p215 = scmp.lt.s32.totalorder %s12, 24
    // Predicated region
    $region29: #{gcn_feature_extractor_forward.11} parent=5 // pred_check
      %p216 = pneg %p215
    $region30: #{gcn_feature_extractor_forward.11} parent=5 // pred_check_branch
      %218 = sbr.rel (%p216) target = $region32
    $region31: #{gcn_feature_extractor_forward.11} parent=5 // pred_region
      // Predicated region
      $region33: #{gcn_feature_extractor_forward.11} parent=31 // pred_check
        %p219 = pneg %p46
      $region34: #{gcn_feature_extractor_forward.11} parent=31 // pred_check_branch
        %221 = sbr.rel (%p219) target = $region36
      $region35: #{gcn_feature_extractor_forward.11} parent=31 // pred_region
        %s222 = smul.u32 8, %s19
        %p223 = scmp.lt.s32.totalorder %s20, 11
        %s224 = scalar_select %p223, %s20, 11
        %p225 = scmp.lt.s32.totalorder %s222, 15
        %s226 = scalar_select %p225, %s222, 15
        %s227 = smul.addr %s224, 16
        %s228 = sadd.s32 %s226, %s227
        %s229 = smul.addr %s228, 4
        %s230 = scalar_lea.vmem %s0, %s229
        %s231 = smul.u32 8, %s19
      $region36: #{gcn_feature_extractor_forward.11} parent=31 // pred_fallthru
        _
      // Predicated region
      $region37: #{gcn_feature_extractor_forward.11} parent=31 // pred_check
        %p232 = pneg %p72
      $region38: #{gcn_feature_extractor_forward.11} parent=31 // pred_check_branch
        %234 = sbr.rel (%p232) target = $region40
      $region39: #{gcn_feature_extractor_forward.11} parent=31 // pred_region
        %s235 = smul.u32 8, %s19
        %p236 = scmp.lt.s32.totalorder %s235, 15
        %s237 = scalar_select %p236, %s235, 15
        %s238 = smul.addr %s237, 8
        %s239 = scalar_lea.vmem %s1, %s238
        %s240 = smul.u32 8, %s19
      $region40: #{gcn_feature_extractor_forward.11} parent=31 // pred_fallthru
        _
    $region32: #{gcn_feature_extractor_forward.11} parent=5 // pred_fallthru
      _
    %p241 = scmp.le.s32.totalorder 1, %s12
    %p242 = scmp.lt.s32.totalorder %s12, 25
    %p243 = pnand %p241, %p242
    %p244 = pneg %p243
    // Predicated region
    $region41: #{gcn_feature_extractor_forward.11} parent=5 // pred_check
      _
    $region42: #{gcn_feature_extractor_forward.11} parent=5 // pred_check_branch
      %246 = sbr.rel (%p243) target = $region44
    $region43: #{gcn_feature_extractor_forward.11} parent=5 // pred_region
      %s247 = ssub.s32 %s12, 1
      %s248 = smul.u32 8, %s21
      %p249 = scmp.lt.s32.totalorder %s22, 11
      %s250 = scalar_select %p249, %s22, 11
      %p251 = scmp.lt.s32.totalorder %s248, 15
      %s252 = scalar_select %p251, %s248, 15
      %s253 = smul.addr %s250, 16
      %s254 = sadd.s32 %s252, %s253
      %s255 = smul.addr %s254, 4
      %s256 = scalar_lea.vmem %s0, %s255
      %p257 = pneg %p52
      %p258 = pneg %p49
      %s259 = smul.u32 8, %s21
      %p260 = scmp.lt.s32.totalorder %s259, 15
      %s261 = scalar_select %p260, %s259, 15
      %s262 = smul.addr %s261, 8
      %s263 = scalar_lea.vmem %s1, %s262
      %p264 = pneg %p78
      %p265 = pneg %p75
      %p266 = pneg %p99
      %p267 = pneg %p96
      %p268 = pneg %p120
      %p269 = pneg %p117
      %p270 = pneg %p141
      %p271 = pneg %p138
      %p272 = pneg %p162
      %p273 = pneg %p159
      %p274 = pneg %p188
      %p275 = pneg %p185
      %s276 = smul.u32 8, %s21
      %p277 = scmp.lt.s32.totalorder %s276, 15
      %s278 = scalar_select %p277, %s276, 15
      %s279 = smul.addr %s278, 8
      %s280 = scalar_lea.vmem %s6, %s279
      %s281 = smul.u32 8, %s21
      %p282 = scmp.lt.s32.totalorder %s22, 11
      %s283 = scalar_select %p282, %s22, 11
      %p284 = scmp.lt.s32.totalorder %s281, 15
      %s285 = scalar_select %p284, %s281, 15
      %s286 = smul.addr %s283, 16
      %s287 = sadd.s32 %s285, %s286
      %s288 = smul.addr %s287, 4
      %s289 = scalar_lea.vmem %s0, %s288
      %s290 = smul.u32 8, %s21
      %s291 = smul.u32 8, %s21
      %p292 = scmp.lt.s32.totalorder %s291, 15
      %s293 = scalar_select %p292, %s291, 15
      %s294 = smul.addr %s293, 8
      %s295 = scalar_lea.vmem %s1, %s294
      %s296 = smul.u32 8, %s21
      %s297 = smul.u32 8, %s21
      %p298 = scmp.lt.s32.totalorder %s297, 15
      %s299 = scalar_select %p298, %s297, 15
      %s300 = smul.addr %s299, 8
      %s301 = scalar_lea.vmem %s6, %s300
      %s302 = smul.u32 8, %s21
      %v304 = vld [vmem:[%s295] sm:$0xff]
      %v305 = vld [vmem:[%s295 + $0x8] sm:$0xff]
      %v306 = vld [vmem:[%s295 + $0x10] sm:$0xff]
      %v307 = vld [vmem:[%s295 + $0x18] sm:$0xff]
      %v308 = vld [vmem:[%s295 + $0x20] sm:$0xff]
      %v309 = vld [vmem:[%s295 + $0x28] sm:$0xff]
      %v310 = vld [vmem:[%s295 + $0x30] sm:$0xff]
      %v311 = vld [vmem:[%s295 + $0x38] sm:$0xff]
      %v312 = vpack.c.bf16 %v305, %v304
      %v313 = vpack.c.bf16 %v307, %v306
      %v314 = vpack.c.bf16 %v309, %v308
      %v315 = vpack.c.bf16 %v311, %v310
      %p316 = scmp.eq.s32.totalorder %s22, 0
      // Predicated region
      $region45: #{gcn_feature_extractor_forward.11} parent=43 // pred_check
        %p317 = pneg %p316
      $region46: #{gcn_feature_extractor_forward.11} parent=43 // pred_check_branch
        %319 = sbr.rel (%p317) target = $region48
      $region47: #{gcn_feature_extractor_forward.11} parent=43 // pred_region
        %v320 = vld [vmem:[%s2] sm:$0xf]
        %v321 = vld [vmem:[%s2 + $0x4] sm:$0xf]
        %v322 = vld [vmem:[%s2 + $0x8] sm:$0xf]
        %v323 = vld [vmem:[%s2 + $0xc] sm:$0xf]
        %v324 = vld [vmem:[%s2 + $0x10] sm:$0xf]
        %v325 = vld [vmem:[%s2 + $0x14] sm:$0xf]
        %v326 = vld [vmem:[%s2 + $0x18] sm:$0xf]
        %v327 = vld [vmem:[%s2 + $0x1c] sm:$0xf]
        %v328 = vld [vmem:[%s4] sm:$0x1]
        %v330 = vlaneseq
        %v331 = vshrl.u32 %v330, 7
        %v332 = vsub.s32 0, %v331
        %v333 = vrot.slane %v328, %v332
        %v343 = vunpack.c.l.b16 %v320
        %v344 = vunpack.c.l.b16 %v321
        %v345 = vunpack.c.l.b16 %v322
        %v346 = vunpack.c.l.b16 %v323
        %v347 = vunpack.c.l.b16 %v324
        %v348 = vunpack.c.l.b16 %v325
        %v349 = vunpack.c.l.b16 %v326
        %v350 = vunpack.c.l.b16 %v327
        %v351 = vpack.c.b16 %v344, %v343
        %v352 = vpack.c.b16 %v346, %v345
        %v353 = vpack.c.b16 %v348, %v347
        %v354 = vpack.c.b16 %v350, %v349
        %vm359 = vcmask 523264
        %v361 = vsel %vm359, %v312, 0
        %v364 = vsel %vm359, %v313, 0
        %v367 = vsel %vm359, %v314, 0
        %v370 = vsel %vm359, %v315, 0
        %372 = vmatprep.subr.bf16.mxu0 0
        %373 = vmatpush1.bf16.msra.mxu0 %v351
        %374 = vmatprep.subr.bf16.mxu0 0
        %375 = vmatpush1.bf16.msra.mxu0 %v352
        %376 = vmatprep.subr.bf16.mxu0 0
        %377 = vmatpush1.bf16.msra.mxu0 %v353
        %378 = vmatprep.subr.bf16.mxu0 0
        %379 = vmatpush1.bf16.msra.mxu0 %v354
        %380 = vmatprep.subr.bf16.mxu0 0
        %381 = vmatpush1.bf16.msra.mxu0 0
        %382 = vmatprep.subr.bf16.mxu0 0
        %383 = vmatpush1.bf16.msra.mxu0 0
        %384 = vmatprep.subr.bf16.mxu0 0
        %385 = vmatpush1.bf16.msra.mxu0 0
        %386 = vmatprep.subr.bf16.mxu0 0
        %387 = vmatpush1.bf16.msra.mxu0 0
        %388 = vmatprep.subr.bf16.mxu0 0
        %389 = vmatpush1.bf16.msra.mxu0 0
        %390 = vmatprep.subr.bf16.mxu0 0
        %391 = vmatpush1.bf16.msra.mxu0 0
        %392 = vmatprep.subr.bf16.mxu0 0
        %393 = vmatpush1.bf16.msra.mxu0 0
        %394 = vmatprep.subr.bf16.mxu0 0
        %395 = vmatpush1.bf16.msra.mxu0 0
        %396 = vmatprep.subr.bf16.mxu0 0
        %397 = vmatpush1.bf16.msra.mxu0 0
        %398 = vmatprep.subr.bf16.mxu0 0
        %399 = vmatpush1.bf16.msra.mxu0 0
        %400 = vmatprep.subr.bf16.mxu0 0
        %401 = vmatpush1.bf16.msra.mxu0 0
        %402 = vmatprep.subr.bf16.mxu0 0
        %403 = vmatpush1.bf16.msra.mxu0 0
        %404 = vmatprep.mubr.bf16.mxu0 0
        %405 = vmatmul.mubr.bf16.gmra.mrb[0].mxu0 %v361
        %v406 = vpop.f32.mrb[0].mxu0
        %v407 = vadd.f32 %v333, %v406
        %v408 = vpop.f32.mrb[0].mxu0
        %v409 = vpop.f32.mrb[0].mxu0
        %v410 = vadd.f32 %v333, %v409
        %v411 = vpop.f32.mrb[0].mxu0
        %412 = vmatprep.mubr.bf16.mxu0 0
        %413 = vmatmul.mubr.bf16.gmra.mrb[0].mxu0 %v364
        %v414 = vpop.f32.mrb[0].mxu0
        %v415 = vadd.f32 %v333, %v414
        %v416 = vpop.f32.mrb[0].mxu0
        %v417 = vpop.f32.mrb[0].mxu0
        %v418 = vadd.f32 %v333, %v417
        %v419 = vpop.f32.mrb[0].mxu0
        %420 = vmatprep.mubr.bf16.mxu0 0
        %421 = vmatmul.mubr.bf16.gmra.mrb[0].mxu0 %v367
        %v422 = vpop.f32.mrb[0].mxu0
        %v423 = vadd.f32 %v333, %v422
        %v424 = vpop.f32.mrb[0].mxu0
        %v425 = vpop.f32.mrb[0].mxu0
        %v426 = vadd.f32 %v333, %v425
        %v427 = vpop.f32.mrb[0].mxu0
        %428 = vmatprep.mubr.bf16.mxu0 0
        %429 = vmatmul.mubr.bf16.gmra.mrb[0].mxu0 %v370
        %v430 = vpop.f32.mrb[0].mxu0
        %v431 = vadd.f32 %v333, %v430
        %v432 = vpop.f32.mrb[0].mxu0
        %v433 = vpop.f32.mrb[0].mxu0
        %v434 = vadd.f32 %v333, %v433
        %v435 = vpop.f32.mrb[0].mxu0
        %436 = vdwg.mxu0
        %vm437 = vcmask 261120
        %438 = vst.msk [vmem:[#allocation2] sm:$0xff] %vm437, %v407
        %439 = vst.msk [vmem:[#allocation2 + $0x8] sm:$0xff] %vm437, %v410
        %440 = vst.msk [vmem:[#allocation2 + $0x10] sm:$0xff] %vm437, %v415
        %441 = vst.msk [vmem:[#allocation2 + $0x18] sm:$0xff] %vm437, %v418
        %442 = vst.msk [vmem:[#allocation2 + $0x20] sm:$0xff] %vm437, %v423
        %443 = vst.msk [vmem:[#allocation2 + $0x28] sm:$0xff] %vm437, %v426
        %444 = vst.msk [vmem:[#allocation2 + $0x30] sm:$0xff] %vm437, %v431
        %445 = vst.msk [vmem:[#allocation2 + $0x38] sm:$0xff] %vm437, %v434
      $region48: #{gcn_feature_extractor_forward.11} parent=43 // pred_fallthru
        _
      %v446 = vld [vmem:[%s289] sm:$0xf]
      %v447 = vld [vmem:[%s289 + $0x4] sm:$0xf]
      %v448 = vld [vmem:[%s289 + $0x8] sm:$0xf]
      %v449 = vld [vmem:[%s289 + $0xc] sm:$0xf]
      %v450 = vld [vmem:[%s289 + $0x10] sm:$0xf]
      %v451 = vld [vmem:[%s289 + $0x14] sm:$0xf]
      %v452 = vld [vmem:[%s289 + $0x18] sm:$0xf]
      %v453 = vld [vmem:[%s289 + $0x1c] sm:$0xf]
      %v454 = vunpack.c.l.bf16 %v446
      %v455 = vunpack.c.l.bf16 %v447
      %v456 = vunpack.c.l.bf16 %v448
      %v457 = vunpack.c.l.bf16 %v449
      %v458 = vunpack.c.l.bf16 %v450
      %v459 = vunpack.c.l.bf16 %v451
      %v460 = vunpack.c.l.bf16 %v452
      %v461 = vunpack.c.l.bf16 %v453
      %v462 = vsub.f32 %v454, %v304
      %v463 = vsub.f32 %v455, %v305
      %v464 = vsub.f32 %v456, %v306
      %v465 = vsub.f32 %v457, %v307
      %v466 = vsub.f32 %v458, %v308
      %v467 = vsub.f32 %v459, %v309
      %v468 = vsub.f32 %v460, %v310
      %v469 = vsub.f32 %v461, %v311
      %v470 = vpack.c.bf16 %v463, %v462
      %v471 = vpack.c.bf16 %v465, %v464
      %v472 = vpack.c.bf16 %v467, %v466
      %v473 = vpack.c.bf16 %v469, %v468
      %v474 = vld [vmem:[%s3] sm:$0xf]
      %v475 = vld [vmem:[%s3 + $0x4] sm:$0xf]
      %v476 = vld [vmem:[%s3 + $0x8] sm:$0xf]
      %v477 = vld [vmem:[%s3 + $0xc] sm:$0xf]
      %v478 = vld [vmem:[%s3 + $0x10] sm:$0xf]
      %v479 = vld [vmem:[%s3 + $0x14] sm:$0xf]
      %v480 = vld [vmem:[%s3 + $0x18] sm:$0xf]
      %v481 = vld [vmem:[%s3 + $0x1c] sm:$0xf]
      %v482 = vld [vmem:[#allocation2] sm:$0xff]
      %v483 = vld [vmem:[#allocation2 + $0x8] sm:$0xff]
      %v484 = vld [vmem:[#allocation2 + $0x10] sm:$0xff]
      %v485 = vld [vmem:[#allocation2 + $0x18] sm:$0xff]
      %v486 = vld [vmem:[#allocation2 + $0x20] sm:$0xff]
      %v487 = vld [vmem:[#allocation2 + $0x28] sm:$0xff]
      %v488 = vld [vmem:[#allocation2 + $0x30] sm:$0xff]
      %v489 = vld [vmem:[#allocation2 + $0x38] sm:$0xff]
      %v498 = vunpack.c.l.b16 %v474
      %v499 = vunpack.c.l.b16 %v475
      %v500 = vunpack.c.l.b16 %v476
      %v501 = vunpack.c.l.b16 %v477
      %v502 = vunpack.c.l.b16 %v478
      %v503 = vunpack.c.l.b16 %v479
      %v504 = vunpack.c.l.b16 %v480
      %v505 = vunpack.c.l.b16 %v481
      %v506 = vpack.c.b16 %v499, %v498
      %v507 = vpack.c.b16 %v501, %v500
      %v508 = vpack.c.b16 %v503, %v502
      %v509 = vpack.c.b16 %v505, %v504
      %vm514 = vcmask 523264
      %v516 = vsel %vm514, %v470, 0
      %v519 = vsel %vm514, %v471, 0
      %v522 = vsel %vm514, %v472, 0
      %v525 = vsel %vm514, %v473, 0
      %527 = vmatprep.subr.bf16.mxu0 0
      %528 = vmatpush1.bf16.msra.mxu0 %v506
      %529 = vmatprep.subr.bf16.mxu0 0
      %530 = vmatpush1.bf16.msra.mxu0 %v507
      %531 = vmatprep.subr.bf16.mxu0 0
      %532 = vmatpush1.bf16.msra.mxu0 %v508
      %533 = vmatprep.subr.bf16.mxu0 0
      %534 = vmatpush1.bf16.msra.mxu0 %v509
      %535 = vmatprep.subr.bf16.mxu0 0
      %536 = vmatpush1.bf16.msra.mxu0 0
      %537 = vmatprep.subr.bf16.mxu0 0
      %538 = vmatpush1.bf16.msra.mxu0 0
      %539 = vmatprep.subr.bf16.mxu0 0
      %540 = vmatpush1.bf16.msra.mxu0 0
      %541 = vmatprep.subr.bf16.mxu0 0
      %542 = vmatpush1.bf16.msra.mxu0 0
      %543 = vmatprep.subr.bf16.mxu0 0
      %544 = vmatpush1.bf16.msra.mxu0 0
      %545 = vmatprep.subr.bf16.mxu0 0
      %546 = vmatpush1.bf16.msra.mxu0 0
      %547 = vmatprep.subr.bf16.mxu0 0
      %548 = vmatpush1.bf16.msra.mxu0 0
      %549 = vmatprep.subr.bf16.mxu0 0
      %550 = vmatpush1.bf16.msra.mxu0 0
      %551 = vmatprep.subr.bf16.mxu0 0
      %552 = vmatpush1.bf16.msra.mxu0 0
      %553 = vmatprep.subr.bf16.mxu0 0
      %554 = vmatpush1.bf16.msra.mxu0 0
      %555 = vmatprep.subr.bf16.mxu0 0
      %556 = vmatpush1.bf16.msra.mxu0 0
      %557 = vmatprep.subr.bf16.mxu0 0
      %558 = vmatpush1.bf16.msra.mxu0 0
      %559 = vmatprep.mubr.bf16.mxu0 0
      %560 = vmatmul.mubr.bf16.gmra.mrb[0].mxu0 %v516
      %v561 = vpop.f32.mrb[0].mxu0
      %v562 = vadd.f32 %v482, %v561
      %v563 = vpop.f32.mrb[0].mxu0
      %v564 = vpop.f32.mrb[0].mxu0
      %v565 = vadd.f32 %v483, %v564
      %v566 = vpop.f32.mrb[0].mxu0
      %567 = vmatprep.mubr.bf16.mxu0 0
      %568 = vmatmul.mubr.bf16.gmra.mrb[0].mxu0 %v519
      %v569 = vpop.f32.mrb[0].mxu0
      %v570 = vadd.f32 %v484, %v569
      %v571 = vpop.f32.mrb[0].mxu0
      %v572 = vpop.f32.mrb[0].mxu0
      %v573 = vadd.f32 %v485, %v572
      %v574 = vpop.f32.mrb[0].mxu0
      %575 = vmatprep.mubr.bf16.mxu0 0
      %576 = vmatmul.mubr.bf16.gmra.mrb[0].mxu0 %v522
      %v577 = vpop.f32.mrb[0].mxu0
      %v578 = vadd.f32 %v486, %v577
      %v579 = vpop.f32.mrb[0].mxu0
      %v580 = vpop.f32.mrb[0].mxu0
      %v581 = vadd.f32 %v487, %v580
      %v582 = vpop.f32.mrb[0].mxu0
      %583 = vmatprep.mubr.bf16.mxu0 0
      %584 = vmatmul.mubr.bf16.gmra.mrb[0].mxu0 %v525
      %v585 = vpop.f32.mrb[0].mxu0
      %v586 = vadd.f32 %v488, %v585
      %v587 = vpop.f32.mrb[0].mxu0
      %v588 = vpop.f32.mrb[0].mxu0
      %v589 = vadd.f32 %v489, %v588
      %v590 = vpop.f32.mrb[0].mxu0
      %591 = vdwg.mxu0
      %v592 = vmax.f32 %v562, 0.0
      %v593 = vmax.f32 %v565, 0.0
      %v594 = vmax.f32 %v570, 0.0
      %v595 = vmax.f32 %v573, 0.0
      %v596 = vmax.f32 %v578, 0.0
      %v597 = vmax.f32 %v581, 0.0
      %v598 = vmax.f32 %v586, 0.0
      %v599 = vmax.f32 %v589, 0.0
      // Predicated region
      $region49: #{gcn_feature_extractor_forward.11} parent=43 // pred_check
        %p600 = pneg %p316
      $region50: #{gcn_feature_extractor_forward.11} parent=43 // pred_check_branch
        %602 = sbr.rel (%p600) target = $region52
      $region51: #{gcn_feature_extractor_forward.11} parent=43 // pred_region
        %vm603 = vcmask 261120
        %604 = vst.msk [vmem:[#allocation3] sm:$0xff] %vm603, %v592
        %605 = vst.msk [vmem:[#allocation3 + $0x8] sm:$0xff] %vm603, %v593
        %606 = vst.msk [vmem:[#allocation3 + $0x10] sm:$0xff] %vm603, %v594
        %607 = vst.msk [vmem:[#allocation3 + $0x18] sm:$0xff] %vm603, %v595
        %608 = vst.msk [vmem:[#allocation3 + $0x20] sm:$0xff] %vm603, %v596
        %609 = vst.msk [vmem:[#allocation3 + $0x28] sm:$0xff] %vm603, %v597
        %610 = vst.msk [vmem:[#allocation3 + $0x30] sm:$0xff] %vm603, %v598
        %611 = vst.msk [vmem:[#allocation3 + $0x38] sm:$0xff] %vm603, %v599
      $region52: #{gcn_feature_extractor_forward.11} parent=43 // pred_fallthru
        _
      %p612 = scmp.gt.s32.totalorder %s22, 0
      // Predicated region
      $region53: #{gcn_feature_extractor_forward.11} parent=43 // pred_check
        %p613 = pneg %p612
      $region54: #{gcn_feature_extractor_forward.11} parent=43 // pred_check_branch
        %615 = sbr.rel (%p613) target = $region56
      $region55: #{gcn_feature_extractor_forward.11} parent=43 // pred_region
        %v616 = vld [vmem:[#allocation3] sm:$0xff]
        %v617 = vld [vmem:[#allocation3 + $0x8] sm:$0xff]
        %v618 = vld [vmem:[#allocation3 + $0x10] sm:$0xff]
        %v619 = vld [vmem:[#allocation3 + $0x18] sm:$0xff]
        %v620 = vld [vmem:[#allocation3 + $0x20] sm:$0xff]
        %v621 = vld [vmem:[#allocation3 + $0x28] sm:$0xff]
        %v622 = vld [vmem:[#allocation3 + $0x30] sm:$0xff]
        %v623 = vld [vmem:[#allocation3 + $0x38] sm:$0xff]
        %v624 = vmax.f32 %v616, %v592
        %v625 = vmax.f32 %v617, %v593
        %v626 = vmax.f32 %v618, %v594
        %v627 = vmax.f32 %v619, %v595
        %v628 = vmax.f32 %v620, %v596
        %v629 = vmax.f32 %v621, %v597
        %v630 = vmax.f32 %v622, %v598
        %v631 = vmax.f32 %v623, %v599
        %vm632 = vcmask 261120
        %633 = vst.msk [vmem:[#allocation3] sm:$0xff] %vm632, %v624
        %634 = vst.msk [vmem:[#allocation3 + $0x8] sm:$0xff] %vm632, %v625
        %635 = vst.msk [vmem:[#allocation3 + $0x10] sm:$0xff] %vm632, %v626
        %636 = vst.msk [vmem:[#allocation3 + $0x18] sm:$0xff] %vm632, %v627
        %637 = vst.msk [vmem:[#allocation3 + $0x20] sm:$0xff] %vm632, %v628
        %638 = vst.msk [vmem:[#allocation3 + $0x28] sm:$0xff] %vm632, %v629
        %639 = vst.msk [vmem:[#allocation3 + $0x30] sm:$0xff] %vm632, %v630
        %640 = vst.msk [vmem:[#allocation3 + $0x38] sm:$0xff] %vm632, %v631
      $region56: #{gcn_feature_extractor_forward.11} parent=43 // pred_fallthru
        _
      %p641 = scmp.eq.s32.totalorder %s22, 11
      // Predicated region
      $region57: #{gcn_feature_extractor_forward.11} parent=43 // pred_check
        %p642 = pneg %p641
      $region58: #{gcn_feature_extractor_forward.11} parent=43 // pred_check_branch
        %644 = sbr.rel (%p642) target = $region60
      $region59: #{gcn_feature_extractor_forward.11} parent=43 // pred_region
        %v645 = vld [vmem:[#allocation3] sm:$0xff]
        %v646 = vld [vmem:[#allocation3 + $0x8] sm:$0xff]
        %v647 = vld [vmem:[#allocation3 + $0x10] sm:$0xff]
        %v648 = vld [vmem:[#allocation3 + $0x18] sm:$0xff]
        %v649 = vld [vmem:[#allocation3 + $0x20] sm:$0xff]
        %v650 = vld [vmem:[#allocation3 + $0x28] sm:$0xff]
        %v651 = vld [vmem:[#allocation3 + $0x30] sm:$0xff]
        %v652 = vld [vmem:[#allocation3 + $0x38] sm:$0xff]
        %v653 = vld [vmem:[%s5] sm:$0xf]
        %v654 = vld [vmem:[%s5 + $0x4] sm:$0xf]
        %v655 = vld [vmem:[%s5 + $0x8] sm:$0xf]
        %v656 = vld [vmem:[%s5 + $0xc] sm:$0xf]
        %v657 = vld [vmem:[%s5 + $0x10] sm:$0xf]
        %v658 = vld [vmem:[%s5 + $0x14] sm:$0xf]
        %v659 = vld [vmem:[%s5 + $0x18] sm:$0xf]
        %v660 = vld [vmem:[%s5 + $0x1c] sm:$0xf]
        %v669 = vunpack.c.l.b16 %v653
        %v670 = vunpack.c.l.b16 %v654
        %v671 = vunpack.c.l.b16 %v655
        %v672 = vunpack.c.l.b16 %v656
        %v673 = vunpack.c.l.b16 %v657
        %v674 = vunpack.c.l.b16 %v658
        %v675 = vunpack.c.l.b16 %v659
        %v676 = vunpack.c.l.b16 %v660
        %v677 = vpack.c.b16 %v670, %v669
        %v678 = vpack.c.b16 %v672, %v671
        %v679 = vpack.c.b16 %v674, %v673
        %v680 = vpack.c.b16 %v676, %v675
        %v686 = vsel %vm514, %v312, 0
        %v689 = vsel %vm514, %v313, 0
        %v692 = vsel %vm514, %v314, 0
        %v695 = vsel %vm514, %v315, 0
        %697 = vmatprep.subr.bf16.mxu0 0
        %698 = vmatpush1.bf16.msra.mxu0 %v677
        %699 = vmatprep.subr.bf16.mxu0 0
        %700 = vmatpush1.bf16.msra.mxu0 %v678
        %701 = vmatprep.subr.bf16.mxu0 0
        %702 = vmatpush1.bf16.msra.mxu0 %v679
        %703 = vmatprep.subr.bf16.mxu0 0
        %704 = vmatpush1.bf16.msra.mxu0 %v680
        %705 = vmatprep.subr.bf16.mxu0 0
        %706 = vmatpush1.bf16.msra.mxu0 0
        %707 = vmatprep.subr.bf16.mxu0 0
        %708 = vmatpush1.bf16.msra.mxu0 0
        %709 = vmatprep.subr.bf16.mxu0 0
        %710 = vmatpush1.bf16.msra.mxu0 0
        %711 = vmatprep.subr.bf16.mxu0 0
        %712 = vmatpush1.bf16.msra.mxu0 0
        %713 = vmatprep.subr.bf16.mxu0 0
        %714 = vmatpush1.bf16.msra.mxu0 0
        %715 = vmatprep.subr.bf16.mxu0 0
        %716 = vmatpush1.bf16.msra.mxu0 0
        %717 = vmatprep.subr.bf16.mxu0 0
        %718 = vmatpush1.bf16.msra.mxu0 0
        %719 = vmatprep.subr.bf16.mxu0 0
        %720 = vmatpush1.bf16.msra.mxu0 0
        %721 = vmatprep.subr.bf16.mxu0 0
        %722 = vmatpush1.bf16.msra.mxu0 0
        %723 = vmatprep.subr.bf16.mxu0 0
        %724 = vmatpush1.bf16.msra.mxu0 0
        %725 = vmatprep.subr.bf16.mxu0 0
        %726 = vmatpush1.bf16.msra.mxu0 0
        %727 = vmatprep.subr.bf16.mxu0 0
        %728 = vmatpush1.bf16.msra.mxu0 0
        %729 = vmatprep.mubr.bf16.mxu0 0
        %730 = vmatmul.mubr.bf16.gmra.mrb[0].mxu0 %v686
        %v731 = vpop.f32.mrb[0].mxu0
        %v732 = vadd.f32 0.0, %v731
        %v733 = vpop.f32.mrb[0].mxu0
        %v734 = vpop.f32.mrb[0].mxu0
        %v735 = vadd.f32 0.0, %v734
        %v736 = vpop.f32.mrb[0].mxu0
        %737 = vmatprep.mubr.bf16.mxu0 0
        %738 = vmatmul.mubr.bf16.gmra.mrb[0].mxu0 %v689
        %v739 = vpop.f32.mrb[0].mxu0
        %v740 = vadd.f32 0.0, %v739
        %v741 = vpop.f32.mrb[0].mxu0
        %v742 = vpop.f32.mrb[0].mxu0
        %v743 = vadd.f32 0.0, %v742
        %v744 = vpop.f32.mrb[0].mxu0
        %745 = vmatprep.mubr.bf16.mxu0 0
        %746 = vmatmul.mubr.bf16.gmra.mrb[0].mxu0 %v692
        %v747 = vpop.f32.mrb[0].mxu0
        %v748 = vadd.f32 0.0, %v747
        %v749 = vpop.f32.mrb[0].mxu0
        %v750 = vpop.f32.mrb[0].mxu0
        %v751 = vadd.f32 0.0, %v750
        %v752 = vpop.f32.mrb[0].mxu0
        %753 = vmatprep.mubr.bf16.mxu0 0
        %754 = vmatmul.mubr.bf16.gmra.mrb[0].mxu0 %v695
        %v755 = vpop.f32.mrb[0].mxu0
        %v756 = vadd.f32 0.0, %v755
        %v757 = vpop.f32.mrb[0].mxu0
        %v758 = vpop.f32.mrb[0].mxu0
        %v759 = vadd.f32 0.0, %v758
        %v760 = vpop.f32.mrb[0].mxu0
        %761 = vdwg.mxu0
        %v762 = vadd.f32 %v645, %v732
        %v763 = vadd.f32 %v646, %v735
        %v764 = vadd.f32 %v647, %v740
        %v765 = vadd.f32 %v648, %v743
        %v766 = vadd.f32 %v649, %v748
        %v767 = vadd.f32 %v650, %v751
        %v768 = vadd.f32 %v651, %v756
        %v769 = vadd.f32 %v652, %v759
        %vm770 = vcmask 261120
        %771 = vst.msk [vmem:[%s301] sm:$0xff] %vm770, %v762
        %772 = vst.msk [vmem:[%s301 + $0x8] sm:$0xff] %vm770, %v763
        %773 = vst.msk [vmem:[%s301 + $0x10] sm:$0xff] %vm770, %v764
        %774 = vst.msk [vmem:[%s301 + $0x18] sm:$0xff] %vm770, %v765
        %775 = vst.msk [vmem:[%s301 + $0x20] sm:$0xff] %vm770, %v766
        %776 = vst.msk [vmem:[%s301 + $0x28] sm:$0xff] %vm770, %v767
        %777 = vst.msk [vmem:[%s301 + $0x30] sm:$0xff] %vm770, %v768
        %778 = vst.msk [vmem:[%s301 + $0x38] sm:$0xff] %vm770, %v769
      $region60: #{gcn_feature_extractor_forward.11} parent=43 // pred_fallthru
        _
      %s779 = smul.u32 8, %s21
      %p780 = scmp.lt.s32.totalorder %s779, 15
      %s781 = scalar_select %p780, %s779, 15
      %s782 = smul.addr %s781, 8
      %s783 = scalar_lea.vmem %s6, %s782
      // Predicated region
      $region61: #{gcn_feature_extractor_forward.11} parent=43 // pred_check
        %p784 = pneg %p185
      $region62: #{gcn_feature_extractor_forward.11} parent=43 // pred_check_branch
        %786 = sbr.rel (%p784) target = $region64
      $region63: #{gcn_feature_extractor_forward.11} parent=43 // pred_region
        %s787 = smul.u32 8, %s21
      $region64: #{gcn_feature_extractor_forward.11} parent=43 // pred_fallthru
        _
    $region44: #{gcn_feature_extractor_forward.11} parent=5 // pred_fallthru
      _
    %p788 = scmp.le.s32.totalorder 2, %s12
    // Predicated region
    $region65: #{gcn_feature_extractor_forward.11} parent=5 // pred_check
      %p789 = pneg %p788
    $region66: #{gcn_feature_extractor_forward.11} parent=5 // pred_check_branch
      %791 = sbr.rel (%p789) target = $region68
    $region67: #{gcn_feature_extractor_forward.11} parent=5 // pred_region
      %s792 = ssub.s32 %s12, 2
      // Predicated region
      $region69: #{gcn_feature_extractor_forward.11} parent=67 // pred_check
        %p793 = pneg %p191
      $region70: #{gcn_feature_extractor_forward.11} parent=67 // pred_check_branch
        %795 = sbr.rel (%p793) target = $region72
      $region71: #{gcn_feature_extractor_forward.11} parent=67 // pred_region
        %s796 = smul.u32 8, %s23
        %p797 = scmp.lt.s32.totalorder %s796, 15
        %s798 = scalar_select %p797, %s796, 15
        %s799 = smul.addr %s798, 8
        %s800 = scalar_lea.vmem %s6, %s799
      $region72: #{gcn_feature_extractor_forward.11} parent=67 // pred_fallthru
        _
    $region68: #{gcn_feature_extractor_forward.11} parent=5 // pred_fallthru
      _
  $region6: #{gcn_feature_extractor_forward.11} parent=0 // loop_footer
    %s16 = sadd.s32 1, %s12
  $region7: #{gcn_feature_extractor_forward.11} parent=0 // loop_footer_branch
    %11 = sbr.rel target = $region3
  $region8: #{gcn_feature_extractor_forward.11} parent=0 // loop_exit
    _

</llo_original>
